<compile_context>
chip_gen: v5e
topology: v5e:2x2
jax: 0.10.0
libtpu: 0.0.40
codegen_flags: <defaults>
</compile_context>

<pallas_src>
import functools

import jax
import jax.numpy as jnp
import numpy as np
from jax.experimental import pallas as pl
from jax.experimental.pallas import tpu as pltpu

HP = 128    # padded hidden dim       (real hidden = output_dim_* = 4)
FP = 1024   # padded fc dim           (real fc_dim = 1000)
OP = 128    # padded output lane dim  (real output dim = 4)


# ----------------------------------------------------------------------------
# Fused Pallas kernel: beta AF_LSTM + factor AF_LSTM + batched matmul
# ----------------------------------------------------------------------------
def ca0_fused_kernel(xb_ref, xf_ref,
                     bwih_ref, bwhh_ref, bb_ref, bw1_ref, bb1_ref, bw2_ref, bb2_ref,
                     fwih_ref, fwhh_ref, fb_ref, fw1_ref, fb1_ref, fw2_ref, fb2_ref,
                     out_ref, *, n_batch, t_beta, t_factor):
    bf16 = jnp.bfloat16
    f32 = jnp.float32

    def af_lstm(x, wih, whh, b, w1, b1, w2, b2, n_steps):
        # x: (T*N, D) f32, timestep-major rows (row = t*N + n).
        # Hoisted input projection: one MXU matmul for all timesteps (+ bias).
        gx = jnp.dot(x.astype(bf16), wih, preferred_element_type=f32) + b   # (T*N, 4*HP)
        h = jnp.zeros((n_batch, HP), f32)
        c = jnp.zeros((n_batch, HP), f32)
        hs = []
        for t in range(n_steps):                       # tiny, static trip count
            g = gx[t * n_batch:(t + 1) * n_batch, :] + jnp.dot(
                h.astype(bf16), whh, preferred_element_type=f32)
            # PyTorch gate order i, f, g, o; each gate owns a full 128-lane slab
            # so these are lane-aligned full-vreg slices.
            i_g = jax.nn.sigmoid(g[:, 0 * HP:1 * HP])
            f_g = jax.nn.sigmoid(g[:, 1 * HP:2 * HP])
            g_g = jnp.tanh(g[:, 2 * HP:3 * HP])
            o_g = jax.nn.sigmoid(g[:, 3 * HP:4 * HP])
            c = f_g * c + i_g * g_g
            h = o_g * jnp.tanh(c)
            hs.append(h)
        h_all = jnp.concatenate(hs, axis=0)            # (T*N, HP), timestep-major
        # MLP head applied once, outside the serial recurrence.
        z = jnp.maximum(
            jnp.dot(h_all.astype(bf16), w1, preferred_element_type=f32) + b1, 0.0)
        return jnp.dot(z.astype(bf16), w2, preferred_element_type=f32) + b2  # (T*N, OP)

    yb = af_lstm(xb_ref[...], bwih_ref[...], bwhh_ref[...], bb_ref[...],
                 bw1_ref[...], bb1_ref[...], bw2_ref[...], bb2_ref[...], t_beta)
    yf = af_lstm(xf_ref[...], fwih_ref[...], fwhh_ref[...], fb_ref[...],
                 fw1_ref[...], fb1_ref[...], fw2_ref[...], fb2_ref[...], t_factor)

    # beta_out @ factor_out on the VPU (contraction length = t_factor = K_beta):
    #   out[t*N + n, :] = sum_k yb[t*N + n, k] * yf[k*N + n, :]
    for t in range(t_beta):
        bt = yb[t * n_batch:(t + 1) * n_batch, :]               # (N, OP)
        acc = jnp.zeros((n_batch, OP), f32)
        for k in range(t_factor):
            acc = acc + bt[:, k:k + 1] * yf[k * n_batch:(k + 1) * n_batch, :]
        out_ref[t * n_batch:(t + 1) * n_batch, :] = acc         # static, lane-dense store


# ----------------------------------------------------------------------------
# Wrapper
# ----------------------------------------------------------------------------
def _full_spec(a):
    nd = a.ndim
    return pl.BlockSpec(a.shape, lambda i, _nd=nd: (0,) * _nd)


def ca0_af_lstm_forward(x_beta, x_factor, beta_params, factor_params,
                        output_dim_factor):
    n, t_beta, d_beta = x_beta.shape
    nf, t_factor, d_factor = x_factor.shape
    assert n == nf
    # Timestep-major 2-D layout (row = t*N + n): lane-dense loads, no mid-axis
    # slicing inside the kernel.  Pure layout plumbing outside the kernel.
    xb = jnp.transpose(x_beta, (1, 0, 2)).reshape(t_beta * n, d_beta)
    xf = jnp.transpose(x_factor, (1, 0, 2)).reshape(t_factor * n, d_factor)

    args = (xb, xf,
            beta_params['wih'], beta_params['whh'], beta_params['b'],
            beta_params['w1'], beta_params['b1'],
            beta_params['w2'], beta_params['b2'],
            factor_params['wih'], factor_params['whh'], factor_params['b'],
            factor_params['w1'], factor_params['b1'],
            factor_params['w2'], factor_params['b2'])

    def net_flops(t, d):
        m = t * n
        return (2 * m * d * 4 * HP + 2 * m * HP * 4 * HP
                + 2 * m * HP * FP + 2 * m * FP * OP)

    cost = pl.CostEstimate(
        flops=int(net_flops(t_beta, d_beta) + net_flops(t_factor, d_factor)
                  + 2 * n * t_beta * t_factor * OP),
        transcendentals=int(5 * HP * n * (t_beta + t_factor)),
        bytes_accessed=int(sum(a.size * a.dtype.itemsize for a in args)
                           + t_beta * n * OP * 4),
    )

    kernel = functools.partial(ca0_fused_kernel, n_batch=n,
                               t_beta=t_beta, t_factor=t_factor)
    out_padded = pl.pallas_call(
        kernel,
        out_shape=jax.ShapeDtypeStruct((t_beta * n, OP), jnp.float32),
        grid=(1,),
        in_specs=[_full_spec(a) for a in args],
        out_specs=pl.BlockSpec((t_beta * n, OP), lambda i: (0, 0)),
        compiler_params=pltpu.CompilerParams(
            dimension_semantics=("arbitrary",),
            vmem_limit_bytes=16 * 1024 * 1024),
        cost_estimate=cost,
    )(*args)

    # (Tb*N, OP) -> (N, Tb, output_dim_factor)
    out = out_padded.reshape(t_beta, n, OP).transpose(1, 0, 2)
    return out[:, :, :output_dim_factor]


# ----------------------------------------------------------------------------
# Pure-JAX reference (same padded math, outside Pallas) for correctness check
# ----------------------------------------------------------------------------
def _af_lstm_ref(x3, p, t_steps):
    # x3: (N, T, D) f32
    bf16, f32 = jnp.bfloat16, jnp.float32
    n = x3.shape[0]
    gx = jnp.einsum('ntd,dg->ntg', x3.astype(bf16), p['wih'],
                    preferred_element_type=f32) + p['b'][None]
    h = jnp.zeros((n, HP), f32)
    c = jnp.zeros((n, HP), f32)
    ys = []
    for t in range(t_steps):
        g = gx[:, t, :] + jnp.dot(h.astype(bf16), p['whh'],
                                  preferred_element_type=f32)
        i_g = jax.nn.sigmoid(g[:, 0 * HP:1 * HP])
        f_g = jax.nn.sigmoid(g[:, 1 * HP:2 * HP])
        g_g = jnp.tanh(g[:, 2 * HP:3 * HP])
        o_g = jax.nn.sigmoid(g[:, 3 * HP:4 * HP])
        c = f_g * c + i_g * g_g
        h = o_g * jnp.tanh(c)
        ys.append(h)
    h_all = jnp.stack(ys, axis=1)                                  # (N, T, HP)
    z = jnp.maximum(jnp.einsum('nth,hf->ntf', h_all.astype(bf16), p['w1'],
                               preferred_element_type=f32) + p['b1'][None], 0.0)
    return jnp.einsum('ntf,fo->nto', z.astype(bf16), p['w2'],
                      preferred_element_type=f32) + p['b2'][None]  # (N, T, OP)


def ca0_af_lstm_reference(x_beta, x_factor, beta_params, factor_params,
                          output_dim_beta, output_dim_factor):
    yb = _af_lstm_ref(x_beta, beta_params, x_beta.shape[1])[:, :, :output_dim_beta]
    yf = _af_lstm_ref(x_factor, factor_params, x_factor.shape[1])[:, :, :output_dim_factor]
    return jnp.einsum('ntk,nkf->ntf', yb, yf)


# ----------------------------------------------------------------------------
# Deterministic parameter construction (padded + bf16 weights)
# ----------------------------------------------------------------------------
def _pad_gate_cols(w, hidden):
    """(rows, 4*hidden) -> (rows, 4*HP); gate k occupies lanes [k*HP, k*HP+hidden)."""
    rows = w.shape[0]
    out = jnp.zeros((rows, 4 * HP), w.dtype)
    for k in range(4):
        out = out.at[:, k * HP:k * HP + hidden].set(w[:, k * hidden:(k + 1) * hidden])
    return out


def init_af_lstm(key, d_in, hidden, fc_dim, d_out):
    """Random AF_LSTM params, stored (in_dim, out_dim), zero-padded, bf16 weights."""
    ks = jax.random.split(key, 7)
    s = 0.1
    wih = s * jax.random.normal(ks[0], (d_in, 4 * hidden), jnp.float32)
    whh = s * jax.random.normal(ks[1], (hidden, 4 * hidden), jnp.float32)
    b = s * jax.random.normal(ks[2], (1, 4 * hidden), jnp.float32)   # b_ih + b_hh combined
    w1 = s * jax.random.normal(ks[3], (hidden, fc_dim), jnp.float32)
    b1 = s * jax.random.normal(ks[4], (1, fc_dim), jnp.float32)
    w2 = s * jax.random.normal(ks[5], (fc_dim, d_out), jnp.float32)
    b2 = s * jax.random.normal(ks[6], (1, d_out), jnp.float32)

    wih_p = _pad_gate_cols(wih, hidden)                                        # (d_in, 4*HP)
    whh_p = jnp.zeros((HP, 4 * HP), jnp.float32).at[:hidden, :].set(
        _pad_gate_cols(whh, hidden))                                           # (HP, 4*HP)
    b_p = _pad_gate_cols(b, hidden)                                            # (1, 4*HP)
    w1_p = jnp.zeros((HP, FP), jnp.float32).at[:hidden, :fc_dim].set(w1)       # (HP, FP)
    b1_p = jnp.zeros((1, FP), jnp.float32).at[:, :fc_dim].set(b1)              # (1, FP)
    w2_p = jnp.zeros((FP, OP), jnp.float32).at[:fc_dim, :d_out].set(w2)        # (FP, OP)
    b2_p = jnp.zeros((1, OP), jnp.float32).at[:, :d_out].set(b2)               # (1, OP)

    return {
        'wih': wih_p.astype(jnp.bfloat16),
        'whh': whh_p.astype(jnp.bfloat16),
        'b': b_p,                              # biases stay f32
        'w1': w1_p.astype(jnp.bfloat16),
        'b1': b1_p,
        'w2': w2_p.astype(jnp.bfloat16),
        'b2': b2_p,
    }


# ----------------------------------------------------------------------------
if __name__ == "__main__":
    # ParamsIO_AF_LSTM (small shapes)
    input_dim_beta, output_dim_beta = 8, 4
    input_dim_factor, output_dim_factor = 16, 4
    FC_DIM = 1000

    N = 8                        # batch (assets)
    T_BETA = 2                   # beta sequence length
    T_FACTOR = output_dim_beta   # required so beta_out @ factor_out contracts

    key = jax.random.PRNGKey(0)
    k_xb, k_xf, k_beta, k_factor = jax.random.split(key, 4)

    beta_params = init_af_lstm(k_beta, input_dim_beta, output_dim_beta,
                               FC_DIM, output_dim_beta)
    factor_params = init_af_lstm(k_factor, input_dim_factor, output_dim_factor,
                                 FC_DIM, output_dim_factor)

    x_beta = jax.random.normal(k_xb, (N, T_BETA, input_dim_beta), jnp.float32)
    x_factor = jax.random.normal(k_xf, (N, T_FACTOR, input_dim_factor),
                                 jnp.float32)

    out = ca0_af_lstm_forward(x_beta, x_factor, beta_params, factor_params,
                              output_dim_factor)
    out = jax.block_until_ready(out)
    assert out.shape == (N, T_BETA, output_dim_factor), out.shape
    assert bool(jnp.all(jnp.isfinite(out)))

    ref = jax.block_until_ready(
        ca0_af_lstm_reference(x_beta, x_factor, beta_params, factor_params,
                              output_dim_beta, output_dim_factor))
    np.testing.assert_allclose(np.asarray(out), np.asarray(ref),
                               rtol=5e-3, atol=5e-3)
    print("KERNEL_OK")
</pallas_src>

<mosaic_0001>
module attributes {stable_mosaic.version = 11 : i64} {
  func.func @ca0_fused_kernel(%arg0: i32, %arg1: memref<16x8xf32, #tpu.memory_space<vmem>>, %arg2: memref<32x16xf32, #tpu.memory_space<vmem>>, %arg3: memref<8x512xbf16, #tpu.memory_space<vmem>>, %arg4: memref<128x512xbf16, #tpu.memory_space<vmem>>, %arg5: memref<1x512xf32, #tpu.memory_space<vmem>>, %arg6: memref<128x1024xbf16, #tpu.memory_space<vmem>>, %arg7: memref<1x1024xf32, #tpu.memory_space<vmem>>, %arg8: memref<1024x128xbf16, #tpu.memory_space<vmem>>, %arg9: memref<1x128xf32, #tpu.memory_space<vmem>>, %arg10: memref<16x512xbf16, #tpu.memory_space<vmem>>, %arg11: memref<128x512xbf16, #tpu.memory_space<vmem>>, %arg12: memref<1x512xf32, #tpu.memory_space<vmem>>, %arg13: memref<128x1024xbf16, #tpu.memory_space<vmem>>, %arg14: memref<1x1024xf32, #tpu.memory_space<vmem>>, %arg15: memref<1024x128xbf16, #tpu.memory_space<vmem>>, %arg16: memref<1x128xf32, #tpu.memory_space<vmem>>, %arg17: memref<16x128xf32, #tpu.memory_space<vmem>>) attributes {dimension_semantics = [#tpu.dimension_semantics<arbitrary>], iteration_bounds = array<i64: 1>, scalar_prefetch = 0 : i64, scratch_operands = 0 : i64, tpu.core_type = #tpu.core_type<tc>, window_params = [{pipeline_mode = #tpu.pipeline_mode<synchronous>, transform_indices = @transform_0, window_bounds = array<i64: 16, 8>}, {pipeline_mode = #tpu.pipeline_mode<synchronous>, transform_indices = @transform_1, window_bounds = array<i64: 32, 16>}, {pipeline_mode = #tpu.pipeline_mode<synchronous>, transform_indices = @transform_2, window_bounds = array<i64: 8, 512>}, {pipeline_mode = #tpu.pipeline_mode<synchronous>, transform_indices = @transform_3, window_bounds = array<i64: 128, 512>}, {pipeline_mode = #tpu.pipeline_mode<synchronous>, transform_indices = @transform_4, window_bounds = array<i64: 1, 512>}, {pipeline_mode = #tpu.pipeline_mode<synchronous>, transform_indices = @transform_5, window_bounds = array<i64: 128, 1024>}, {pipeline_mode = #tpu.pipeline_mode<synchronous>, transform_indices = @transform_6, window_bounds = array<i64: 1, 1024>}, {pipeline_mode = #tpu.pipeline_mode<synchronous>, transform_indices = @transform_7, window_bounds = array<i64: 1024, 128>}, {pipeline_mode = #tpu.pipeline_mode<synchronous>, transform_indices = @transform_8, window_bounds = array<i64: 1, 128>}, {pipeline_mode = #tpu.pipeline_mode<synchronous>, transform_indices = @transform_9, window_bounds = array<i64: 16, 512>}, {pipeline_mode = #tpu.pipeline_mode<synchronous>, transform_indices = @transform_10, window_bounds = array<i64: 128, 512>}, {pipeline_mode = #tpu.pipeline_mode<synchronous>, transform_indices = @transform_11, window_bounds = array<i64: 1, 512>}, {pipeline_mode = #tpu.pipeline_mode<synchronous>, transform_indices = @transform_12, window_bounds = array<i64: 128, 1024>}, {pipeline_mode = #tpu.pipeline_mode<synchronous>, transform_indices = @transform_13, window_bounds = array<i64: 1, 1024>}, {pipeline_mode = #tpu.pipeline_mode<synchronous>, transform_indices = @transform_14, window_bounds = array<i64: 1024, 128>}, {pipeline_mode = #tpu.pipeline_mode<synchronous>, transform_indices = @transform_15, window_bounds = array<i64: 1, 128>}, {pipeline_mode = #tpu.pipeline_mode<synchronous>, transform_indices = @transform_16, window_bounds = array<i64: 16, 128>}]} {
    %c0 = arith.constant 0 : index
    %c0_0 = arith.constant 0 : index
    %0 = vector.load %arg1[%c0, %c0_0] : memref<16x8xf32, #tpu.memory_space<vmem>>, vector<16x8xf32>
    %c0_1 = arith.constant 0 : index
    %c0_2 = arith.constant 0 : index
    %1 = vector.load %arg3[%c0_1, %c0_2] : memref<8x512xbf16, #tpu.memory_space<vmem>>, vector<8x512xbf16>
    %c0_3 = arith.constant 0 : index
    %c0_4 = arith.constant 0 : index
    %2 = vector.load %arg4[%c0_3, %c0_4] : memref<128x512xbf16, #tpu.memory_space<vmem>>, vector<128x512xbf16>
    %c0_5 = arith.constant 0 : index
    %c0_6 = arith.constant 0 : index
    %3 = vector.load %arg5[%c0_5, %c0_6] : memref<1x512xf32, #tpu.memory_space<vmem>>, vector<1x512xf32>
    %c0_7 = arith.constant 0 : index
    %c0_8 = arith.constant 0 : index
    %4 = vector.load %arg6[%c0_7, %c0_8] : memref<128x1024xbf16, #tpu.memory_space<vmem>>, vector<128x1024xbf16>
    %c0_9 = arith.constant 0 : index
    %c0_10 = arith.constant 0 : index
    %5 = vector.load %arg7[%c0_9, %c0_10] : memref<1x1024xf32, #tpu.memory_space<vmem>>, vector<1x1024xf32>
    %c0_11 = arith.constant 0 : index
    %c0_12 = arith.constant 0 : index
    %6 = vector.load %arg8[%c0_11, %c0_12] : memref<1024x128xbf16, #tpu.memory_space<vmem>>, vector<1024x128xbf16>
    %c0_13 = arith.constant 0 : index
    %c0_14 = arith.constant 0 : index
    %7 = vector.load %arg9[%c0_13, %c0_14] : memref<1x128xf32, #tpu.memory_space<vmem>>, vector<1x128xf32>
    %8 = arith.truncf %0 : vector<16x8xf32> to vector<16x8xbf16>
    %cst = arith.constant dense<0.000000e+00> : vector<16x512xf32>
    %9 = tpu.matmul %8, %1, %cst {dimension_numbers = #tpu.dot_dimension_numbers<[1], [0], [0], [1], [0, 0, 1, 1], [], []>} : vector<16x8xbf16>, vector<8x512xbf16>, vector<16x512xf32> -> vector<16x512xf32>
    %10 = vector.broadcast %3 : vector<1x512xf32> to vector<16x512xf32>
    %11 = arith.addf %9, %10 : vector<16x512xf32>
    %cst_15 = arith.constant 0.000000e+00 : f32
    %12 = vector.broadcast %cst_15 : f32 to vector<8x128xf32>
    %cst_16 = arith.constant 0.000000e+00 : f32
    %13 = vector.broadcast %cst_16 : f32 to vector<8x128xf32>
    %14 = vector.extract_strided_slice %11 {offsets = [0, 0], sizes = [8, 512], strides = [1, 1]} : vector<16x512xf32> to vector<8x512xf32>
    %15 = arith.truncf %12 : vector<8x128xf32> to vector<8x128xbf16>
    %cst_17 = arith.constant dense<0.000000e+00> : vector<8x512xf32>
    %16 = tpu.matmul %15, %2, %cst_17 {dimension_numbers = #tpu.dot_dimension_numbers<[1], [0], [0], [1], [0, 0, 1, 1], [], []>} : vector<8x128xbf16>, vector<128x512xbf16>, vector<8x512xf32> -> vector<8x512xf32>
    %17 = arith.addf %14, %16 : vector<8x512xf32>
    %18 = vector.extract_strided_slice %17 {offsets = [0, 0], sizes = [8, 128], strides = [1, 1]} : vector<8x512xf32> to vector<8x128xf32>
    %19 = arith.negf %18 : vector<8x128xf32>
    %20 = math.exp %19 : vector<8x128xf32>
    %cst_18 = arith.constant 1.000000e+00 : f32
    %21 = vector.broadcast %cst_18 : f32 to vector<8x128xf32>
    %22 = arith.addf %21, %20 : vector<8x128xf32>
    %23 = arith.divf %21, %22 : vector<8x128xf32>
    %24 = vector.extract_strided_slice %17 {offsets = [0, 128], sizes = [8, 128], strides = [1, 1]} : vector<8x512xf32> to vector<8x128xf32>
    %25 = arith.negf %24 : vector<8x128xf32>
    %26 = math.exp %25 : vector<8x128xf32>
    %cst_19 = arith.constant 1.000000e+00 : f32
    %27 = vector.broadcast %cst_19 : f32 to vector<8x128xf32>
    %28 = arith.addf %27, %26 : vector<8x128xf32>
    %29 = arith.divf %27, %28 : vector<8x128xf32>
    %30 = vector.extract_strided_slice %17 {offsets = [0, 256], sizes = [8, 128], strides = [1, 1]} : vector<8x512xf32> to vector<8x128xf32>
    %31 = math.tanh %30 : vector<8x128xf32>
    %32 = vector.extract_strided_slice %17 {offsets = [0, 384], sizes = [8, 128], strides = [1, 1]} : vector<8x512xf32> to vector<8x128xf32>
    %33 = arith.negf %32 : vector<8x128xf32>
    %34 = math.exp %33 : vector<8x128xf32>
    %cst_20 = arith.constant 1.000000e+00 : f32
    %35 = vector.broadcast %cst_20 : f32 to vector<8x128xf32>
    %36 = arith.addf %35, %34 : vector<8x128xf32>
    %37 = arith.divf %35, %36 : vector<8x128xf32>
    %38 = arith.mulf %29, %13 : vector<8x128xf32>
    %39 = arith.mulf %23, %31 : vector<8x128xf32>
    %40 = arith.addf %38, %39 : vector<8x128xf32>
    %41 = math.tanh %40 : vector<8x128xf32>
    %42 = arith.mulf %37, %41 : vector<8x128xf32>
    %43 = vector.extract_strided_slice %11 {offsets = [8, 0], sizes = [8, 512], strides = [1, 1]} : vector<16x512xf32> to vector<8x512xf32>
    %44 = arith.truncf %42 : vector<8x128xf32> to vector<8x128xbf16>
    %cst_21 = arith.constant dense<0.000000e+00> : vector<8x512xf32>
    %45 = tpu.matmul %44, %2, %cst_21 {dimension_numbers = #tpu.dot_dimension_numbers<[1], [0], [0], [1], [0, 0, 1, 1], [], []>} : vector<8x128xbf16>, vector<128x512xbf16>, vector<8x512xf32> -> vector<8x512xf32>
    %46 = arith.addf %43, %45 : vector<8x512xf32>
    %47 = vector.extract_strided_slice %46 {offsets = [0, 0], sizes = [8, 128], strides = [1, 1]} : vector<8x512xf32> to vector<8x128xf32>
    %48 = arith.negf %47 : vector<8x128xf32>
    %49 = math.exp %48 : vector<8x128xf32>
    %cst_22 = arith.constant 1.000000e+00 : f32
    %50 = vector.broadcast %cst_22 : f32 to vector<8x128xf32>
    %51 = arith.addf %50, %49 : vector<8x128xf32>
    %52 = arith.divf %50, %51 : vector<8x128xf32>
    %53 = vector.extract_strided_slice %46 {offsets = [0, 128], sizes = [8, 128], strides = [1, 1]} : vector<8x512xf32> to vector<8x128xf32>
    %54 = arith.negf %53 : vector<8x128xf32>
    %55 = math.exp %54 : vector<8x128xf32>
    %cst_23 = arith.constant 1.000000e+00 : f32
    %56 = vector.broadcast %cst_23 : f32 to vector<8x128xf32>
    %57 = arith.addf %56, %55 : vector<8x128xf32>
    %58 = arith.divf %56, %57 : vector<8x128xf32>
    %59 = vector.extract_strided_slice %46 {offsets = [0, 256], sizes = [8, 128], strides = [1, 1]} : vector<8x512xf32> to vector<8x128xf32>
    %60 = math.tanh %59 : vector<8x128xf32>
    %61 = vector.extract_strided_slice %46 {offsets = [0, 384], sizes = [8, 128], strides = [1, 1]} : vector<8x512xf32> to vector<8x128xf32>
    %62 = arith.negf %61 : vector<8x128xf32>
    %63 = math.exp %62 : vector<8x128xf32>
    %cst_24 = arith.constant 1.000000e+00 : f32
    %64 = vector.broadcast %cst_24 : f32 to vector<8x128xf32>
    %65 = arith.addf %64, %63 : vector<8x128xf32>
    %66 = arith.divf %64, %65 : vector<8x128xf32>
    %67 = arith.mulf %58, %40 : vector<8x128xf32>
    %68 = arith.mulf %52, %60 : vector<8x128xf32>
    %69 = arith.addf %67, %68 : vector<8x128xf32>
    %70 = math.tanh %69 : vector<8x128xf32>
    %71 = arith.mulf %66, %70 : vector<8x128xf32>
    %72 = tpu.concatenate %42, %71 in 0 : vector<8x128xf32>, vector<8x128xf32> -> vector<16x128xf32>
    %73 = arith.truncf %72 : vector<16x128xf32> to vector<16x128xbf16>
    %cst_25 = arith.constant dense<0.000000e+00> : vector<16x1024xf32>
    %74 = tpu.matmul %73, %4, %cst_25 {dimension_numbers = #tpu.dot_dimension_numbers<[1], [0], [0], [1], [0, 0, 1, 1], [], []>} : vector<16x128xbf16>, vector<128x1024xbf16>, vector<16x1024xf32> -> vector<16x1024xf32>
    %75 = vector.broadcast %5 : vector<1x1024xf32> to vector<16x1024xf32>
    %76 = arith.addf %74, %75 : vector<16x1024xf32>
    %cst_26 = arith.constant 0.000000e+00 : f32
    %77 = vector.broadcast %cst_26 : f32 to vector<16x1024xf32>
    %78 = arith.maximumf %76, %77 : vector<16x1024xf32>
    %79 = arith.truncf %78 : vector<16x1024xf32> to vector<16x1024xbf16>
    %cst_27 = arith.constant dense<0.000000e+00> : vector<16x128xf32>
    %80 = tpu.matmul %79, %6, %cst_27 {dimension_numbers = #tpu.dot_dimension_numbers<[1], [0], [0], [1], [0, 0, 1, 1], [], []>} : vector<16x1024xbf16>, vector<1024x128xbf16>, vector<16x128xf32> -> vector<16x128xf32>
    %81 = vector.broadcast %7 : vector<1x128xf32> to vector<16x128xf32>
    %82 = arith.addf %80, %81 : vector<16x128xf32>
    %c0_28 = arith.constant 0 : index
    %c0_29 = arith.constant 0 : index
    %83 = vector.load %arg2[%c0_28, %c0_29] : memref<32x16xf32, #tpu.memory_space<vmem>>, vector<32x16xf32>
    %c0_30 = arith.constant 0 : index
    %c0_31 = arith.constant 0 : index
    %84 = vector.load %arg10[%c0_30, %c0_31] : memref<16x512xbf16, #tpu.memory_space<vmem>>, vector<16x512xbf16>
    %c0_32 = arith.constant 0 : index
    %c0_33 = arith.constant 0 : index
    %85 = vector.load %arg11[%c0_32, %c0_33] : memref<128x512xbf16, #tpu.memory_space<vmem>>, vector<128x512xbf16>
    %c0_34 = arith.constant 0 : index
    %c0_35 = arith.constant 0 : index
    %86 = vector.load %arg12[%c0_34, %c0_35] : memref<1x512xf32, #tpu.memory_space<vmem>>, vector<1x512xf32>
    %c0_36 = arith.constant 0 : index
    %c0_37 = arith.constant 0 : index
    %87 = vector.load %arg13[%c0_36, %c0_37] : memref<128x1024xbf16, #tpu.memory_space<vmem>>, vector<128x1024xbf16>
    %c0_38 = arith.constant 0 : index
    %c0_39 = arith.constant 0 : index
    %88 = vector.load %arg14[%c0_38, %c0_39] : memref<1x1024xf32, #tpu.memory_space<vmem>>, vector<1x1024xf32>
    %c0_40 = arith.constant 0 : index
    %c0_41 = arith.constant 0 : index
    %89 = vector.load %arg15[%c0_40, %c0_41] : memref<1024x128xbf16, #tpu.memory_space<vmem>>, vector<1024x128xbf16>
    %c0_42 = arith.constant 0 : index
    %c0_43 = arith.constant 0 : index
    %90 = vector.load %arg16[%c0_42, %c0_43] : memref<1x128xf32, #tpu.memory_space<vmem>>, vector<1x128xf32>
    %91 = arith.truncf %83 : vector<32x16xf32> to vector<32x16xbf16>
    %cst_44 = arith.constant dense<0.000000e+00> : vector<32x512xf32>
    %92 = tpu.matmul %91, %84, %cst_44 {dimension_numbers = #tpu.dot_dimension_numbers<[1], [0], [0], [1], [0, 0, 1, 1], [], []>} : vector<32x16xbf16>, vector<16x512xbf16>, vector<32x512xf32> -> vector<32x512xf32>
    %93 = vector.broadcast %86 : vector<1x512xf32> to vector<32x512xf32>
    %94 = arith.addf %92, %93 : vector<32x512xf32>
    %cst_45 = arith.constant 0.000000e+00 : f32
    %95 = vector.broadcast %cst_45 : f32 to vector<8x128xf32>
    %cst_46 = arith.constant 0.000000e+00 : f32
    %96 = vector.broadcast %cst_46 : f32 to vector<8x128xf32>
    %97 = vector.extract_strided_slice %94 {offsets = [0, 0], sizes = [8, 512], strides = [1, 1]} : vector<32x512xf32> to vector<8x512xf32>
    %98 = arith.truncf %95 : vector<8x128xf32> to vector<8x128xbf16>
    %cst_47 = arith.constant dense<0.000000e+00> : vector<8x512xf32>
    %99 = tpu.matmul %98, %85, %cst_47 {dimension_numbers = #tpu.dot_dimension_numbers<[1], [0], [0], [1], [0, 0, 1, 1], [], []>} : vector<8x128xbf16>, vector<128x512xbf16>, vector<8x512xf32> -> vector<8x512xf32>
    %100 = arith.addf %97, %99 : vector<8x512xf32>
    %101 = vector.extract_strided_slice %100 {offsets = [0, 0], sizes = [8, 128], strides = [1, 1]} : vector<8x512xf32> to vector<8x128xf32>
    %102 = arith.negf %101 : vector<8x128xf32>
    %103 = math.exp %102 : vector<8x128xf32>
    %cst_48 = arith.constant 1.000000e+00 : f32
    %104 = vector.broadcast %cst_48 : f32 to vector<8x128xf32>
    %105 = arith.addf %104, %103 : vector<8x128xf32>
    %106 = arith.divf %104, %105 : vector<8x128xf32>
    %107 = vector.extract_strided_slice %100 {offsets = [0, 128], sizes = [8, 128], strides = [1, 1]} : vector<8x512xf32> to vector<8x128xf32>
    %108 = arith.negf %107 : vector<8x128xf32>
    %109 = math.exp %108 : vector<8x128xf32>
    %cst_49 = arith.constant 1.000000e+00 : f32
    %110 = vector.broadcast %cst_49 : f32 to vector<8x128xf32>
    %111 = arith.addf %110, %109 : vector<8x128xf32>
    %112 = arith.divf %110, %111 : vector<8x128xf32>
    %113 = vector.extract_strided_slice %100 {offsets = [0, 256], sizes = [8, 128], strides = [1, 1]} : vector<8x512xf32> to vector<8x128xf32>
    %114 = math.tanh %113 : vector<8x128xf32>
    %115 = vector.extract_strided_slice %100 {offsets = [0, 384], sizes = [8, 128], strides = [1, 1]} : vector<8x512xf32> to vector<8x128xf32>
    %116 = arith.negf %115 : vector<8x128xf32>
    %117 = math.exp %116 : vector<8x128xf32>
    %cst_50 = arith.constant 1.000000e+00 : f32
    %118 = vector.broadcast %cst_50 : f32 to vector<8x128xf32>
    %119 = arith.addf %118, %117 : vector<8x128xf32>
    %120 = arith.divf %118, %119 : vector<8x128xf32>
    %121 = arith.mulf %112, %96 : vector<8x128xf32>
    %122 = arith.mulf %106, %114 : vector<8x128xf32>
    %123 = arith.addf %121, %122 : vector<8x128xf32>
    %124 = math.tanh %123 : vector<8x128xf32>
    %125 = arith.mulf %120, %124 : vector<8x128xf32>
    %126 = vector.extract_strided_slice %94 {offsets = [8, 0], sizes = [8, 512], strides = [1, 1]} : vector<32x512xf32> to vector<8x512xf32>
    %127 = arith.truncf %125 : vector<8x128xf32> to vector<8x128xbf16>
    %cst_51 = arith.constant dense<0.000000e+00> : vector<8x512xf32>
    %128 = tpu.matmul %127, %85, %cst_51 {dimension_numbers = #tpu.dot_dimension_numbers<[1], [0], [0], [1], [0, 0, 1, 1], [], []>} : vector<8x128xbf16>, vector<128x512xbf16>, vector<8x512xf32> -> vector<8x512xf32>
    %129 = arith.addf %126, %128 : vector<8x512xf32>
    %130 = vector.extract_strided_slice %129 {offsets = [0, 0], sizes = [8, 128], strides = [1, 1]} : vector<8x512xf32> to vector<8x128xf32>
    %131 = arith.negf %130 : vector<8x128xf32>
    %132 = math.exp %131 : vector<8x128xf32>
    %cst_52 = arith.constant 1.000000e+00 : f32
    %133 = vector.broadcast %cst_52 : f32 to vector<8x128xf32>
    %134 = arith.addf %133, %132 : vector<8x128xf32>
    %135 = arith.divf %133, %134 : vector<8x128xf32>
    %136 = vector.extract_strided_slice %129 {offsets = [0, 128], sizes = [8, 128], strides = [1, 1]} : vector<8x512xf32> to vector<8x128xf32>
    %137 = arith.negf %136 : vector<8x128xf32>
    %138 = math.exp %137 : vector<8x128xf32>
    %cst_53 = arith.constant 1.000000e+00 : f32
    %139 = vector.broadcast %cst_53 : f32 to vector<8x128xf32>
    %140 = arith.addf %139, %138 : vector<8x128xf32>
    %141 = arith.divf %139, %140 : vector<8x128xf32>
    %142 = vector.extract_strided_slice %129 {offsets = [0, 256], sizes = [8, 128], strides = [1, 1]} : vector<8x512xf32> to vector<8x128xf32>
    %143 = math.tanh %142 : vector<8x128xf32>
    %144 = vector.extract_strided_slice %129 {offsets = [0, 384], sizes = [8, 128], strides = [1, 1]} : vector<8x512xf32> to vector<8x128xf32>
    %145 = arith.negf %144 : vector<8x128xf32>
    %146 = math.exp %145 : vector<8x128xf32>
    %cst_54 = arith.constant 1.000000e+00 : f32
    %147 = vector.broadcast %cst_54 : f32 to vector<8x128xf32>
    %148 = arith.addf %147, %146 : vector<8x128xf32>
    %149 = arith.divf %147, %148 : vector<8x128xf32>
    %150 = arith.mulf %141, %123 : vector<8x128xf32>
    %151 = arith.mulf %135, %143 : vector<8x128xf32>
    %152 = arith.addf %150, %151 : vector<8x128xf32>
    %153 = math.tanh %152 : vector<8x128xf32>
    %154 = arith.mulf %149, %153 : vector<8x128xf32>
    %155 = vector.extract_strided_slice %94 {offsets = [16, 0], sizes = [8, 512], strides = [1, 1]} : vector<32x512xf32> to vector<8x512xf32>
    %156 = arith.truncf %154 : vector<8x128xf32> to vector<8x128xbf16>
    %cst_55 = arith.constant dense<0.000000e+00> : vector<8x512xf32>
    %157 = tpu.matmul %156, %85, %cst_55 {dimension_numbers = #tpu.dot_dimension_numbers<[1], [0], [0], [1], [0, 0, 1, 1], [], []>} : vector<8x128xbf16>, vector<128x512xbf16>, vector<8x512xf32> -> vector<8x512xf32>
    %158 = arith.addf %155, %157 : vector<8x512xf32>
    %159 = vector.extract_strided_slice %158 {offsets = [0, 0], sizes = [8, 128], strides = [1, 1]} : vector<8x512xf32> to vector<8x128xf32>
    %160 = arith.negf %159 : vector<8x128xf32>
    %161 = math.exp %160 : vector<8x128xf32>
    %cst_56 = arith.constant 1.000000e+00 : f32
    %162 = vector.broadcast %cst_56 : f32 to vector<8x128xf32>
    %163 = arith.addf %162, %161 : vector<8x128xf32>
    %164 = arith.divf %162, %163 : vector<8x128xf32>
    %165 = vector.extract_strided_slice %158 {offsets = [0, 128], sizes = [8, 128], strides = [1, 1]} : vector<8x512xf32> to vector<8x128xf32>
    %166 = arith.negf %165 : vector<8x128xf32>
    %167 = math.exp %166 : vector<8x128xf32>
    %cst_57 = arith.constant 1.000000e+00 : f32
    %168 = vector.broadcast %cst_57 : f32 to vector<8x128xf32>
    %169 = arith.addf %168, %167 : vector<8x128xf32>
    %170 = arith.divf %168, %169 : vector<8x128xf32>
    %171 = vector.extract_strided_slice %158 {offsets = [0, 256], sizes = [8, 128], strides = [1, 1]} : vector<8x512xf32> to vector<8x128xf32>
    %172 = math.tanh %171 : vector<8x128xf32>
    %173 = vector.extract_strided_slice %158 {offsets = [0, 384], sizes = [8, 128], strides = [1, 1]} : vector<8x512xf32> to vector<8x128xf32>
    %174 = arith.negf %173 : vector<8x128xf32>
    %175 = math.exp %174 : vector<8x128xf32>
    %cst_58 = arith.constant 1.000000e+00 : f32
    %176 = vector.broadcast %cst_58 : f32 to vector<8x128xf32>
    %177 = arith.addf %176, %175 : vector<8x128xf32>
    %178 = arith.divf %176, %177 : vector<8x128xf32>
    %179 = arith.mulf %170, %152 : vector<8x128xf32>
    %180 = arith.mulf %164, %172 : vector<8x128xf32>
    %181 = arith.addf %179, %180 : vector<8x128xf32>
    %182 = math.tanh %181 : vector<8x128xf32>
    %183 = arith.mulf %178, %182 : vector<8x128xf32>
    %184 = vector.extract_strided_slice %94 {offsets = [24, 0], sizes = [8, 512], strides = [1, 1]} : vector<32x512xf32> to vector<8x512xf32>
    %185 = arith.truncf %183 : vector<8x128xf32> to vector<8x128xbf16>
    %cst_59 = arith.constant dense<0.000000e+00> : vector<8x512xf32>
    %186 = tpu.matmul %185, %85, %cst_59 {dimension_numbers = #tpu.dot_dimension_numbers<[1], [0], [0], [1], [0, 0, 1, 1], [], []>} : vector<8x128xbf16>, vector<128x512xbf16>, vector<8x512xf32> -> vector<8x512xf32>
    %187 = arith.addf %184, %186 : vector<8x512xf32>
    %188 = vector.extract_strided_slice %187 {offsets = [0, 0], sizes = [8, 128], strides = [1, 1]} : vector<8x512xf32> to vector<8x128xf32>
    %189 = arith.negf %188 : vector<8x128xf32>
    %190 = math.exp %189 : vector<8x128xf32>
    %cst_60 = arith.constant 1.000000e+00 : f32
    %191 = vector.broadcast %cst_60 : f32 to vector<8x128xf32>
    %192 = arith.addf %191, %190 : vector<8x128xf32>
    %193 = arith.divf %191, %192 : vector<8x128xf32>
    %194 = vector.extract_strided_slice %187 {offsets = [0, 128], sizes = [8, 128], strides = [1, 1]} : vector<8x512xf32> to vector<8x128xf32>
    %195 = arith.negf %194 : vector<8x128xf32>
    %196 = math.exp %195 : vector<8x128xf32>
    %cst_61 = arith.constant 1.000000e+00 : f32
    %197 = vector.broadcast %cst_61 : f32 to vector<8x128xf32>
    %198 = arith.addf %197, %196 : vector<8x128xf32>
    %199 = arith.divf %197, %198 : vector<8x128xf32>
    %200 = vector.extract_strided_slice %187 {offsets = [0, 256], sizes = [8, 128], strides = [1, 1]} : vector<8x512xf32> to vector<8x128xf32>
    %201 = math.tanh %200 : vector<8x128xf32>
    %202 = vector.extract_strided_slice %187 {offsets = [0, 384], sizes = [8, 128], strides = [1, 1]} : vector<8x512xf32> to vector<8x128xf32>
    %203 = arith.negf %202 : vector<8x128xf32>
    %204 = math.exp %203 : vector<8x128xf32>
    %cst_62 = arith.constant 1.000000e+00 : f32
    %205 = vector.broadcast %cst_62 : f32 to vector<8x128xf32>
    %206 = arith.addf %205, %204 : vector<8x128xf32>
    %207 = arith.divf %205, %206 : vector<8x128xf32>
    %208 = arith.mulf %199, %181 : vector<8x128xf32>
    %209 = arith.mulf %193, %201 : vector<8x128xf32>
    %210 = arith.addf %208, %209 : vector<8x128xf32>
    %211 = math.tanh %210 : vector<8x128xf32>
    %212 = arith.mulf %207, %211 : vector<8x128xf32>
    %213 = tpu.concatenate %125, %154, %183, %212 in 0 : vector<8x128xf32>, vector<8x128xf32>, vector<8x128xf32>, vector<8x128xf32> -> vector<32x128xf32>
    %214 = arith.truncf %213 : vector<32x128xf32> to vector<32x128xbf16>
    %cst_63 = arith.constant dense<0.000000e+00> : vector<32x1024xf32>
    %215 = tpu.matmul %214, %87, %cst_63 {dimension_numbers = #tpu.dot_dimension_numbers<[1], [0], [0], [1], [0, 0, 1, 1], [], []>} : vector<32x128xbf16>, vector<128x1024xbf16>, vector<32x1024xf32> -> vector<32x1024xf32>
    %216 = vector.broadcast %88 : vector<1x1024xf32> to vector<32x1024xf32>
    %217 = arith.addf %215, %216 : vector<32x1024xf32>
    %cst_64 = arith.constant 0.000000e+00 : f32
    %218 = vector.broadcast %cst_64 : f32 to vector<32x1024xf32>
    %219 = arith.maximumf %217, %218 : vector<32x1024xf32>
    %220 = arith.truncf %219 : vector<32x1024xf32> to vector<32x1024xbf16>
    %cst_65 = arith.constant dense<0.000000e+00> : vector<32x128xf32>
    %221 = tpu.matmul %220, %89, %cst_65 {dimension_numbers = #tpu.dot_dimension_numbers<[1], [0], [0], [1], [0, 0, 1, 1], [], []>} : vector<32x1024xbf16>, vector<1024x128xbf16>, vector<32x128xf32> -> vector<32x128xf32>
    %222 = vector.broadcast %90 : vector<1x128xf32> to vector<32x128xf32>
    %223 = arith.addf %221, %222 : vector<32x128xf32>
    %224 = vector.extract_strided_slice %82 {offsets = [0, 0], sizes = [8, 128], strides = [1, 1]} : vector<16x128xf32> to vector<8x128xf32>
    %cst_66 = arith.constant 0.000000e+00 : f32
    %225 = vector.broadcast %cst_66 : f32 to vector<8x128xf32>
    %226 = vector.extract_strided_slice %224 {offsets = [0, 0], sizes = [8, 1], strides = [1, 1]} : vector<8x128xf32> to vector<8x1xf32>
    %227 = vector.extract_strided_slice %223 {offsets = [0, 0], sizes = [8, 128], strides = [1, 1]} : vector<32x128xf32> to vector<8x128xf32>
    %228 = vector.broadcast %226 : vector<8x1xf32> to vector<8x128xf32>
    %229 = arith.mulf %228, %227 : vector<8x128xf32>
    %230 = arith.addf %225, %229 : vector<8x128xf32>
    %231 = vector.extract_strided_slice %224 {offsets = [0, 1], sizes = [8, 1], strides = [1, 1]} : vector<8x128xf32> to vector<8x1xf32>
    %232 = vector.extract_strided_slice %223 {offsets = [8, 0], sizes = [8, 128], strides = [1, 1]} : vector<32x128xf32> to vector<8x128xf32>
    %233 = vector.broadcast %231 : vector<8x1xf32> to vector<8x128xf32>
    %234 = arith.mulf %233, %232 : vector<8x128xf32>
    %235 = arith.addf %230, %234 : vector<8x128xf32>
    %236 = vector.extract_strided_slice %224 {offsets = [0, 2], sizes = [8, 1], strides = [1, 1]} : vector<8x128xf32> to vector<8x1xf32>
    %237 = vector.extract_strided_slice %223 {offsets = [16, 0], sizes = [8, 128], strides = [1, 1]} : vector<32x128xf32> to vector<8x128xf32>
    %238 = vector.broadcast %236 : vector<8x1xf32> to vector<8x128xf32>
    %239 = arith.mulf %238, %237 : vector<8x128xf32>
    %240 = arith.addf %235, %239 : vector<8x128xf32>
    %241 = vector.extract_strided_slice %224 {offsets = [0, 3], sizes = [8, 1], strides = [1, 1]} : vector<8x128xf32> to vector<8x1xf32>
    %242 = vector.extract_strided_slice %223 {offsets = [24, 0], sizes = [8, 128], strides = [1, 1]} : vector<32x128xf32> to vector<8x128xf32>
    %243 = vector.broadcast %241 : vector<8x1xf32> to vector<8x128xf32>
    %244 = arith.mulf %243, %242 : vector<8x128xf32>
    %245 = arith.addf %240, %244 : vector<8x128xf32>
    %c0_67 = arith.constant 0 : index
    %c0_68 = arith.constant 0 : index
    %246 = vector.load %arg17[%c0_67, %c0_68] : memref<16x128xf32, #tpu.memory_space<vmem>>, vector<8x128xf32>
    tpu.vector_store %arg17[%c0_67, %c0_68], %245 {strides = array<i32>} : memref<16x128xf32, #tpu.memory_space<vmem>>, vector<8x128xf32>,
    %247 = vector.extract_strided_slice %82 {offsets = [8, 0], sizes = [8, 128], strides = [1, 1]} : vector<16x128xf32> to vector<8x128xf32>
    %cst_69 = arith.constant 0.000000e+00 : f32
    %248 = vector.broadcast %cst_69 : f32 to vector<8x128xf32>
    %249 = vector.extract_strided_slice %247 {offsets = [0, 0], sizes = [8, 1], strides = [1, 1]} : vector<8x128xf32> to vector<8x1xf32>
    %250 = vector.extract_strided_slice %223 {offsets = [0, 0], sizes = [8, 128], strides = [1, 1]} : vector<32x128xf32> to vector<8x128xf32>
    %251 = vector.broadcast %249 : vector<8x1xf32> to vector<8x128xf32>
    %252 = arith.mulf %251, %250 : vector<8x128xf32>
    %253 = arith.addf %248, %252 : vector<8x128xf32>
    %254 = vector.extract_strided_slice %247 {offsets = [0, 1], sizes = [8, 1], strides = [1, 1]} : vector<8x128xf32> to vector<8x1xf32>
    %255 = vector.extract_strided_slice %223 {offsets = [8, 0], sizes = [8, 128], strides = [1, 1]} : vector<32x128xf32> to vector<8x128xf32>
    %256 = vector.broadcast %254 : vector<8x1xf32> to vector<8x128xf32>
    %257 = arith.mulf %256, %255 : vector<8x128xf32>
    %258 = arith.addf %253, %257 : vector<8x128xf32>
    %259 = vector.extract_strided_slice %247 {offsets = [0, 2], sizes = [8, 1], strides = [1, 1]} : vector<8x128xf32> to vector<8x1xf32>
    %260 = vector.extract_strided_slice %223 {offsets = [16, 0], sizes = [8, 128], strides = [1, 1]} : vector<32x128xf32> to vector<8x128xf32>
    %261 = vector.broadcast %259 : vector<8x1xf32> to vector<8x128xf32>
    %262 = arith.mulf %261, %260 : vector<8x128xf32>
    %263 = arith.addf %258, %262 : vector<8x128xf32>
    %264 = vector.extract_strided_slice %247 {offsets = [0, 3], sizes = [8, 1], strides = [1, 1]} : vector<8x128xf32> to vector<8x1xf32>
    %265 = vector.extract_strided_slice %223 {offsets = [24, 0], sizes = [8, 128], strides = [1, 1]} : vector<32x128xf32> to vector<8x128xf32>
    %266 = vector.broadcast %264 : vector<8x1xf32> to vector<8x128xf32>
    %267 = arith.mulf %266, %265 : vector<8x128xf32>
    %268 = arith.addf %263, %267 : vector<8x128xf32>
    %c8 = arith.constant 8 : index
    %c0_70 = arith.constant 0 : index
    %269 = vector.load %arg17[%c8, %c0_70] : memref<16x128xf32, #tpu.memory_space<vmem>>, vector<8x128xf32>
    tpu.vector_store %arg17[%c8, %c0_70], %268 {strides = array<i32>} : memref<16x128xf32, #tpu.memory_space<vmem>>, vector<8x128xf32>,
    return
  }
  func.func @transform_0(%arg0: i32) -> (i32, i32) {
    %c0_i32 = arith.constant 0 : i32
    %c0_i32_0 = arith.constant 0 : i32
    %c0_i32_1 = arith.constant 0 : i32
    return %c0_i32, %c0_i32_0 : i32, i32
  }
  func.func @transform_1(%arg0: i32) -> (i32, i32) {
    %c0_i32 = arith.constant 0 : i32
    %c0_i32_0 = arith.constant 0 : i32
    %c0_i32_1 = arith.constant 0 : i32
    return %c0_i32, %c0_i32_0 : i32, i32
  }
  func.func @transform_2(%arg0: i32) -> (i32, i32) {
    %c0_i32 = arith.constant 0 : i32
    %c0_i32_0 = arith.constant 0 : i32
    %c0_i32_1 = arith.constant 0 : i32
    return %c0_i32, %c0_i32_0 : i32, i32
  }
  func.func @transform_3(%arg0: i32) -> (i32, i32) {
    %c0_i32 = arith.constant 0 : i32
    %c0_i32_0 = arith.constant 0 : i32
    %c0_i32_1 = arith.constant 0 : i32
    return %c0_i32, %c0_i32_0 : i32, i32
  }
  func.func @transform_4(%arg0: i32) -> (i32, i32) {
    %c0_i32 = arith.constant 0 : i32
    %c0_i32_0 = arith.constant 0 : i32
    %c0_i32_1 = arith.constant 0 : i32
    return %c0_i32, %c0_i32_0 : i32, i32
  }
  func.func @transform_5(%arg0: i32) -> (i32, i32) {
    %c0_i32 = arith.constant 0 : i32
    %c0_i32_0 = arith.constant 0 : i32
    %c0_i32_1 = arith.constant 0 : i32
    return %c0_i32, %c0_i32_0 : i32, i32
  }
  func.func @transform_6(%arg0: i32) -> (i32, i32) {
    %c0_i32 = arith.constant 0 : i32
    %c0_i32_0 = arith.constant 0 : i32
    %c0_i32_1 = arith.constant 0 : i32
    return %c0_i32, %c0_i32_0 : i32, i32
  }
  func.func @transform_7(%arg0: i32) -> (i32, i32) {
    %c0_i32 = arith.constant 0 : i32
    %c0_i32_0 = arith.constant 0 : i32
    %c0_i32_1 = arith.constant 0 : i32
    return %c0_i32, %c0_i32_0 : i32, i32
  }
  func.func @transform_8(%arg0: i32) -> (i32, i32) {
    %c0_i32 = arith.constant 0 : i32
    %c0_i32_0 = arith.constant 0 : i32
    %c0_i32_1 = arith.constant 0 : i32
    return %c0_i32, %c0_i32_0 : i32, i32
  }
  func.func @transform_9(%arg0: i32) -> (i32, i32) {
    %c0_i32 = arith.constant 0 : i32
    %c0_i32_0 = arith.constant 0 : i32
    %c0_i32_1 = arith.constant 0 : i32
    return %c0_i32, %c0_i32_0 : i32, i32
  }
  func.func @transform_10(%arg0: i32) -> (i32, i32) {
    %c0_i32 = arith.constant 0 : i32
    %c0_i32_0 = arith.constant 0 : i32
    %c0_i32_1 = arith.constant 0 : i32
    return %c0_i32, %c0_i32_0 : i32, i32
  }
  func.func @transform_11(%arg0: i32) -> (i32, i32) {
    %c0_i32 = arith.constant 0 : i32
    %c0_i32_0 = arith.constant 0 : i32
    %c0_i32_1 = arith.constant 0 : i32
    return %c0_i32, %c0_i32_0 : i32, i32
  }
  func.func @transform_12(%arg0: i32) -> (i32, i32) {
    %c0_i32 = arith.constant 0 : i32
    %c0_i32_0 = arith.constant 0 : i32
    %c0_i32_1 = arith.constant 0 : i32
    return %c0_i32, %c0_i32_0 : i32, i32
  }
  func.func @transform_13(%arg0: i32) -> (i32, i32) {
    %c0_i32 = arith.constant 0 : i32
    %c0_i32_0 = arith.constant 0 : i32
    %c0_i32_1 = arith.constant 0 : i32
    return %c0_i32, %c0_i32_0 : i32, i32
  }
  func.func @transform_14(%arg0: i32) -> (i32, i32) {
    %c0_i32 = arith.constant 0 : i32
    %c0_i32_0 = arith.constant 0 : i32
    %c0_i32_1 = arith.constant 0 : i32
    return %c0_i32, %c0_i32_0 : i32, i32
  }
  func.func @transform_15(%arg0: i32) -> (i32, i32) {
    %c0_i32 = arith.constant 0 : i32
    %c0_i32_0 = arith.constant 0 : i32
    %c0_i32_1 = arith.constant 0 : i32
    return %c0_i32, %c0_i32_0 : i32, i32
  }
  func.func @transform_16(%arg0: i32) -> (i32, i32) {
    %c0_i32 = arith.constant 0 : i32
    %c0_i32_0 = arith.constant 0 : i32
    %c0_i32_1 = arith.constant 0 : i32
    return %c0_i32, %c0_i32_0 : i32, i32
  }
}

</mosaic_0001>

<llo_original>
// kernel: tpu_custom_call.1
$region0: #{tpu_custom_call.1}
  #allocation0 [shape = 'u32[]', space=smem, size = 0x4, offset = 0x4, fixed_abs, tag = 'smem constant byte address 0x4 - core index']
  #allocation1 [shape = 'u32[72,128]{1,0:T(1,128)}', space=vmem, size = 0x9000, scoped, tag = 'internal scratch']
  %s0 = inlined_call_operand.vmem [shape: f32[16,8], index: 0, kind: input, shape index: {}]
  %s1 = inlined_call_operand.vmem [shape: f32[32,16], index: 1, kind: input, shape index: {}]
  %s2 = inlined_call_operand.vmem [shape: bf16[8,512], index: 2, kind: input, shape index: {}]
  %s3 = inlined_call_operand.hbm [shape: bf16[128,512], index: 3, kind: input, shape index: {}]
  %s4 = inlined_call_operand.hbm [shape: f32[1,512], index: 4, kind: input, shape index: {}]
  %s5 = inlined_call_operand.hbm [shape: bf16[128,1024], index: 5, kind: input, shape index: {}]
  %s6 = inlined_call_operand.vmem [shape: f32[1,1024], index: 6, kind: input, shape index: {}]
  %s7 = inlined_call_operand.hbm [shape: bf16[1024,128], index: 7, kind: input, shape index: {}]
  %s8 = inlined_call_operand.hbm [shape: f32[1,128], index: 8, kind: input, shape index: {}]
  %s9 = inlined_call_operand.vmem [shape: bf16[16,512], index: 9, kind: input, shape index: {}]
  %s10 = inlined_call_operand.hbm [shape: bf16[128,512], index: 10, kind: input, shape index: {}]
  %s11 = inlined_call_operand.hbm [shape: f32[1,512], index: 11, kind: input, shape index: {}]
  %s12 = inlined_call_operand.hbm [shape: bf16[128,1024], index: 12, kind: input, shape index: {}]
  %s13 = inlined_call_operand.vmem [shape: f32[1,1024], index: 13, kind: input, shape index: {}]
  %s14 = inlined_call_operand.hbm [shape: bf16[1024,128], index: 14, kind: input, shape index: {}]
  %s15 = inlined_call_operand.vmem [shape: f32[1,128], index: 15, kind: input, shape index: {}]
  %s16 = inlined_call_operand.hbm [shape: f32[16,128], index: 16, kind: output, shape index: {}]
  %s17 = sld [smem:[#allocation0]]
  $region110: #{tpu_custom_call.1} parent=0
    _
  %s19 = ssub.s32 1, %s17
  %s20 = scalar_select 0, %s19, %s17
  $region1: #{tpu_custom_call.1} parent=0
    #allocation2 [shape = 'u8[131072]{0}', space=vmem, size = 0x20000, scoped, tag = 'input window, operand 3, single buffered']
    #allocation3 [shape = 's32[1]{0}', space=sflag, size = 0x4, scoped, tag = 'scoped memory for tpu_custom_call.1']
    #allocation4 [shape = 's32[1]{0}', space=sflag, size = 0x4, scoped, tag = 'scoped memory for tpu_custom_call.1']
    #allocation5 [shape = 'u8[2048]{0}', space=vmem, size = 0x800, scoped, tag = 'input window, operand 4, single buffered']
    #allocation6 [shape = 's32[1]{0}', space=sflag, size = 0x4, scoped, tag = 'scoped memory for tpu_custom_call.1']
    #allocation7 [shape = 'u8[262144]{0}', space=vmem, size = 0x40000, scoped, tag = 'input window, operand 5, single buffered']
    #allocation8 [shape = 'u8[262144]{0}', space=vmem, size = 0x40000, scoped, tag = 'input window, operand 7, single buffered']
    #allocation9 [shape = 's32[1]{0}', space=sflag, size = 0x4, scoped, tag = 'scoped memory for tpu_custom_call.1']
    #allocation10 [shape = 'u8[512]{0}', space=vmem, size = 0x400, scoped, tag = 'input window, operand 8, single buffered']
    #allocation11 [shape = 'u8[131072]{0}', space=vmem, size = 0x20000, scoped, tag = 'input window, operand 10, single buffered']
    #allocation12 [shape = 's32[1]{0}', space=sflag, size = 0x4, scoped, tag = 'scoped memory for tpu_custom_call.1']
    #allocation13 [shape = 'u8[2048]{0}', space=vmem, size = 0x800, scoped, tag = 'input window, operand 11, single buffered']
    #allocation14 [shape = 'u8[262144]{0}', space=vmem, size = 0x40000, scoped, tag = 'input window, operand 12, single buffered']
    #allocation15 [shape = 's32[1]{0}', space=sflag, size = 0x4, scoped, tag = 'scoped memory for tpu_custom_call.1']
    #allocation16 [shape = 'u8[262144]{0}', space=vmem, size = 0x40000, scoped, tag = 'input window, operand 14, single buffered']
    #allocation17 [shape = 'u8[8192]{0}', space=vmem, size = 0x2000, scoped, tag = 'output window, operand 0, single buffered']
    %21 = vsyncpa [#allocation3], 0
    %22 = vsyncpa [#allocation6], 0
    %23 = vsyncpa [#allocation9], 0
    %24 = vsyncpa [#allocation12], 0
    %25 = vsyncpa [#allocation15], 0
    %26 = vsyncpa [#allocation4], 0
    // Predicated region
    $region2: #{tpu_custom_call.1} parent=1 // pred_check
      _
    $region3: #{tpu_custom_call.1} parent=1 // pred_check_branch
      %28 = sbr.rel (0) target = $region5
    $region4: #{tpu_custom_call.1} parent=1 // pred_region
      _
    $region5: #{tpu_custom_call.1} parent=1 // pred_fallthru
      _
    // Predicated region
    $region6: #{tpu_custom_call.1} parent=1 // pred_check
      _
    $region7: #{tpu_custom_call.1} parent=1 // pred_check_branch
      %30 = sbr.rel (0) target = $region9
    $region8: #{tpu_custom_call.1} parent=1 // pred_region
      _
    $region9: #{tpu_custom_call.1} parent=1 // pred_fallthru
      _
    // Predicated region
    $region10: #{tpu_custom_call.1} parent=1 // pred_check
      _
    $region11: #{tpu_custom_call.1} parent=1 // pred_check_branch
      %32 = sbr.rel (0) target = $region13
    $region12: #{tpu_custom_call.1} parent=1 // pred_region
      _
    $region13: #{tpu_custom_call.1} parent=1 // pred_fallthru
      _
    // Predicated region
    $region14: #{tpu_custom_call.1} parent=1 // pred_check
      _
    $region15: #{tpu_custom_call.1} parent=1 // pred_check_branch
      %34 = sbr.rel (0) target = $region17
    $region16: #{tpu_custom_call.1} parent=1 // pred_region
      %36 = vsyncadd [#allocation3], 0
      %s37 = sshll.u32 %s3, 4
      %s38 = int_to_ptr.hbm [resolvable:$true] %s37
      %s39 = sshll.u32 [#allocation2], 4
      %s40 = int_to_ptr.vmem [resolvable:$true] %s39
      %45 = dma.hbm_to_vmem [thread:$0]  %s38, 4096, %s40, [#allocation3], 256, 256, 16
    $region17: #{tpu_custom_call.1} parent=1 // pred_fallthru
      _
    // Predicated region
    $region18: #{tpu_custom_call.1} parent=1 // pred_check
      _
    $region19: #{tpu_custom_call.1} parent=1 // pred_check_branch
      %47 = sbr.rel (0) target = $region21
    $region20: #{tpu_custom_call.1} parent=1 // pred_region
      %49 = vsyncadd [#allocation6], 0
      %s51 = sshll.u32 %s4, 4
      %s52 = int_to_ptr.hbm [resolvable:$true] %s51
      %s53 = sshll.u32 [#allocation5], 4
      %s54 = int_to_ptr.vmem [resolvable:$true] %s53
      %56 = dma.hbm_to_vmem [thread:$0]  %s52, 64, %s54, [#allocation6]
    $region21: #{tpu_custom_call.1} parent=1 // pred_fallthru
      _
    // Predicated region
    $region22: #{tpu_custom_call.1} parent=1 // pred_check
      _
    $region23: #{tpu_custom_call.1} parent=1 // pred_check_branch
      %58 = sbr.rel (0) target = $region25
    $region24: #{tpu_custom_call.1} parent=1 // pred_region
      %60 = vsyncadd [#allocation6], 0
      %s61 = sshll.u32 %s5, 4
      %s62 = int_to_ptr.hbm [resolvable:$true] %s61
      %s63 = sshll.u32 [#allocation7], 4
      %s64 = int_to_ptr.vmem [resolvable:$true] %s63
      %69 = dma.hbm_to_vmem [thread:$0]  %s62, 8192, %s64, [#allocation6], 512, 512, 32
    $region25: #{tpu_custom_call.1} parent=1 // pred_fallthru
      _
    // Predicated region
    $region26: #{tpu_custom_call.1} parent=1 // pred_check
      _
    $region27: #{tpu_custom_call.1} parent=1 // pred_check_branch
      %71 = sbr.rel (0) target = $region29
    $region28: #{tpu_custom_call.1} parent=1 // pred_region
      _
    $region29: #{tpu_custom_call.1} parent=1 // pred_fallthru
      _
    // Predicated region
    $region30: #{tpu_custom_call.1} parent=1 // pred_check
      _
    $region31: #{tpu_custom_call.1} parent=1 // pred_check_branch
      %73 = sbr.rel (0) target = $region33
    $region32: #{tpu_custom_call.1} parent=1 // pred_region
      %75 = vsyncadd [#allocation9], 0
      %s76 = sshll.u32 %s7, 4
      %s77 = int_to_ptr.hbm [resolvable:$true] %s76
      %s78 = sshll.u32 [#allocation8], 4
      %s79 = int_to_ptr.vmem [resolvable:$true] %s78
      %84 = dma.hbm_to_vmem [thread:$0]  %s77, 8192, %s79, [#allocation9], 64, 64, 4
    $region33: #{tpu_custom_call.1} parent=1 // pred_fallthru
      _
    // Predicated region
    $region34: #{tpu_custom_call.1} parent=1 // pred_check
      _
    $region35: #{tpu_custom_call.1} parent=1 // pred_check_branch
      %86 = sbr.rel (0) target = $region37
    $region36: #{tpu_custom_call.1} parent=1 // pred_region
      %88 = vsyncadd [#allocation9], 0
      %s90 = sshll.u32 %s8, 4
      %s91 = int_to_ptr.hbm [resolvable:$true] %s90
      %s92 = sshll.u32 [#allocation10], 4
      %s93 = int_to_ptr.vmem [resolvable:$true] %s92
      %95 = dma.hbm_to_vmem [thread:$0]  %s91, 16, %s93, [#allocation9]
    $region37: #{tpu_custom_call.1} parent=1 // pred_fallthru
      _
    // Predicated region
    $region38: #{tpu_custom_call.1} parent=1 // pred_check
      _
    $region39: #{tpu_custom_call.1} parent=1 // pred_check_branch
      %97 = sbr.rel (0) target = $region41
    $region40: #{tpu_custom_call.1} parent=1 // pred_region
      _
    $region41: #{tpu_custom_call.1} parent=1 // pred_fallthru
      _
    // Predicated region
    $region42: #{tpu_custom_call.1} parent=1 // pred_check
      _
    $region43: #{tpu_custom_call.1} parent=1 // pred_check_branch
      %99 = sbr.rel (0) target = $region45
    $region44: #{tpu_custom_call.1} parent=1 // pred_region
      %101 = vsyncadd [#allocation12], 0
      %s102 = sshll.u32 %s10, 4
      %s103 = int_to_ptr.hbm [resolvable:$true] %s102
      %s104 = sshll.u32 [#allocation11], 4
      %s105 = int_to_ptr.vmem [resolvable:$true] %s104
      %110 = dma.hbm_to_vmem [thread:$0]  %s103, 4096, %s105, [#allocation12], 256, 256, 16
    $region45: #{tpu_custom_call.1} parent=1 // pred_fallthru
      _
    // Predicated region
    $region46: #{tpu_custom_call.1} parent=1 // pred_check
      _
    $region47: #{tpu_custom_call.1} parent=1 // pred_check_branch
      %112 = sbr.rel (0) target = $region49
    $region48: #{tpu_custom_call.1} parent=1 // pred_region
      %114 = vsyncadd [#allocation12], 0
      %s116 = sshll.u32 %s11, 4
      %s117 = int_to_ptr.hbm [resolvable:$true] %s116
      %s118 = sshll.u32 [#allocation13], 4
      %s119 = int_to_ptr.vmem [resolvable:$true] %s118
      %121 = dma.hbm_to_vmem [thread:$0]  %s117, 64, %s119, [#allocation12]
    $region49: #{tpu_custom_call.1} parent=1 // pred_fallthru
      _
    // Predicated region
    $region50: #{tpu_custom_call.1} parent=1 // pred_check
      _
    $region51: #{tpu_custom_call.1} parent=1 // pred_check_branch
      %123 = sbr.rel (0) target = $region53
    $region52: #{tpu_custom_call.1} parent=1 // pred_region
      %125 = vsyncadd [#allocation15], 0
      %s126 = sshll.u32 %s12, 4
      %s127 = int_to_ptr.hbm [resolvable:$true] %s126
      %s128 = sshll.u32 [#allocation14], 4
      %s129 = int_to_ptr.vmem [resolvable:$true] %s128
      %134 = dma.hbm_to_vmem [thread:$0]  %s127, 8192, %s129, [#allocation15], 512, 512, 32
    $region53: #{tpu_custom_call.1} parent=1 // pred_fallthru
      _
    // Predicated region
    $region54: #{tpu_custom_call.1} parent=1 // pred_check
      _
    $region55: #{tpu_custom_call.1} parent=1 // pred_check_branch
      %136 = sbr.rel (0) target = $region57
    $region56: #{tpu_custom_call.1} parent=1 // pred_region
      _
    $region57: #{tpu_custom_call.1} parent=1 // pred_fallthru
      _
    // Predicated region
    $region58: #{tpu_custom_call.1} parent=1 // pred_check
      _
    $region59: #{tpu_custom_call.1} parent=1 // pred_check_branch
      %138 = sbr.rel (0) target = $region61
    $region60: #{tpu_custom_call.1} parent=1 // pred_region
      %140 = vsyncadd [#allocation15], 0
      %s141 = sshll.u32 %s14, 4
      %s142 = int_to_ptr.hbm [resolvable:$true] %s141
      %s143 = sshll.u32 [#allocation16], 4
      %s144 = int_to_ptr.vmem [resolvable:$true] %s143
      %149 = dma.hbm_to_vmem [thread:$0]  %s142, 8192, %s144, [#allocation15], 64, 64, 4
    $region61: #{tpu_custom_call.1} parent=1 // pred_fallthru
      _
    // Predicated region
    $region62: #{tpu_custom_call.1} parent=1 // pred_check
      _
    $region63: #{tpu_custom_call.1} parent=1 // pred_check_branch
      %151 = sbr.rel (0) target = $region65
    $region64: #{tpu_custom_call.1} parent=1 // pred_region
      _
    $region65: #{tpu_custom_call.1} parent=1 // pred_fallthru
      _
    // Predicated region
    $region66: #{tpu_custom_call.1} parent=1 // pred_check
      _
    $region67: #{tpu_custom_call.1} parent=1 // pred_check_branch
      %153 = sbr.rel (0) target = $region69
    $region68: #{tpu_custom_call.1} parent=1 // pred_region
      %155 = dma.done [#allocation3], 4096
    $region69: #{tpu_custom_call.1} parent=1 // pred_fallthru
      _
    // Predicated region
    $region70: #{tpu_custom_call.1} parent=1 // pred_check
      _
    $region71: #{tpu_custom_call.1} parent=1 // pred_check_branch
      %157 = sbr.rel (0) target = $region73
    $region72: #{tpu_custom_call.1} parent=1 // pred_region
      %159 = dma.done [#allocation6], 64
    $region73: #{tpu_custom_call.1} parent=1 // pred_fallthru
      _
    // Predicated region
    $region74: #{tpu_custom_call.1} parent=1 // pred_check
      _
    $region75: #{tpu_custom_call.1} parent=1 // pred_check_branch
      %161 = sbr.rel (0) target = $region77
    $region76: #{tpu_custom_call.1} parent=1 // pred_region
      %163 = dma.done [#allocation6], 8192
    $region77: #{tpu_custom_call.1} parent=1 // pred_fallthru
      _
    // Predicated region
    $region78: #{tpu_custom_call.1} parent=1 // pred_check
      _
    $region79: #{tpu_custom_call.1} parent=1 // pred_check_branch
      %165 = sbr.rel (0) target = $region81
    $region80: #{tpu_custom_call.1} parent=1 // pred_region
      %167 = dma.done [#allocation9], 8192
    $region81: #{tpu_custom_call.1} parent=1 // pred_fallthru
      _
    // Predicated region
    $region82: #{tpu_custom_call.1} parent=1 // pred_check
      _
    $region83: #{tpu_custom_call.1} parent=1 // pred_check_branch
      %169 = sbr.rel (0) target = $region85
    $region84: #{tpu_custom_call.1} parent=1 // pred_region
      %171 = dma.done [#allocation9], 16
    $region85: #{tpu_custom_call.1} parent=1 // pred_fallthru
      _
    // Predicated region
    $region86: #{tpu_custom_call.1} parent=1 // pred_check
      _
    $region87: #{tpu_custom_call.1} parent=1 // pred_check_branch
      %173 = sbr.rel (0) target = $region89
    $region88: #{tpu_custom_call.1} parent=1 // pred_region
      %175 = dma.done [#allocation12], 4096
    $region89: #{tpu_custom_call.1} parent=1 // pred_fallthru
      _
    // Predicated region
    $region90: #{tpu_custom_call.1} parent=1 // pred_check
      _
    $region91: #{tpu_custom_call.1} parent=1 // pred_check_branch
      %177 = sbr.rel (0) target = $region93
    $region92: #{tpu_custom_call.1} parent=1 // pred_region
      %179 = dma.done [#allocation12], 64
    $region93: #{tpu_custom_call.1} parent=1 // pred_fallthru
      _
    // Predicated region
    $region94: #{tpu_custom_call.1} parent=1 // pred_check
      _
    $region95: #{tpu_custom_call.1} parent=1 // pred_check_branch
      %181 = sbr.rel (0) target = $region97
    $region96: #{tpu_custom_call.1} parent=1 // pred_region
      %183 = dma.done [#allocation15], 8192
    $region97: #{tpu_custom_call.1} parent=1 // pred_fallthru
      _
    // Predicated region
    $region98: #{tpu_custom_call.1} parent=1 // pred_check
      _
    $region99: #{tpu_custom_call.1} parent=1 // pred_check_branch
      %185 = sbr.rel (0) target = $region101
    $region100: #{tpu_custom_call.1} parent=1 // pred_region
      %187 = dma.done [#allocation15], 8192
    $region101: #{tpu_custom_call.1} parent=1 // pred_fallthru
      _
    %v189 = vld [vmem:[%s0] sm:$0xff]
    %v190 = vld [vmem:[%s0 + $0x8] sm:$0xff]
    %v191 = vld [vmem:[%s2] sm:$0xff]
    %v192 = vld [vmem:[%s2 + $0x8] sm:$0xff]
    %v193 = vld [vmem:[#allocation2] sm:$0xff]
    %v194 = vld [vmem:[#allocation2 + $0x8] sm:$0xff]
    %v195 = vld [vmem:[#allocation2 + $0x10] sm:$0xff]
    %v196 = vld [vmem:[#allocation2 + $0x18] sm:$0xff]
    %v197 = vld [vmem:[#allocation2 + $0x20] sm:$0xff]
    %v198 = vld [vmem:[#allocation2 + $0x28] sm:$0xff]
    %v199 = vld [vmem:[#allocation2 + $0x30] sm:$0xff]
    %v200 = vld [vmem:[#allocation2 + $0x38] sm:$0xff]
    %v201 = vld [vmem:[#allocation2 + $0x40] sm:$0xff]
    %v202 = vld [vmem:[#allocation2 + $0x48] sm:$0xff]
    %v203 = vld [vmem:[#allocation2 + $0x50] sm:$0xff]
    %v204 = vld [vmem:[#allocation2 + $0x58] sm:$0xff]
    %v205 = vld [vmem:[#allocation2 + $0x60] sm:$0xff]
    %v206 = vld [vmem:[#allocation2 + $0x68] sm:$0xff]
    %v207 = vld [vmem:[#allocation2 + $0x70] sm:$0xff]
    %v208 = vld [vmem:[#allocation2 + $0x78] sm:$0xff]
    %v209 = vld [vmem:[#allocation2 + $0x80] sm:$0xff]
    %v210 = vld [vmem:[#allocation2 + $0x88] sm:$0xff]
    %v211 = vld [vmem:[#allocation2 + $0x90] sm:$0xff]
    %v212 = vld [vmem:[#allocation2 + $0x98] sm:$0xff]
    %v213 = vld [vmem:[#allocation2 + $0xa0] sm:$0xff]
    %v214 = vld [vmem:[#allocation2 + $0xa8] sm:$0xff]
    %v215 = vld [vmem:[#allocation2 + $0xb0] sm:$0xff]
    %v216 = vld [vmem:[#allocation2 + $0xb8] sm:$0xff]
    %v217 = vld [vmem:[#allocation2 + $0xc0] sm:$0xff]
    %v218 = vld [vmem:[#allocation2 + $0xc8] sm:$0xff]
    %v219 = vld [vmem:[#allocation2 + $0xd0] sm:$0xff]
    %v220 = vld [vmem:[#allocation2 + $0xd8] sm:$0xff]
    %v221 = vld [vmem:[#allocation2 + $0xe0] sm:$0xff]
    %v222 = vld [vmem:[#allocation2 + $0xe8] sm:$0xff]
    %v223 = vld [vmem:[#allocation2 + $0xf0] sm:$0xff]
    %v224 = vld [vmem:[#allocation2 + $0xf8] sm:$0xff]
    %v225 = vld [vmem:[#allocation5] sm:$0xf]
    %v226 = vld [vmem:[#allocation7] sm:$0xff]
    %v227 = vld [vmem:[#allocation7 + $0x8] sm:$0xff]
    %v228 = vld [vmem:[#allocation7 + $0x10] sm:$0xff]
    %v229 = vld [vmem:[#allocation7 + $0x18] sm:$0xff]
    %v230 = vld [vmem:[#allocation7 + $0x20] sm:$0xff]
    %v231 = vld [vmem:[#allocation7 + $0x28] sm:$0xff]
    %v232 = vld [vmem:[#allocation7 + $0x30] sm:$0xff]
    %v233 = vld [vmem:[#allocation7 + $0x38] sm:$0xff]
    %v234 = vld [vmem:[#allocation7 + $0x40] sm:$0xff]
    %v235 = vld [vmem:[#allocation7 + $0x48] sm:$0xff]
    %v236 = vld [vmem:[#allocation7 + $0x50] sm:$0xff]
    %v237 = vld [vmem:[#allocation7 + $0x58] sm:$0xff]
    %v238 = vld [vmem:[#allocation7 + $0x60] sm:$0xff]
    %v239 = vld [vmem:[#allocation7 + $0x68] sm:$0xff]
    %v240 = vld [vmem:[#allocation7 + $0x70] sm:$0xff]
    %v241 = vld [vmem:[#allocation7 + $0x78] sm:$0xff]
    %v242 = vld [vmem:[#allocation7 + $0x80] sm:$0xff]
    %v243 = vld [vmem:[#allocation7 + $0x88] sm:$0xff]
    %v244 = vld [vmem:[#allocation7 + $0x90] sm:$0xff]
    %v245 = vld [vmem:[#allocation7 + $0x98] sm:$0xff]
    %v246 = vld [vmem:[#allocation7 + $0xa0] sm:$0xff]
    %v247 = vld [vmem:[#allocation7 + $0xa8] sm:$0xff]
    %v248 = vld [vmem:[#allocation7 + $0xb0] sm:$0xff]
    %v249 = vld [vmem:[#allocation7 + $0xb8] sm:$0xff]
    %v250 = vld [vmem:[#allocation7 + $0xc0] sm:$0xff]
    %v251 = vld [vmem:[#allocation7 + $0xc8] sm:$0xff]
    %v252 = vld [vmem:[#allocation7 + $0xd0] sm:$0xff]
    %v253 = vld [vmem:[#allocation7 + $0xd8] sm:$0xff]
    %v254 = vld [vmem:[#allocation7 + $0xe0] sm:$0xff]
    %v255 = vld [vmem:[#allocation7 + $0xe8] sm:$0xff]
    %v256 = vld [vmem:[#allocation7 + $0xf0] sm:$0xff]
    %v257 = vld [vmem:[#allocation7 + $0xf8] sm:$0xff]
    %v258 = vld [vmem:[#allocation7 + $0x100] sm:$0xff]
    %v259 = vld [vmem:[#allocation7 + $0x108] sm:$0xff]
    %v260 = vld [vmem:[#allocation7 + $0x110] sm:$0xff]
    %v261 = vld [vmem:[#allocation7 + $0x118] sm:$0xff]
    %v262 = vld [vmem:[#allocation7 + $0x120] sm:$0xff]
    %v263 = vld [vmem:[#allocation7 + $0x128] sm:$0xff]
    %v264 = vld [vmem:[#allocation7 + $0x130] sm:$0xff]
    %v265 = vld [vmem:[#allocation7 + $0x138] sm:$0xff]
    %v266 = vld [vmem:[#allocation7 + $0x140] sm:$0xff]
    %v267 = vld [vmem:[#allocation7 + $0x148] sm:$0xff]
    %v268 = vld [vmem:[#allocation7 + $0x150] sm:$0xff]
    %v269 = vld [vmem:[#allocation7 + $0x158] sm:$0xff]
    %v270 = vld [vmem:[#allocation7 + $0x160] sm:$0xff]
    %v271 = vld [vmem:[#allocation7 + $0x168] sm:$0xff]
    %v272 = vld [vmem:[#allocation7 + $0x170] sm:$0xff]
    %v273 = vld [vmem:[#allocation7 + $0x178] sm:$0xff]
    %v274 = vld [vmem:[#allocation7 + $0x180] sm:$0xff]
    %v275 = vld [vmem:[#allocation7 + $0x188] sm:$0xff]
    %v276 = vld [vmem:[#allocation7 + $0x190] sm:$0xff]
    %v277 = vld [vmem:[#allocation7 + $0x198] sm:$0xff]
    %v278 = vld [vmem:[#allocation7 + $0x1a0] sm:$0xff]
    %v279 = vld [vmem:[#allocation7 + $0x1a8] sm:$0xff]
    %v280 = vld [vmem:[#allocation7 + $0x1b0] sm:$0xff]
    %v281 = vld [vmem:[#allocation7 + $0x1b8] sm:$0xff]
    %v282 = vld [vmem:[#allocation7 + $0x1c0] sm:$0xff]
    %v283 = vld [vmem:[#allocation7 + $0x1c8] sm:$0xff]
    %v284 = vld [vmem:[#allocation7 + $0x1d0] sm:$0xff]
    %v285 = vld [vmem:[#allocation7 + $0x1d8] sm:$0xff]
    %v286 = vld [vmem:[#allocation7 + $0x1e0] sm:$0xff]
    %v287 = vld [vmem:[#allocation7 + $0x1e8] sm:$0xff]
    %v288 = vld [vmem:[#allocation7 + $0x1f0] sm:$0xff]
    %v289 = vld [vmem:[#allocation7 + $0x1f8] sm:$0xff]
    %v290 = vld [vmem:[%s6] sm:$0xff]
    %v291 = vld [vmem:[#allocation8] sm:$0xf]
    %v292 = vld [vmem:[#allocation8 + $0x4] sm:$0xf]
    %v293 = vld [vmem:[#allocation8 + $0x8] sm:$0xf]
    %v294 = vld [vmem:[#allocation8 + $0xc] sm:$0xf]
    %v295 = vld [vmem:[#allocation8 + $0x10] sm:$0xf]
    %v296 = vld [vmem:[#allocation8 + $0x14] sm:$0xf]
    %v297 = vld [vmem:[#allocation8 + $0x18] sm:$0xf]
    %v298 = vld [vmem:[#allocation8 + $0x1c] sm:$0xf]
    %v299 = vld [vmem:[#allocation8 + $0x20] sm:$0xf]
    %v300 = vld [vmem:[#allocation8 + $0x24] sm:$0xf]
    %v301 = vld [vmem:[#allocation8 + $0x28] sm:$0xf]
    %v302 = vld [vmem:[#allocation8 + $0x2c] sm:$0xf]
    %v303 = vld [vmem:[#allocation8 + $0x30] sm:$0xf]
    %v304 = vld [vmem:[#allocation8 + $0x34] sm:$0xf]
    %v305 = vld [vmem:[#allocation8 + $0x38] sm:$0xf]
    %v306 = vld [vmem:[#allocation8 + $0x3c] sm:$0xf]
    %v307 = vld [vmem:[#allocation8 + $0x40] sm:$0xf]
    %v308 = vld [vmem:[#allocation8 + $0x44] sm:$0xf]
    %v309 = vld [vmem:[#allocation8 + $0x48] sm:$0xf]
    %v310 = vld [vmem:[#allocation8 + $0x4c] sm:$0xf]
    %v311 = vld [vmem:[#allocation8 + $0x50] sm:$0xf]
    %v312 = vld [vmem:[#allocation8 + $0x54] sm:$0xf]
    %v313 = vld [vmem:[#allocation8 + $0x58] sm:$0xf]
    %v314 = vld [vmem:[#allocation8 + $0x5c] sm:$0xf]
    %v315 = vld [vmem:[#allocation8 + $0x60] sm:$0xf]
    %v316 = vld [vmem:[#allocation8 + $0x64] sm:$0xf]
    %v317 = vld [vmem:[#allocation8 + $0x68] sm:$0xf]
    %v318 = vld [vmem:[#allocation8 + $0x6c] sm:$0xf]
    %v319 = vld [vmem:[#allocation8 + $0x70] sm:$0xf]
    %v320 = vld [vmem:[#allocation8 + $0x74] sm:$0xf]
    %v321 = vld [vmem:[#allocation8 + $0x78] sm:$0xf]
    %v322 = vld [vmem:[#allocation8 + $0x7c] sm:$0xf]
    %v323 = vld [vmem:[#allocation8 + $0x80] sm:$0xf]
    %v324 = vld [vmem:[#allocation8 + $0x84] sm:$0xf]
    %v325 = vld [vmem:[#allocation8 + $0x88] sm:$0xf]
    %v326 = vld [vmem:[#allocation8 + $0x8c] sm:$0xf]
    %v327 = vld [vmem:[#allocation8 + $0x90] sm:$0xf]
    %v328 = vld [vmem:[#allocation8 + $0x94] sm:$0xf]
    %v329 = vld [vmem:[#allocation8 + $0x98] sm:$0xf]
    %v330 = vld [vmem:[#allocation8 + $0x9c] sm:$0xf]
    %v331 = vld [vmem:[#allocation8 + $0xa0] sm:$0xf]
    %v332 = vld [vmem:[#allocation8 + $0xa4] sm:$0xf]
    %v333 = vld [vmem:[#allocation8 + $0xa8] sm:$0xf]
    %v334 = vld [vmem:[#allocation8 + $0xac] sm:$0xf]
    %v335 = vld [vmem:[#allocation8 + $0xb0] sm:$0xf]
    %v336 = vld [vmem:[#allocation8 + $0xb4] sm:$0xf]
    %v337 = vld [vmem:[#allocation8 + $0xb8] sm:$0xf]
    %v338 = vld [vmem:[#allocation8 + $0xbc] sm:$0xf]
    %v339 = vld [vmem:[#allocation8 + $0xc0] sm:$0xf]
    %v340 = vld [vmem:[#allocation8 + $0xc4] sm:$0xf]
    %v341 = vld [vmem:[#allocation8 + $0xc8] sm:$0xf]
    %v342 = vld [vmem:[#allocation8 + $0xcc] sm:$0xf]
    %v343 = vld [vmem:[#allocation8 + $0xd0] sm:$0xf]
    %v344 = vld [vmem:[#allocation8 + $0xd4] sm:$0xf]
    %v345 = vld [vmem:[#allocation8 + $0xd8] sm:$0xf]
    %v346 = vld [vmem:[#allocation8 + $0xdc] sm:$0xf]
    %v347 = vld [vmem:[#allocation8 + $0xe0] sm:$0xf]
    %v348 = vld [vmem:[#allocation8 + $0xe4] sm:$0xf]
    %v349 = vld [vmem:[#allocation8 + $0xe8] sm:$0xf]
    %v350 = vld [vmem:[#allocation8 + $0xec] sm:$0xf]
    %v351 = vld [vmem:[#allocation8 + $0xf0] sm:$0xf]
    %v352 = vld [vmem:[#allocation8 + $0xf4] sm:$0xf]
    %v353 = vld [vmem:[#allocation8 + $0xf8] sm:$0xf]
    %v354 = vld [vmem:[#allocation8 + $0xfc] sm:$0xf]
    %v355 = vld [vmem:[#allocation8 + $0x100] sm:$0xf]
    %v356 = vld [vmem:[#allocation8 + $0x104] sm:$0xf]
    %v357 = vld [vmem:[#allocation8 + $0x108] sm:$0xf]
    %v358 = vld [vmem:[#allocation8 + $0x10c] sm:$0xf]
    %v359 = vld [vmem:[#allocation8 + $0x110] sm:$0xf]
    %v360 = vld [vmem:[#allocation8 + $0x114] sm:$0xf]
    %v361 = vld [vmem:[#allocation8 + $0x118] sm:$0xf]
    %v362 = vld [vmem:[#allocation8 + $0x11c] sm:$0xf]
    %v363 = vld [vmem:[#allocation8 + $0x120] sm:$0xf]
    %v364 = vld [vmem:[#allocation8 + $0x124] sm:$0xf]
    %v365 = vld [vmem:[#allocation8 + $0x128] sm:$0xf]
    %v366 = vld [vmem:[#allocation8 + $0x12c] sm:$0xf]
    %v367 = vld [vmem:[#allocation8 + $0x130] sm:$0xf]
    %v368 = vld [vmem:[#allocation8 + $0x134] sm:$0xf]
    %v369 = vld [vmem:[#allocation8 + $0x138] sm:$0xf]
    %v370 = vld [vmem:[#allocation8 + $0x13c] sm:$0xf]
    %v371 = vld [vmem:[#allocation8 + $0x140] sm:$0xf]
    %v372 = vld [vmem:[#allocation8 + $0x144] sm:$0xf]
    %v373 = vld [vmem:[#allocation8 + $0x148] sm:$0xf]
    %v374 = vld [vmem:[#allocation8 + $0x14c] sm:$0xf]
    %v375 = vld [vmem:[#allocation8 + $0x150] sm:$0xf]
    %v376 = vld [vmem:[#allocation8 + $0x154] sm:$0xf]
    %v377 = vld [vmem:[#allocation8 + $0x158] sm:$0xf]
    %v378 = vld [vmem:[#allocation8 + $0x15c] sm:$0xf]
    %v379 = vld [vmem:[#allocation8 + $0x160] sm:$0xf]
    %v380 = vld [vmem:[#allocation8 + $0x164] sm:$0xf]
    %v381 = vld [vmem:[#allocation8 + $0x168] sm:$0xf]
    %v382 = vld [vmem:[#allocation8 + $0x16c] sm:$0xf]
    %v383 = vld [vmem:[#allocation8 + $0x170] sm:$0xf]
    %v384 = vld [vmem:[#allocation8 + $0x174] sm:$0xf]
    %v385 = vld [vmem:[#allocation8 + $0x178] sm:$0xf]
    %v386 = vld [vmem:[#allocation8 + $0x17c] sm:$0xf]
    %v387 = vld [vmem:[#allocation8 + $0x180] sm:$0xf]
    %v388 = vld [vmem:[#allocation8 + $0x184] sm:$0xf]
    %v389 = vld [vmem:[#allocation8 + $0x188] sm:$0xf]
    %v390 = vld [vmem:[#allocation8 + $0x18c] sm:$0xf]
    %v391 = vld [vmem:[#allocation8 + $0x190] sm:$0xf]
    %v392 = vld [vmem:[#allocation8 + $0x194] sm:$0xf]
    %v393 = vld [vmem:[#allocation8 + $0x198] sm:$0xf]
    %v394 = vld [vmem:[#allocation8 + $0x19c] sm:$0xf]
    %v395 = vld [vmem:[#allocation8 + $0x1a0] sm:$0xf]
    %v396 = vld [vmem:[#allocation8 + $0x1a4] sm:$0xf]
    %v397 = vld [vmem:[#allocation8 + $0x1a8] sm:$0xf]
    %v398 = vld [vmem:[#allocation8 + $0x1ac] sm:$0xf]
    %v399 = vld [vmem:[#allocation8 + $0x1b0] sm:$0xf]
    %v400 = vld [vmem:[#allocation8 + $0x1b4] sm:$0xf]
    %v401 = vld [vmem:[#allocation8 + $0x1b8] sm:$0xf]
    %v402 = vld [vmem:[#allocation8 + $0x1bc] sm:$0xf]
    %v403 = vld [vmem:[#allocation8 + $0x1c0] sm:$0xf]
    %v404 = vld [vmem:[#allocation8 + $0x1c4] sm:$0xf]
    %v405 = vld [vmem:[#allocation8 + $0x1c8] sm:$0xf]
    %v406 = vld [vmem:[#allocation8 + $0x1cc] sm:$0xf]
    %v407 = vld [vmem:[#allocation8 + $0x1d0] sm:$0xf]
    %v408 = vld [vmem:[#allocation8 + $0x1d4] sm:$0xf]
    %v409 = vld [vmem:[#allocation8 + $0x1d8] sm:$0xf]
    %v410 = vld [vmem:[#allocation8 + $0x1dc] sm:$0xf]
    %v411 = vld [vmem:[#allocation8 + $0x1e0] sm:$0xf]
    %v412 = vld [vmem:[#allocation8 + $0x1e4] sm:$0xf]
    %v413 = vld [vmem:[#allocation8 + $0x1e8] sm:$0xf]
    %v414 = vld [vmem:[#allocation8 + $0x1ec] sm:$0xf]
    %v415 = vld [vmem:[#allocation8 + $0x1f0] sm:$0xf]
    %v416 = vld [vmem:[#allocation8 + $0x1f4] sm:$0xf]
    %v417 = vld [vmem:[#allocation8 + $0x1f8] sm:$0xf]
    %v418 = vld [vmem:[#allocation8 + $0x1fc] sm:$0xf]
    %v419 = vld [vmem:[#allocation10] sm:$0x1]
    %v420 = vpack.c.bf16 %v190, %v189
    %v422 = vperm.slane %v225, 0
    %v423 = vperm.slane %v225, 1
    %v424 = vperm.slane %v225, 2
    %v425 = vperm.slane %v225, 3
    %v432 = vunpack.c.l.b16 %v191
    %v433 = vunpack.c.h.b16 %v191
    %v434 = vunpack.c.l.b16 %v192
    %v435 = vunpack.c.h.b16 %v192
    %v436 = vpack.c.b16 %v432, %v432
    %v437 = vpack.c.b16 %v433, %v433
    %v438 = vpack.c.b16 %v434, %v434
    %v439 = vpack.c.b16 %v435, %v435
    %vm440 = vcmask 64512
    %v442 = vsel %vm440, %v420, 0
    %vm444 = vcmask 1043456
    %v446 = vsel %vm444, %v436, 0
    %v449 = vsel %vm444, %v437, 0
    %v452 = vsel %vm444, %v438, 0
    %v455 = vsel %vm444, %v439, 0
    %457 = vmatpush.bf16.msra.mxu0 0
    %458 = vmatpush.bf16.msra.mxu0 0
    %459 = vmatpush.bf16.msra.mxu0 0
    %460 = vmatpush.bf16.msra.mxu0 0
    %461 = vmatpush.bf16.msra.mxu0 0
    %462 = vmatpush.bf16.msra.mxu0 0
    %463 = vmatpush.bf16.msra.mxu0 0
    %464 = vmatpush.bf16.msra.mxu0 %v446
    %465 = vmatmul.bf16.gmra.mxu0 %v442
    %v466 = vpop.f32.mrf.mxu0
    %v467 = vadd.f32 %v422, %v466
    %v468 = vpop.f32.mrf.mxu0
    %v469 = vadd.f32 %v422, %v468
    %470 = vdwg.mxu0
    %471 = vmatpush.bf16.msra.mxu0 0
    %472 = vmatpush.bf16.msra.mxu0 0
    %473 = vmatpush.bf16.msra.mxu0 0
    %474 = vmatpush.bf16.msra.mxu0 0
    %475 = vmatpush.bf16.msra.mxu0 0
    %476 = vmatpush.bf16.msra.mxu0 0
    %477 = vmatpush.bf16.msra.mxu0 0
    %478 = vmatpush.bf16.msra.mxu0 %v449
    %479 = vmatmul.bf16.gmra.mxu0 %v442
    %v480 = vpop.f32.mrf.mxu0
    %v481 = vadd.f32 %v423, %v480
    %v482 = vpop.f32.mrf.mxu0
    %v483 = vadd.f32 %v423, %v482
    %484 = vdwg.mxu0
    %485 = vmatpush.bf16.msra.mxu0 0
    %486 = vmatpush.bf16.msra.mxu0 0
    %487 = vmatpush.bf16.msra.mxu0 0
    %488 = vmatpush.bf16.msra.mxu0 0
    %489 = vmatpush.bf16.msra.mxu0 0
    %490 = vmatpush.bf16.msra.mxu0 0
    %491 = vmatpush.bf16.msra.mxu0 0
    %492 = vmatpush.bf16.msra.mxu0 %v452
    %493 = vmatmul.bf16.gmra.mxu0 %v442
    %v494 = vpop.f32.mrf.mxu0
    %v495 = vadd.f32 %v424, %v494
    %v496 = vpop.f32.mrf.mxu0
    %v497 = vadd.f32 %v424, %v496
    %498 = vdwg.mxu0
    %499 = vmatpush.bf16.msra.mxu0 0
    %500 = vmatpush.bf16.msra.mxu0 0
    %501 = vmatpush.bf16.msra.mxu0 0
    %502 = vmatpush.bf16.msra.mxu0 0
    %503 = vmatpush.bf16.msra.mxu0 0
    %504 = vmatpush.bf16.msra.mxu0 0
    %505 = vmatpush.bf16.msra.mxu0 0
    %506 = vmatpush.bf16.msra.mxu0 %v455
    %507 = vmatmul.bf16.gmra.mxu0 %v442
    %v508 = vpop.f32.mrf.mxu0
    %v509 = vadd.f32 %v425, %v508
    %v510 = vpop.f32.mrf.mxu0
    %v511 = vadd.f32 %v425, %v510
    %512 = vdwg.mxu0
    %v545 = vunpack.c.l.b16 %v193
    %v546 = vunpack.c.h.b16 %v193
    %v547 = vunpack.c.l.b16 %v194
    %v548 = vunpack.c.h.b16 %v194
    %v549 = vunpack.c.l.b16 %v195
    %v550 = vunpack.c.h.b16 %v195
    %v551 = vunpack.c.l.b16 %v196
    %v552 = vunpack.c.h.b16 %v196
    %v553 = vunpack.c.l.b16 %v197
    %v554 = vunpack.c.h.b16 %v197
    %v555 = vunpack.c.l.b16 %v198
    %v556 = vunpack.c.h.b16 %v198
    %v557 = vunpack.c.l.b16 %v199
    %v558 = vunpack.c.h.b16 %v199
    %v559 = vunpack.c.l.b16 %v200
    %v560 = vunpack.c.h.b16 %v200
    %v561 = vunpack.c.l.b16 %v201
    %v562 = vunpack.c.h.b16 %v201
    %v563 = vunpack.c.l.b16 %v202
    %v564 = vunpack.c.h.b16 %v202
    %v565 = vunpack.c.l.b16 %v203
    %v566 = vunpack.c.h.b16 %v203
    %v567 = vunpack.c.l.b16 %v204
    %v568 = vunpack.c.h.b16 %v204
    %v569 = vunpack.c.l.b16 %v205
    %v570 = vunpack.c.h.b16 %v205
    %v571 = vunpack.c.l.b16 %v206
    %v572 = vunpack.c.h.b16 %v206
    %v573 = vunpack.c.l.b16 %v207
    %v574 = vunpack.c.h.b16 %v207
    %v575 = vunpack.c.l.b16 %v208
    %v576 = vunpack.c.h.b16 %v208
    %v577 = vunpack.c.l.b16 %v209
    %v578 = vunpack.c.h.b16 %v209
    %v579 = vunpack.c.l.b16 %v210
    %v580 = vunpack.c.h.b16 %v210
    %v581 = vunpack.c.l.b16 %v211
    %v582 = vunpack.c.h.b16 %v211
    %v583 = vunpack.c.l.b16 %v212
    %v584 = vunpack.c.h.b16 %v212
    %v585 = vunpack.c.l.b16 %v213
    %v586 = vunpack.c.h.b16 %v213
    %v587 = vunpack.c.l.b16 %v214
    %v588 = vunpack.c.h.b16 %v214
    %v589 = vunpack.c.l.b16 %v215
    %v590 = vunpack.c.h.b16 %v215
    %v591 = vunpack.c.l.b16 %v216
    %v592 = vunpack.c.h.b16 %v216
    %v593 = vunpack.c.l.b16 %v217
    %v594 = vunpack.c.h.b16 %v217
    %v595 = vunpack.c.l.b16 %v218
    %v596 = vunpack.c.h.b16 %v218
    %v597 = vunpack.c.l.b16 %v219
    %v598 = vunpack.c.h.b16 %v219
    %v599 = vunpack.c.l.b16 %v220
    %v600 = vunpack.c.h.b16 %v220
    %v601 = vunpack.c.l.b16 %v221
    %v602 = vunpack.c.h.b16 %v221
    %v603 = vunpack.c.l.b16 %v222
    %v604 = vunpack.c.h.b16 %v222
    %v605 = vunpack.c.l.b16 %v223
    %v606 = vunpack.c.h.b16 %v223
    %v607 = vunpack.c.l.b16 %v224
    %v608 = vunpack.c.h.b16 %v224
    %v609 = vpack.c.b16 %v549, %v545
    %v610 = vpack.c.b16 %v550, %v546
    %v611 = vpack.c.b16 %v551, %v547
    %v612 = vpack.c.b16 %v552, %v548
    %v613 = vpack.c.b16 %v557, %v553
    %v614 = vpack.c.b16 %v558, %v554
    %v615 = vpack.c.b16 %v559, %v555
    %v616 = vpack.c.b16 %v560, %v556
    %v617 = vpack.c.b16 %v565, %v561
    %v618 = vpack.c.b16 %v566, %v562
    %v619 = vpack.c.b16 %v567, %v563
    %v620 = vpack.c.b16 %v568, %v564
    %v621 = vpack.c.b16 %v573, %v569
    %v622 = vpack.c.b16 %v574, %v570
    %v623 = vpack.c.b16 %v575, %v571
    %v624 = vpack.c.b16 %v576, %v572
    %v625 = vpack.c.b16 %v581, %v577
    %v626 = vpack.c.b16 %v582, %v578
    %v627 = vpack.c.b16 %v583, %v579
    %v628 = vpack.c.b16 %v584, %v580
    %v629 = vpack.c.b16 %v589, %v585
    %v630 = vpack.c.b16 %v590, %v586
    %v631 = vpack.c.b16 %v591, %v587
    %v632 = vpack.c.b16 %v592, %v588
    %v633 = vpack.c.b16 %v597, %v593
    %v634 = vpack.c.b16 %v598, %v594
    %v635 = vpack.c.b16 %v599, %v595
    %v636 = vpack.c.b16 %v600, %v596
    %v637 = vpack.c.b16 %v605, %v601
    %v638 = vpack.c.b16 %v606, %v602
    %v639 = vpack.c.b16 %v607, %v603
    %v640 = vpack.c.b16 %v608, %v604
    %673 = vmatpush.bf16.msra.mxu0 %v637
    %674 = vmatpush.bf16.msra.mxu0 %v633
    %675 = vmatpush.bf16.msra.mxu0 %v629
    %676 = vmatpush.bf16.msra.mxu0 %v625
    %677 = vmatpush.bf16.msra.mxu0 %v621
    %678 = vmatpush.bf16.msra.mxu0 %v617
    %679 = vmatpush.bf16.msra.mxu0 %v613
    %680 = vmatpush.bf16.msra.mxu0 %v609
    %681 = vmatmul.bf16.gmra.mxu0 0
    %v682 = vpop.f32.mrf.mxu0
    %v683 = vadd.f32 0.0, %v682
    %v684 = vpop.f32.mrf.mxu0
    %685 = vdwg.mxu0
    %686 = vmatpush.bf16.msra.mxu0 %v638
    %687 = vmatpush.bf16.msra.mxu0 %v634
    %688 = vmatpush.bf16.msra.mxu0 %v630
    %689 = vmatpush.bf16.msra.mxu0 %v626
    %690 = vmatpush.bf16.msra.mxu0 %v622
    %691 = vmatpush.bf16.msra.mxu0 %v618
    %692 = vmatpush.bf16.msra.mxu0 %v614
    %693 = vmatpush.bf16.msra.mxu0 %v610
    %694 = vmatmul.bf16.gmra.mxu0 0
    %v695 = vpop.f32.mrf.mxu0
    %v696 = vadd.f32 0.0, %v695
    %v697 = vpop.f32.mrf.mxu0
    %698 = vdwg.mxu0
    %699 = vmatpush.bf16.msra.mxu0 %v639
    %700 = vmatpush.bf16.msra.mxu0 %v635
    %701 = vmatpush.bf16.msra.mxu0 %v631
    %702 = vmatpush.bf16.msra.mxu0 %v627
    %703 = vmatpush.bf16.msra.mxu0 %v623
    %704 = vmatpush.bf16.msra.mxu0 %v619
    %705 = vmatpush.bf16.msra.mxu0 %v615
    %706 = vmatpush.bf16.msra.mxu0 %v611
    %707 = vmatmul.bf16.gmra.mxu0 0
    %v708 = vpop.f32.mrf.mxu0
    %v709 = vadd.f32 0.0, %v708
    %v710 = vpop.f32.mrf.mxu0
    %711 = vdwg.mxu0
    %712 = vmatpush.bf16.msra.mxu0 %v640
    %713 = vmatpush.bf16.msra.mxu0 %v636
    %714 = vmatpush.bf16.msra.mxu0 %v632
    %715 = vmatpush.bf16.msra.mxu0 %v628
    %716 = vmatpush.bf16.msra.mxu0 %v624
    %717 = vmatpush.bf16.msra.mxu0 %v620
    %718 = vmatpush.bf16.msra.mxu0 %v616
    %719 = vmatpush.bf16.msra.mxu0 %v612
    %720 = vmatmul.bf16.gmra.mxu0 0
    %v721 = vpop.f32.mrf.mxu0
    %v722 = vadd.f32 0.0, %v721
    %v723 = vpop.f32.mrf.mxu0
    %724 = vdwg.mxu0
    %v725 = vadd.f32 %v467, %v683
    %v726 = vadd.f32 %v481, %v696
    %v727 = vadd.f32 %v495, %v709
    %v728 = vadd.f32 %v509, %v722
    %v729 = vxor.u32 %v725, 2147483648
    %v730 = vmul.f32 %v729, 1.442695
    %v731 = vpow.pop %v730
    %v732 = vadd.f32 %v731, 1.0
    %v733 = vrcp.pop %v732
    %v734 = vmul.f32 %v732, %v733
    %v735 = vsub.f32 1.0, %v734
    %v736 = vmul.f32 %v733, %v735
    %v737 = vadd.f32 %v733, %v736
    %vm738 = vweird.f32 %v732
    %vm739 = vweird.f32 %v733
    %vm740 = vmor %vm738, %vm739
    %v741 = vsel %vm740, %v733, %v737
    %v742 = vand.u32 2147483647, %v732
    %vm743 = vcmp.eq.f32.partialorder %v742, 8.507059e+37
    %v744 = vand.u32 %v732, 2147483648
    %v745 = vor.u32 1.1754944e-38, %v744
    %v746 = vsel %vm743, %v745, %v741
    %v747 = vmul.f32 1.0, %v746
    %v748 = vxor.u32 %v726, 2147483648
    %v749 = vmul.f32 %v748, 1.442695
    %v750 = vpow.pop %v749
    %v751 = vadd.f32 %v750, 1.0
    %v752 = vrcp.pop %v751
    %v753 = vmul.f32 %v751, %v752
    %v754 = vsub.f32 1.0, %v753
    %v755 = vmul.f32 %v752, %v754
    %v756 = vadd.f32 %v752, %v755
    %vm757 = vweird.f32 %v751
    %vm758 = vweird.f32 %v752
    %vm759 = vmor %vm757, %vm758
    %v760 = vsel %vm759, %v752, %v756
    %v761 = vand.u32 2147483647, %v751
    %vm762 = vcmp.eq.f32.partialorder %v761, 8.507059e+37
    %v763 = vand.u32 %v751, 2147483648
    %v764 = vor.u32 1.1754944e-38, %v763
    %v765 = vsel %vm762, %v764, %v760
    %v766 = vmul.f32 1.0, %v765
    %v767 = vtanh.pop %v727
    %v768 = vxor.u32 %v728, 2147483648
    %v769 = vmul.f32 %v768, 1.442695
    %v770 = vpow.pop %v769
    %v771 = vadd.f32 %v770, 1.0
    %v772 = vrcp.pop %v771
    %v773 = vmul.f32 %v771, %v772
    %v774 = vsub.f32 1.0, %v773
    %v775 = vmul.f32 %v772, %v774
    %v776 = vadd.f32 %v772, %v775
    %vm777 = vweird.f32 %v771
    %vm778 = vweird.f32 %v772
    %vm779 = vmor %vm777, %vm778
    %v780 = vsel %vm779, %v772, %v776
    %v781 = vand.u32 2147483647, %v771
    %vm782 = vcmp.eq.f32.partialorder %v781, 8.507059e+37
    %v783 = vand.u32 %v771, 2147483648
    %v784 = vor.u32 1.1754944e-38, %v783
    %v785 = vsel %vm782, %v784, %v780
    %v786 = vmul.f32 1.0, %v785
    %v787 = vmul.f32 %v766, 0.0
    %v788 = vmul.f32 %v747, %v767
    %v789 = vadd.f32 %v787, %v788
    %v790 = vtanh.pop %v789
    %v791 = vmul.f32 %v786, %v790
    %v792 = vpack.c.bf16 %v791, %v791
    %793 = vmatpush.bf16.msra.mxu0 %v637
    %794 = vmatpush.bf16.msra.mxu0 %v633
    %795 = vmatpush.bf16.msra.mxu0 %v629
    %796 = vmatpush.bf16.msra.mxu0 %v625
    %797 = vmatpush.bf16.msra.mxu0 %v621
    %798 = vmatpush.bf16.msra.mxu0 %v617
    %799 = vmatpush.bf16.msra.mxu0 %v613
    %800 = vmatpush.bf16.msra.mxu0 %v609
    %801 = vmatmul.bf16.gmra.mxu0 %v792
    %v802 = vpop.f32.mrf.mxu0
    %v803 = vadd.f32 0.0, %v802
    %v804 = vpop.f32.mrf.mxu0
    %805 = vdwg.mxu0
    %806 = vmatpush.bf16.msra.mxu0 %v638
    %807 = vmatpush.bf16.msra.mxu0 %v634
    %808 = vmatpush.bf16.msra.mxu0 %v630
    %809 = vmatpush.bf16.msra.mxu0 %v626
    %810 = vmatpush.bf16.msra.mxu0 %v622
    %811 = vmatpush.bf16.msra.mxu0 %v618
    %812 = vmatpush.bf16.msra.mxu0 %v614
    %813 = vmatpush.bf16.msra.mxu0 %v610
    %814 = vmatmul.bf16.gmra.mxu0 %v792
    %v815 = vpop.f32.mrf.mxu0
    %v816 = vadd.f32 0.0, %v815
    %v817 = vpop.f32.mrf.mxu0
    %818 = vdwg.mxu0
    %819 = vmatpush.bf16.msra.mxu0 %v639
    %820 = vmatpush.bf16.msra.mxu0 %v635
    %821 = vmatpush.bf16.msra.mxu0 %v631
    %822 = vmatpush.bf16.msra.mxu0 %v627
    %823 = vmatpush.bf16.msra.mxu0 %v623
    %824 = vmatpush.bf16.msra.mxu0 %v619
    %825 = vmatpush.bf16.msra.mxu0 %v615
    %826 = vmatpush.bf16.msra.mxu0 %v611
    %827 = vmatmul.bf16.gmra.mxu0 %v792
    %v828 = vpop.f32.mrf.mxu0
    %v829 = vadd.f32 0.0, %v828
    %v830 = vpop.f32.mrf.mxu0
    %831 = vdwg.mxu0
    %832 = vmatpush.bf16.msra.mxu0 %v640
    %833 = vmatpush.bf16.msra.mxu0 %v636
    %834 = vmatpush.bf16.msra.mxu0 %v632
    %835 = vmatpush.bf16.msra.mxu0 %v628
    %836 = vmatpush.bf16.msra.mxu0 %v624
    %837 = vmatpush.bf16.msra.mxu0 %v620
    %838 = vmatpush.bf16.msra.mxu0 %v616
    %839 = vmatpush.bf16.msra.mxu0 %v612
    %840 = vmatmul.bf16.gmra.mxu0 %v792
    %v841 = vpop.f32.mrf.mxu0
    %v842 = vadd.f32 0.0, %v841
    %v843 = vpop.f32.mrf.mxu0
    %844 = vdwg.mxu0
    %v845 = vadd.f32 %v469, %v803
    %v846 = vadd.f32 %v483, %v816
    %v847 = vadd.f32 %v497, %v829
    %v848 = vadd.f32 %v511, %v842
    %v849 = vxor.u32 %v845, 2147483648
    %v850 = vmul.f32 %v849, 1.442695
    %v851 = vpow.pop %v850
    %v852 = vadd.f32 %v851, 1.0
    %v853 = vrcp.pop %v852
    %v854 = vmul.f32 %v852, %v853
    %v855 = vsub.f32 1.0, %v854
    %v856 = vmul.f32 %v853, %v855
    %v857 = vadd.f32 %v853, %v856
    %vm858 = vweird.f32 %v852
    %vm859 = vweird.f32 %v853
    %vm860 = vmor %vm858, %vm859
    %v861 = vsel %vm860, %v853, %v857
    %v862 = vand.u32 2147483647, %v852
    %vm863 = vcmp.eq.f32.partialorder %v862, 8.507059e+37
    %v864 = vand.u32 %v852, 2147483648
    %v865 = vor.u32 1.1754944e-38, %v864
    %v866 = vsel %vm863, %v865, %v861
    %v867 = vmul.f32 1.0, %v866
    %v868 = vxor.u32 %v846, 2147483648
    %v869 = vmul.f32 %v868, 1.442695
    %v870 = vpow.pop %v869
    %v871 = vadd.f32 %v870, 1.0
    %v872 = vrcp.pop %v871
    %v873 = vmul.f32 %v871, %v872
    %v874 = vsub.f32 1.0, %v873
    %v875 = vmul.f32 %v872, %v874
    %v876 = vadd.f32 %v872, %v875
    %vm877 = vweird.f32 %v871
    %vm878 = vweird.f32 %v872
    %vm879 = vmor %vm877, %vm878
    %v880 = vsel %vm879, %v872, %v876
    %v881 = vand.u32 2147483647, %v871
    %vm882 = vcmp.eq.f32.partialorder %v881, 8.507059e+37
    %v883 = vand.u32 %v871, 2147483648
    %v884 = vor.u32 1.1754944e-38, %v883
    %v885 = vsel %vm882, %v884, %v880
    %v886 = vmul.f32 1.0, %v885
    %v887 = vtanh.pop %v847
    %v888 = vxor.u32 %v848, 2147483648
    %v889 = vmul.f32 %v888, 1.442695
    %v890 = vpow.pop %v889
    %v891 = vadd.f32 %v890, 1.0
    %v892 = vrcp.pop %v891
    %v893 = vmul.f32 %v891, %v892
    %v894 = vsub.f32 1.0, %v893
    %v895 = vmul.f32 %v892, %v894
    %v896 = vadd.f32 %v892, %v895
    %vm897 = vweird.f32 %v891
    %vm898 = vweird.f32 %v892
    %vm899 = vmor %vm897, %vm898
    %v900 = vsel %vm899, %v892, %v896
    %v901 = vand.u32 2147483647, %v891
    %vm902 = vcmp.eq.f32.partialorder %v901, 8.507059e+37
    %v903 = vand.u32 %v891, 2147483648
    %v904 = vor.u32 1.1754944e-38, %v903
    %v905 = vsel %vm902, %v904, %v900
    %v906 = vmul.f32 1.0, %v905
    %v907 = vmul.f32 %v886, %v789
    %v908 = vmul.f32 %v867, %v887
    %v909 = vadd.f32 %v907, %v908
    %v910 = vtanh.pop %v909
    %v911 = vmul.f32 %v906, %v910
    %v912 = vpack.c.bf16 %v911, %v791
    %v914 = vperm.slane %v290, 0
    %v915 = vperm.slane %v290, 1
    %v916 = vperm.slane %v290, 2
    %v917 = vperm.slane %v290, 3
    %v918 = vperm.slane %v290, 4
    %v919 = vperm.slane %v290, 5
    %v920 = vperm.slane %v290, 6
    %v921 = vperm.slane %v290, 7
    %v994 = vunpack.c.l.b16 %v226
    %v995 = vunpack.c.h.b16 %v226
    %v996 = vunpack.c.l.b16 %v227
    %v997 = vunpack.c.h.b16 %v227
    %v998 = vunpack.c.l.b16 %v228
    %v999 = vunpack.c.h.b16 %v228
    %v1000 = vunpack.c.l.b16 %v229
    %v1001 = vunpack.c.h.b16 %v229
    %v1002 = vunpack.c.l.b16 %v230
    %v1003 = vunpack.c.h.b16 %v230
    %v1004 = vunpack.c.l.b16 %v231
    %v1005 = vunpack.c.h.b16 %v231
    %v1006 = vunpack.c.l.b16 %v232
    %v1007 = vunpack.c.h.b16 %v232
    %v1008 = vunpack.c.l.b16 %v233
    %v1009 = vunpack.c.h.b16 %v233
    %v1010 = vunpack.c.l.b16 %v234
    %v1011 = vunpack.c.h.b16 %v234
    %v1012 = vunpack.c.l.b16 %v235
    %v1013 = vunpack.c.h.b16 %v235
    %v1014 = vunpack.c.l.b16 %v236
    %v1015 = vunpack.c.h.b16 %v236
    %v1016 = vunpack.c.l.b16 %v237
    %v1017 = vunpack.c.h.b16 %v237
    %v1018 = vunpack.c.l.b16 %v238
    %v1019 = vunpack.c.h.b16 %v238
    %v1020 = vunpack.c.l.b16 %v239
    %v1021 = vunpack.c.h.b16 %v239
    %v1022 = vunpack.c.l.b16 %v240
    %v1023 = vunpack.c.h.b16 %v240
    %v1024 = vunpack.c.l.b16 %v241
    %v1025 = vunpack.c.h.b16 %v241
    %v1026 = vunpack.c.l.b16 %v242
    %v1027 = vunpack.c.h.b16 %v242
    %v1028 = vunpack.c.l.b16 %v243
    %v1029 = vunpack.c.h.b16 %v243
    %v1030 = vunpack.c.l.b16 %v244
    %v1031 = vunpack.c.h.b16 %v244
    %v1032 = vunpack.c.l.b16 %v245
    %v1033 = vunpack.c.h.b16 %v245
    %v1034 = vunpack.c.l.b16 %v246
    %v1035 = vunpack.c.h.b16 %v246
    %v1036 = vunpack.c.l.b16 %v247
    %v1037 = vunpack.c.h.b16 %v247
    %v1038 = vunpack.c.l.b16 %v248
    %v1039 = vunpack.c.h.b16 %v248
    %v1040 = vunpack.c.l.b16 %v249
    %v1041 = vunpack.c.h.b16 %v249
    %v1042 = vunpack.c.l.b16 %v250
    %v1043 = vunpack.c.h.b16 %v250
    %v1044 = vunpack.c.l.b16 %v251
    %v1045 = vunpack.c.h.b16 %v251
    %v1046 = vunpack.c.l.b16 %v252
    %v1047 = vunpack.c.h.b16 %v252
    %v1048 = vunpack.c.l.b16 %v253
    %v1049 = vunpack.c.h.b16 %v253
    %v1050 = vunpack.c.l.b16 %v254
    %v1051 = vunpack.c.h.b16 %v254
    %v1052 = vunpack.c.l.b16 %v255
    %v1053 = vunpack.c.h.b16 %v255
    %v1054 = vunpack.c.l.b16 %v256
    %v1055 = vunpack.c.h.b16 %v256
    %v1056 = vunpack.c.l.b16 %v257
    %v1057 = vunpack.c.h.b16 %v257
    %v1058 = vunpack.c.l.b16 %v258
    %v1059 = vunpack.c.h.b16 %v258
    %v1060 = vunpack.c.l.b16 %v259
    %v1061 = vunpack.c.h.b16 %v259
    %v1062 = vunpack.c.l.b16 %v260
    %v1063 = vunpack.c.h.b16 %v260
    %v1064 = vunpack.c.l.b16 %v261
    %v1065 = vunpack.c.h.b16 %v261
    %v1066 = vunpack.c.l.b16 %v262
    %v1067 = vunpack.c.h.b16 %v262
    %v1068 = vunpack.c.l.b16 %v263
    %v1069 = vunpack.c.h.b16 %v263
    %v1070 = vunpack.c.l.b16 %v264
    %v1071 = vunpack.c.h.b16 %v264
    %v1072 = vunpack.c.l.b16 %v265
    %v1073 = vunpack.c.h.b16 %v265
    %v1074 = vunpack.c.l.b16 %v266
    %v1075 = vunpack.c.h.b16 %v266
    %v1076 = vunpack.c.l.b16 %v267
    %v1077 = vunpack.c.h.b16 %v267
    %v1078 = vunpack.c.l.b16 %v268
    %v1079 = vunpack.c.h.b16 %v268
    %v1080 = vunpack.c.l.b16 %v269
    %v1081 = vunpack.c.h.b16 %v269
    %v1082 = vunpack.c.l.b16 %v270
    %v1083 = vunpack.c.h.b16 %v270
    %v1084 = vunpack.c.l.b16 %v271
    %v1085 = vunpack.c.h.b16 %v271
    %v1086 = vunpack.c.l.b16 %v272
    %v1087 = vunpack.c.h.b16 %v272
    %v1088 = vunpack.c.l.b16 %v273
    %v1089 = vunpack.c.h.b16 %v273
    %v1090 = vunpack.c.l.b16 %v274
    %v1091 = vunpack.c.h.b16 %v274
    %v1092 = vunpack.c.l.b16 %v275
    %v1093 = vunpack.c.h.b16 %v275
    %v1094 = vunpack.c.l.b16 %v276
    %v1095 = vunpack.c.h.b16 %v276
    %v1096 = vunpack.c.l.b16 %v277
    %v1097 = vunpack.c.h.b16 %v277
    %v1098 = vunpack.c.l.b16 %v278
    %v1099 = vunpack.c.h.b16 %v278
    %v1100 = vunpack.c.l.b16 %v279
    %v1101 = vunpack.c.h.b16 %v279
    %v1102 = vunpack.c.l.b16 %v280
    %v1103 = vunpack.c.h.b16 %v280
    %v1104 = vunpack.c.l.b16 %v281
    %v1105 = vunpack.c.h.b16 %v281
    %v1106 = vunpack.c.l.b16 %v282
    %v1107 = vunpack.c.h.b16 %v282
    %v1108 = vunpack.c.l.b16 %v283
    %v1109 = vunpack.c.h.b16 %v283
    %v1110 = vunpack.c.l.b16 %v284
    %v1111 = vunpack.c.h.b16 %v284
    %v1112 = vunpack.c.l.b16 %v285
    %v1113 = vunpack.c.h.b16 %v285
    %v1114 = vunpack.c.l.b16 %v286
    %v1115 = vunpack.c.h.b16 %v286
    %v1116 = vunpack.c.l.b16 %v287
    %v1117 = vunpack.c.h.b16 %v287
    %v1118 = vunpack.c.l.b16 %v288
    %v1119 = vunpack.c.h.b16 %v288
    %v1120 = vunpack.c.l.b16 %v289
    %v1121 = vunpack.c.h.b16 %v289
    %v1122 = vpack.c.b16 %v1002, %v994
    %v1123 = vpack.c.b16 %v1003, %v995
    %v1124 = vpack.c.b16 %v1004, %v996
    %v1125 = vpack.c.b16 %v1005, %v997
    %v1126 = vpack.c.b16 %v1006, %v998
    %v1127 = vpack.c.b16 %v1007, %v999
    %v1128 = vpack.c.b16 %v1008, %v1000
    %v1129 = vpack.c.b16 %v1009, %v1001
    %v1130 = vpack.c.b16 %v1018, %v1010
    %v1131 = vpack.c.b16 %v1019, %v1011
    %v1132 = vpack.c.b16 %v1020, %v1012
    %v1133 = vpack.c.b16 %v1021, %v1013
    %v1134 = vpack.c.b16 %v1022, %v1014
    %v1135 = vpack.c.b16 %v1023, %v1015
    %v1136 = vpack.c.b16 %v1024, %v1016
    %v1137 = vpack.c.b16 %v1025, %v1017
    %v1138 = vpack.c.b16 %v1034, %v1026
    %v1139 = vpack.c.b16 %v1035, %v1027
    %v1140 = vpack.c.b16 %v1036, %v1028
    %v1141 = vpack.c.b16 %v1037, %v1029
    %v1142 = vpack.c.b16 %v1038, %v1030
    %v1143 = vpack.c.b16 %v1039, %v1031
    %v1144 = vpack.c.b16 %v1040, %v1032
    %v1145 = vpack.c.b16 %v1041, %v1033
    %v1146 = vpack.c.b16 %v1050, %v1042
    %v1147 = vpack.c.b16 %v1051, %v1043
    %v1148 = vpack.c.b16 %v1052, %v1044
    %v1149 = vpack.c.b16 %v1053, %v1045
    %v1150 = vpack.c.b16 %v1054, %v1046
    %v1151 = vpack.c.b16 %v1055, %v1047
    %v1152 = vpack.c.b16 %v1056, %v1048
    %v1153 = vpack.c.b16 %v1057, %v1049
    %v1154 = vpack.c.b16 %v1066, %v1058
    %v1155 = vpack.c.b16 %v1067, %v1059
    %v1156 = vpack.c.b16 %v1068, %v1060
    %v1157 = vpack.c.b16 %v1069, %v1061
    %v1158 = vpack.c.b16 %v1070, %v1062
    %v1159 = vpack.c.b16 %v1071, %v1063
    %v1160 = vpack.c.b16 %v1072, %v1064
    %v1161 = vpack.c.b16 %v1073, %v1065
    %v1162 = vpack.c.b16 %v1082, %v1074
    %v1163 = vpack.c.b16 %v1083, %v1075
    %v1164 = vpack.c.b16 %v1084, %v1076
    %v1165 = vpack.c.b16 %v1085, %v1077
    %v1166 = vpack.c.b16 %v1086, %v1078
    %v1167 = vpack.c.b16 %v1087, %v1079
    %v1168 = vpack.c.b16 %v1088, %v1080
    %v1169 = vpack.c.b16 %v1089, %v1081
    %v1170 = vpack.c.b16 %v1098, %v1090
    %v1171 = vpack.c.b16 %v1099, %v1091
    %v1172 = vpack.c.b16 %v1100, %v1092
    %v1173 = vpack.c.b16 %v1101, %v1093
    %v1174 = vpack.c.b16 %v1102, %v1094
    %v1175 = vpack.c.b16 %v1103, %v1095
    %v1176 = vpack.c.b16 %v1104, %v1096
    %v1177 = vpack.c.b16 %v1105, %v1097
    %v1178 = vpack.c.b16 %v1114, %v1106
    %v1179 = vpack.c.b16 %v1115, %v1107
    %v1180 = vpack.c.b16 %v1116, %v1108
    %v1181 = vpack.c.b16 %v1117, %v1109
    %v1182 = vpack.c.b16 %v1118, %v1110
    %v1183 = vpack.c.b16 %v1119, %v1111
    %v1184 = vpack.c.b16 %v1120, %v1112
    %v1185 = vpack.c.b16 %v1121, %v1113
    %1250 = vmatpush.bf16.msra.mxu0 %v1178
    %1251 = vmatpush.bf16.msra.mxu0 %v1170
    %1252 = vmatpush.bf16.msra.mxu0 %v1162
    %1253 = vmatpush.bf16.msra.mxu0 %v1154
    %1254 = vmatpush.bf16.msra.mxu0 %v1146
    %1255 = vmatpush.bf16.msra.mxu0 %v1138
    %1256 = vmatpush.bf16.msra.mxu0 %v1130
    %1257 = vmatpush.bf16.msra.mxu0 %v1122
    %1258 = vmatmul.bf16.gmra.mxu0 %v912
    %v1259 = vpop.f32.mrf.mxu0
    %v1260 = vadd.f32 %v914, %v1259
    %v1261 = vpop.f32.mrf.mxu0
    %v1262 = vadd.f32 %v914, %v1261
    %1263 = vdwg.mxu0
    %1264 = vmatpush.bf16.msra.mxu0 %v1179
    %1265 = vmatpush.bf16.msra.mxu0 %v1171
    %1266 = vmatpush.bf16.msra.mxu0 %v1163
    %1267 = vmatpush.bf16.msra.mxu0 %v1155
    %1268 = vmatpush.bf16.msra.mxu0 %v1147
    %1269 = vmatpush.bf16.msra.mxu0 %v1139
    %1270 = vmatpush.bf16.msra.mxu0 %v1131
    %1271 = vmatpush.bf16.msra.mxu0 %v1123
    %1272 = vmatmul.bf16.gmra.mxu0 %v912
    %v1273 = vpop.f32.mrf.mxu0
    %v1274 = vadd.f32 %v915, %v1273
    %v1275 = vpop.f32.mrf.mxu0
    %v1276 = vadd.f32 %v915, %v1275
    %1277 = vdwg.mxu0
    %1278 = vmatpush.bf16.msra.mxu0 %v1180
    %1279 = vmatpush.bf16.msra.mxu0 %v1172
    %1280 = vmatpush.bf16.msra.mxu0 %v1164
    %1281 = vmatpush.bf16.msra.mxu0 %v1156
    %1282 = vmatpush.bf16.msra.mxu0 %v1148
    %1283 = vmatpush.bf16.msra.mxu0 %v1140
    %1284 = vmatpush.bf16.msra.mxu0 %v1132
    %1285 = vmatpush.bf16.msra.mxu0 %v1124
    %1286 = vmatmul.bf16.gmra.mxu0 %v912
    %v1287 = vpop.f32.mrf.mxu0
    %v1288 = vadd.f32 %v916, %v1287
    %v1289 = vpop.f32.mrf.mxu0
    %v1290 = vadd.f32 %v916, %v1289
    %1291 = vdwg.mxu0
    %1292 = vmatpush.bf16.msra.mxu0 %v1181
    %1293 = vmatpush.bf16.msra.mxu0 %v1173
    %1294 = vmatpush.bf16.msra.mxu0 %v1165
    %1295 = vmatpush.bf16.msra.mxu0 %v1157
    %1296 = vmatpush.bf16.msra.mxu0 %v1149
    %1297 = vmatpush.bf16.msra.mxu0 %v1141
    %1298 = vmatpush.bf16.msra.mxu0 %v1133
    %1299 = vmatpush.bf16.msra.mxu0 %v1125
    %1300 = vmatmul.bf16.gmra.mxu0 %v912
    %v1301 = vpop.f32.mrf.mxu0
    %v1302 = vadd.f32 %v917, %v1301
    %v1303 = vpop.f32.mrf.mxu0
    %v1304 = vadd.f32 %v917, %v1303
    %1305 = vdwg.mxu0
    %1306 = vmatpush.bf16.msra.mxu0 %v1182
    %1307 = vmatpush.bf16.msra.mxu0 %v1174
    %1308 = vmatpush.bf16.msra.mxu0 %v1166
    %1309 = vmatpush.bf16.msra.mxu0 %v1158
    %1310 = vmatpush.bf16.msra.mxu0 %v1150
    %1311 = vmatpush.bf16.msra.mxu0 %v1142
    %1312 = vmatpush.bf16.msra.mxu0 %v1134
    %1313 = vmatpush.bf16.msra.mxu0 %v1126
    %1314 = vmatmul.bf16.gmra.mxu0 %v912
    %v1315 = vpop.f32.mrf.mxu0
    %v1316 = vadd.f32 %v918, %v1315
    %v1317 = vpop.f32.mrf.mxu0
    %v1318 = vadd.f32 %v918, %v1317
    %1319 = vdwg.mxu0
    %1320 = vmatpush.bf16.msra.mxu0 %v1183
    %1321 = vmatpush.bf16.msra.mxu0 %v1175
    %1322 = vmatpush.bf16.msra.mxu0 %v1167
    %1323 = vmatpush.bf16.msra.mxu0 %v1159
    %1324 = vmatpush.bf16.msra.mxu0 %v1151
    %1325 = vmatpush.bf16.msra.mxu0 %v1143
    %1326 = vmatpush.bf16.msra.mxu0 %v1135
    %1327 = vmatpush.bf16.msra.mxu0 %v1127
    %1328 = vmatmul.bf16.gmra.mxu0 %v912
    %v1329 = vpop.f32.mrf.mxu0
    %v1330 = vadd.f32 %v919, %v1329
    %v1331 = vpop.f32.mrf.mxu0
    %v1332 = vadd.f32 %v919, %v1331
    %1333 = vdwg.mxu0
    %1334 = vmatpush.bf16.msra.mxu0 %v1184
    %1335 = vmatpush.bf16.msra.mxu0 %v1176
    %1336 = vmatpush.bf16.msra.mxu0 %v1168
    %1337 = vmatpush.bf16.msra.mxu0 %v1160
    %1338 = vmatpush.bf16.msra.mxu0 %v1152
    %1339 = vmatpush.bf16.msra.mxu0 %v1144
    %1340 = vmatpush.bf16.msra.mxu0 %v1136
    %1341 = vmatpush.bf16.msra.mxu0 %v1128
    %1342 = vmatmul.bf16.gmra.mxu0 %v912
    %v1343 = vpop.f32.mrf.mxu0
    %v1344 = vadd.f32 %v920, %v1343
    %v1345 = vpop.f32.mrf.mxu0
    %v1346 = vadd.f32 %v920, %v1345
    %1347 = vdwg.mxu0
    %1348 = vmatpush.bf16.msra.mxu0 %v1185
    %1349 = vmatpush.bf16.msra.mxu0 %v1177
    %1350 = vmatpush.bf16.msra.mxu0 %v1169
    %1351 = vmatpush.bf16.msra.mxu0 %v1161
    %1352 = vmatpush.bf16.msra.mxu0 %v1153
    %1353 = vmatpush.bf16.msra.mxu0 %v1145
    %1354 = vmatpush.bf16.msra.mxu0 %v1137
    %1355 = vmatpush.bf16.msra.mxu0 %v1129
    %1356 = vmatmul.bf16.gmra.mxu0 %v912
    %v1357 = vpop.f32.mrf.mxu0
    %v1358 = vadd.f32 %v921, %v1357
    %v1359 = vpop.f32.mrf.mxu0
    %v1360 = vadd.f32 %v921, %v1359
    %1361 = vdwg.mxu0
    %v1362 = vmax.f32 %v1260, 0.0
    %v1363 = vmax.f32 %v1274, 0.0
    %v1364 = vmax.f32 %v1288, 0.0
    %v1365 = vmax.f32 %v1302, 0.0
    %v1366 = vmax.f32 %v1316, 0.0
    %v1367 = vmax.f32 %v1330, 0.0
    %v1368 = vmax.f32 %v1344, 0.0
    %v1369 = vmax.f32 %v1358, 0.0
    %v1370 = vmax.f32 %v1262, 0.0
    %v1371 = vmax.f32 %v1276, 0.0
    %v1372 = vmax.f32 %v1290, 0.0
    %v1373 = vmax.f32 %v1304, 0.0
    %v1374 = vmax.f32 %v1318, 0.0
    %v1375 = vmax.f32 %v1332, 0.0
    %v1376 = vmax.f32 %v1346, 0.0
    %v1377 = vmax.f32 %v1360, 0.0
    %v1378 = vpack.c.bf16 %v1370, %v1362
    %v1379 = vpack.c.bf16 %v1371, %v1363
    %v1380 = vpack.c.bf16 %v1372, %v1364
    %v1381 = vpack.c.bf16 %v1373, %v1365
    %v1382 = vpack.c.bf16 %v1374, %v1366
    %v1383 = vpack.c.bf16 %v1375, %v1367
    %v1384 = vpack.c.bf16 %v1376, %v1368
    %v1385 = vpack.c.bf16 %v1377, %v1369
    %v1387 = vperm.slane %v419, 0
    %v1517 = vunpack.c.l.b16 %v291
    %v1518 = vunpack.c.l.b16 %v292
    %v1519 = vunpack.c.l.b16 %v293
    %v1520 = vunpack.c.l.b16 %v294
    %v1521 = vunpack.c.l.b16 %v295
    %v1522 = vunpack.c.l.b16 %v296
    %v1523 = vunpack.c.l.b16 %v297
    %v1524 = vunpack.c.l.b16 %v298
    %v1525 = vunpack.c.l.b16 %v299
    %v1526 = vunpack.c.l.b16 %v300
    %v1527 = vunpack.c.l.b16 %v301
    %v1528 = vunpack.c.l.b16 %v302
    %v1529 = vunpack.c.l.b16 %v303
    %v1530 = vunpack.c.l.b16 %v304
    %v1531 = vunpack.c.l.b16 %v305
    %v1532 = vunpack.c.l.b16 %v306
    %v1533 = vunpack.c.l.b16 %v307
    %v1534 = vunpack.c.l.b16 %v308
    %v1535 = vunpack.c.l.b16 %v309
    %v1536 = vunpack.c.l.b16 %v310
    %v1537 = vunpack.c.l.b16 %v311
    %v1538 = vunpack.c.l.b16 %v312
    %v1539 = vunpack.c.l.b16 %v313
    %v1540 = vunpack.c.l.b16 %v314
    %v1541 = vunpack.c.l.b16 %v315
    %v1542 = vunpack.c.l.b16 %v316
    %v1543 = vunpack.c.l.b16 %v317
    %v1544 = vunpack.c.l.b16 %v318
    %v1545 = vunpack.c.l.b16 %v319
    %v1546 = vunpack.c.l.b16 %v320
    %v1547 = vunpack.c.l.b16 %v321
    %v1548 = vunpack.c.l.b16 %v322
    %v1549 = vunpack.c.l.b16 %v323
    %v1550 = vunpack.c.l.b16 %v324
    %v1551 = vunpack.c.l.b16 %v325
    %v1552 = vunpack.c.l.b16 %v326
    %v1553 = vunpack.c.l.b16 %v327
    %v1554 = vunpack.c.l.b16 %v328
    %v1555 = vunpack.c.l.b16 %v329
    %v1556 = vunpack.c.l.b16 %v330
    %v1557 = vunpack.c.l.b16 %v331
    %v1558 = vunpack.c.l.b16 %v332
    %v1559 = vunpack.c.l.b16 %v333
    %v1560 = vunpack.c.l.b16 %v334
    %v1561 = vunpack.c.l.b16 %v335
    %v1562 = vunpack.c.l.b16 %v336
    %v1563 = vunpack.c.l.b16 %v337
    %v1564 = vunpack.c.l.b16 %v338
    %v1565 = vunpack.c.l.b16 %v339
    %v1566 = vunpack.c.l.b16 %v340
    %v1567 = vunpack.c.l.b16 %v341
    %v1568 = vunpack.c.l.b16 %v342
    %v1569 = vunpack.c.l.b16 %v343
    %v1570 = vunpack.c.l.b16 %v344
    %v1571 = vunpack.c.l.b16 %v345
    %v1572 = vunpack.c.l.b16 %v346
    %v1573 = vunpack.c.l.b16 %v347
    %v1574 = vunpack.c.l.b16 %v348
    %v1575 = vunpack.c.l.b16 %v349
    %v1576 = vunpack.c.l.b16 %v350
    %v1577 = vunpack.c.l.b16 %v351
    %v1578 = vunpack.c.l.b16 %v352
    %v1579 = vunpack.c.l.b16 %v353
    %v1580 = vunpack.c.l.b16 %v354
    %v1581 = vunpack.c.l.b16 %v355
    %v1582 = vunpack.c.l.b16 %v356
    %v1583 = vunpack.c.l.b16 %v357
    %v1584 = vunpack.c.l.b16 %v358
    %v1585 = vunpack.c.l.b16 %v359
    %v1586 = vunpack.c.l.b16 %v360
    %v1587 = vunpack.c.l.b16 %v361
    %v1588 = vunpack.c.l.b16 %v362
    %v1589 = vunpack.c.l.b16 %v363
    %v1590 = vunpack.c.l.b16 %v364
    %v1591 = vunpack.c.l.b16 %v365
    %v1592 = vunpack.c.l.b16 %v366
    %v1593 = vunpack.c.l.b16 %v367
    %v1594 = vunpack.c.l.b16 %v368
    %v1595 = vunpack.c.l.b16 %v369
    %v1596 = vunpack.c.l.b16 %v370
    %v1597 = vunpack.c.l.b16 %v371
    %v1598 = vunpack.c.l.b16 %v372
    %v1599 = vunpack.c.l.b16 %v373
    %v1600 = vunpack.c.l.b16 %v374
    %v1601 = vunpack.c.l.b16 %v375
    %v1602 = vunpack.c.l.b16 %v376
    %v1603 = vunpack.c.l.b16 %v377
    %v1604 = vunpack.c.l.b16 %v378
    %v1605 = vunpack.c.l.b16 %v379
    %v1606 = vunpack.c.l.b16 %v380
    %v1607 = vunpack.c.l.b16 %v381
    %v1608 = vunpack.c.l.b16 %v382
    %v1609 = vunpack.c.l.b16 %v383
    %v1610 = vunpack.c.l.b16 %v384
    %v1611 = vunpack.c.l.b16 %v385
    %v1612 = vunpack.c.l.b16 %v386
    %v1613 = vunpack.c.l.b16 %v387
    %v1614 = vunpack.c.l.b16 %v388
    %v1615 = vunpack.c.l.b16 %v389
    %v1616 = vunpack.c.l.b16 %v390
    %v1617 = vunpack.c.l.b16 %v391
    %v1618 = vunpack.c.l.b16 %v392
    %v1619 = vunpack.c.l.b16 %v393
    %v1620 = vunpack.c.l.b16 %v394
    %v1621 = vunpack.c.l.b16 %v395
    %v1622 = vunpack.c.l.b16 %v396
    %v1623 = vunpack.c.l.b16 %v397
    %v1624 = vunpack.c.l.b16 %v398
    %v1625 = vunpack.c.l.b16 %v399
    %v1626 = vunpack.c.l.b16 %v400
    %v1627 = vunpack.c.l.b16 %v401
    %v1628 = vunpack.c.l.b16 %v402
    %v1629 = vunpack.c.l.b16 %v403
    %v1630 = vunpack.c.l.b16 %v404
    %v1631 = vunpack.c.l.b16 %v405
    %v1632 = vunpack.c.l.b16 %v406
    %v1633 = vunpack.c.l.b16 %v407
    %v1634 = vunpack.c.l.b16 %v408
    %v1635 = vunpack.c.l.b16 %v409
    %v1636 = vunpack.c.l.b16 %v410
    %v1637 = vunpack.c.l.b16 %v411
    %v1638 = vunpack.c.l.b16 %v412
    %v1639 = vunpack.c.l.b16 %v413
    %v1640 = vunpack.c.l.b16 %v414
    %v1641 = vunpack.c.l.b16 %v415
    %v1642 = vunpack.c.l.b16 %v416
    %v1643 = vunpack.c.l.b16 %v417
    %v1644 = vunpack.c.l.b16 %v418
    %v1645 = vpack.c.b16 %v1518, %v1517
    %v1646 = vpack.c.b16 %v1520, %v1519
    %v1647 = vpack.c.b16 %v1522, %v1521
    %v1648 = vpack.c.b16 %v1524, %v1523
    %v1649 = vpack.c.b16 %v1526, %v1525
    %v1650 = vpack.c.b16 %v1528, %v1527
    %v1651 = vpack.c.b16 %v1530, %v1529
    %v1652 = vpack.c.b16 %v1532, %v1531
    %v1653 = vpack.c.b16 %v1534, %v1533
    %v1654 = vpack.c.b16 %v1536, %v1535
    %v1655 = vpack.c.b16 %v1538, %v1537
    %v1656 = vpack.c.b16 %v1540, %v1539
    %v1657 = vpack.c.b16 %v1542, %v1541
    %v1658 = vpack.c.b16 %v1544, %v1543
    %v1659 = vpack.c.b16 %v1546, %v1545
    %v1660 = vpack.c.b16 %v1548, %v1547
    %v1661 = vpack.c.b16 %v1550, %v1549
    %v1662 = vpack.c.b16 %v1552, %v1551
    %v1663 = vpack.c.b16 %v1554, %v1553
    %v1664 = vpack.c.b16 %v1556, %v1555
    %v1665 = vpack.c.b16 %v1558, %v1557
    %v1666 = vpack.c.b16 %v1560, %v1559
    %v1667 = vpack.c.b16 %v1562, %v1561
    %v1668 = vpack.c.b16 %v1564, %v1563
    %v1669 = vpack.c.b16 %v1566, %v1565
    %v1670 = vpack.c.b16 %v1568, %v1567
    %v1671 = vpack.c.b16 %v1570, %v1569
    %v1672 = vpack.c.b16 %v1572, %v1571
    %v1673 = vpack.c.b16 %v1574, %v1573
    %v1674 = vpack.c.b16 %v1576, %v1575
    %v1675 = vpack.c.b16 %v1578, %v1577
    %v1676 = vpack.c.b16 %v1580, %v1579
    %v1677 = vpack.c.b16 %v1582, %v1581
    %v1678 = vpack.c.b16 %v1584, %v1583
    %v1679 = vpack.c.b16 %v1586, %v1585
    %v1680 = vpack.c.b16 %v1588, %v1587
    %v1681 = vpack.c.b16 %v1590, %v1589
    %v1682 = vpack.c.b16 %v1592, %v1591
    %v1683 = vpack.c.b16 %v1594, %v1593
    %v1684 = vpack.c.b16 %v1596, %v1595
    %v1685 = vpack.c.b16 %v1598, %v1597
    %v1686 = vpack.c.b16 %v1600, %v1599
    %v1687 = vpack.c.b16 %v1602, %v1601
    %v1688 = vpack.c.b16 %v1604, %v1603
    %v1689 = vpack.c.b16 %v1606, %v1605
    %v1690 = vpack.c.b16 %v1608, %v1607
    %v1691 = vpack.c.b16 %v1610, %v1609
    %v1692 = vpack.c.b16 %v1612, %v1611
    %v1693 = vpack.c.b16 %v1614, %v1613
    %v1694 = vpack.c.b16 %v1616, %v1615
    %v1695 = vpack.c.b16 %v1618, %v1617
    %v1696 = vpack.c.b16 %v1620, %v1619
    %v1697 = vpack.c.b16 %v1622, %v1621
    %v1698 = vpack.c.b16 %v1624, %v1623
    %v1699 = vpack.c.b16 %v1626, %v1625
    %v1700 = vpack.c.b16 %v1628, %v1627
    %v1701 = vpack.c.b16 %v1630, %v1629
    %v1702 = vpack.c.b16 %v1632, %v1631
    %v1703 = vpack.c.b16 %v1634, %v1633
    %v1704 = vpack.c.b16 %v1636, %v1635
    %v1705 = vpack.c.b16 %v1638, %v1637
    %v1706 = vpack.c.b16 %v1640, %v1639
    %v1707 = vpack.c.b16 %v1642, %v1641
    %v1708 = vpack.c.b16 %v1644, %v1643
    %1773 = vmatpush.bf16.msra.mxu0 %v1652
    %1774 = vmatpush.bf16.msra.mxu0 %v1651
    %1775 = vmatpush.bf16.msra.mxu0 %v1650
    %1776 = vmatpush.bf16.msra.mxu0 %v1649
    %1777 = vmatpush.bf16.msra.mxu0 %v1648
    %1778 = vmatpush.bf16.msra.mxu0 %v1647
    %1779 = vmatpush.bf16.msra.mxu0 %v1646
    %1780 = vmatpush.bf16.msra.mxu0 %v1645
    %1781 = vmatmul.bf16.gmra.mxu0 %v1378
    %v1782 = vpop.f32.mrf.mxu0
    %v1783 = vadd.f32 %v1387, %v1782
    %v1784 = vpop.f32.mrf.mxu0
    %v1785 = vadd.f32 %v1387, %v1784
    %1786 = vdwg.mxu0
    %1787 = vmatpush.bf16.msra.mxu0 %v1660
    %1788 = vmatpush.bf16.msra.mxu0 %v1659
    %1789 = vmatpush.bf16.msra.mxu0 %v1658
    %1790 = vmatpush.bf16.msra.mxu0 %v1657
    %1791 = vmatpush.bf16.msra.mxu0 %v1656
    %1792 = vmatpush.bf16.msra.mxu0 %v1655
    %1793 = vmatpush.bf16.msra.mxu0 %v1654
    %1794 = vmatpush.bf16.msra.mxu0 %v1653
    %1795 = vmatmul.bf16.gmra.mxu0 %v1379
    %v1796 = vpop.f32.mrf.mxu0
    %v1797 = vadd.f32 %v1783, %v1796
    %v1798 = vpop.f32.mrf.mxu0
    %v1799 = vadd.f32 %v1785, %v1798
    %1800 = vdwg.mxu0
    %1801 = vmatpush.bf16.msra.mxu0 %v1668
    %1802 = vmatpush.bf16.msra.mxu0 %v1667
    %1803 = vmatpush.bf16.msra.mxu0 %v1666
    %1804 = vmatpush.bf16.msra.mxu0 %v1665
    %1805 = vmatpush.bf16.msra.mxu0 %v1664
    %1806 = vmatpush.bf16.msra.mxu0 %v1663
    %1807 = vmatpush.bf16.msra.mxu0 %v1662
    %1808 = vmatpush.bf16.msra.mxu0 %v1661
    %1809 = vmatmul.bf16.gmra.mxu0 %v1380
    %v1810 = vpop.f32.mrf.mxu0
    %v1811 = vadd.f32 %v1797, %v1810
    %v1812 = vpop.f32.mrf.mxu0
    %v1813 = vadd.f32 %v1799, %v1812
    %1814 = vdwg.mxu0
    %1815 = vmatpush.bf16.msra.mxu0 %v1676
    %1816 = vmatpush.bf16.msra.mxu0 %v1675
    %1817 = vmatpush.bf16.msra.mxu0 %v1674
    %1818 = vmatpush.bf16.msra.mxu0 %v1673
    %1819 = vmatpush.bf16.msra.mxu0 %v1672
    %1820 = vmatpush.bf16.msra.mxu0 %v1671
    %1821 = vmatpush.bf16.msra.mxu0 %v1670
    %1822 = vmatpush.bf16.msra.mxu0 %v1669
    %1823 = vmatmul.bf16.gmra.mxu0 %v1381
    %v1824 = vpop.f32.mrf.mxu0
    %v1825 = vadd.f32 %v1811, %v1824
    %v1826 = vpop.f32.mrf.mxu0
    %v1827 = vadd.f32 %v1813, %v1826
    %1828 = vdwg.mxu0
    %1829 = vmatpush.bf16.msra.mxu0 %v1684
    %1830 = vmatpush.bf16.msra.mxu0 %v1683
    %1831 = vmatpush.bf16.msra.mxu0 %v1682
    %1832 = vmatpush.bf16.msra.mxu0 %v1681
    %1833 = vmatpush.bf16.msra.mxu0 %v1680
    %1834 = vmatpush.bf16.msra.mxu0 %v1679
    %1835 = vmatpush.bf16.msra.mxu0 %v1678
    %1836 = vmatpush.bf16.msra.mxu0 %v1677
    %1837 = vmatmul.bf16.gmra.mxu0 %v1382
    %v1838 = vpop.f32.mrf.mxu0
    %v1839 = vadd.f32 %v1825, %v1838
    %v1840 = vpop.f32.mrf.mxu0
    %v1841 = vadd.f32 %v1827, %v1840
    %1842 = vdwg.mxu0
    %1843 = vmatpush.bf16.msra.mxu0 %v1692
    %1844 = vmatpush.bf16.msra.mxu0 %v1691
    %1845 = vmatpush.bf16.msra.mxu0 %v1690
    %1846 = vmatpush.bf16.msra.mxu0 %v1689
    %1847 = vmatpush.bf16.msra.mxu0 %v1688
    %1848 = vmatpush.bf16.msra.mxu0 %v1687
    %1849 = vmatpush.bf16.msra.mxu0 %v1686
    %1850 = vmatpush.bf16.msra.mxu0 %v1685
    %1851 = vmatmul.bf16.gmra.mxu0 %v1383
    %v1852 = vpop.f32.mrf.mxu0
    %v1853 = vadd.f32 %v1839, %v1852
    %v1854 = vpop.f32.mrf.mxu0
    %v1855 = vadd.f32 %v1841, %v1854
    %1856 = vdwg.mxu0
    %1857 = vmatpush.bf16.msra.mxu0 %v1700
    %1858 = vmatpush.bf16.msra.mxu0 %v1699
    %1859 = vmatpush.bf16.msra.mxu0 %v1698
    %1860 = vmatpush.bf16.msra.mxu0 %v1697
    %1861 = vmatpush.bf16.msra.mxu0 %v1696
    %1862 = vmatpush.bf16.msra.mxu0 %v1695
    %1863 = vmatpush.bf16.msra.mxu0 %v1694
    %1864 = vmatpush.bf16.msra.mxu0 %v1693
    %1865 = vmatmul.bf16.gmra.mxu0 %v1384
    %v1866 = vpop.f32.mrf.mxu0
    %v1867 = vadd.f32 %v1853, %v1866
    %v1868 = vpop.f32.mrf.mxu0
    %v1869 = vadd.f32 %v1855, %v1868
    %1870 = vdwg.mxu0
    %1871 = vmatpush.bf16.msra.mxu0 %v1708
    %1872 = vmatpush.bf16.msra.mxu0 %v1707
    %1873 = vmatpush.bf16.msra.mxu0 %v1706
    %1874 = vmatpush.bf16.msra.mxu0 %v1705
    %1875 = vmatpush.bf16.msra.mxu0 %v1704
    %1876 = vmatpush.bf16.msra.mxu0 %v1703
    %1877 = vmatpush.bf16.msra.mxu0 %v1702
    %1878 = vmatpush.bf16.msra.mxu0 %v1701
    %1879 = vmatmul.bf16.gmra.mxu0 %v1385
    %v1880 = vpop.f32.mrf.mxu0
    %v1881 = vadd.f32 %v1867, %v1880
    %v1882 = vpop.f32.mrf.mxu0
    %v1883 = vadd.f32 %v1869, %v1882
    %1884 = vdwg.mxu0
    %v1885 = vld [vmem:[%s1] sm:$0xff]
    %v1886 = vld [vmem:[%s1 + $0x8] sm:$0xff]
    %v1887 = vld [vmem:[%s1 + $0x10] sm:$0xff]
    %v1888 = vld [vmem:[%s1 + $0x18] sm:$0xff]
    %v1889 = vld [vmem:[%s9] sm:$0xff]
    %v1890 = vld [vmem:[%s9 + $0x8] sm:$0xff]
    %v1891 = vld [vmem:[%s9 + $0x10] sm:$0xff]
    %v1892 = vld [vmem:[%s9 + $0x18] sm:$0xff]
    %v1893 = vld [vmem:[#allocation11] sm:$0xff]
    %v1894 = vld [vmem:[#allocation11 + $0x8] sm:$0xff]
    %v1895 = vld [vmem:[#allocation11 + $0x10] sm:$0xff]
    %v1896 = vld [vmem:[#allocation11 + $0x18] sm:$0xff]
    %v1897 = vld [vmem:[#allocation11 + $0x20] sm:$0xff]
    %v1898 = vld [vmem:[#allocation11 + $0x28] sm:$0xff]
    %v1899 = vld [vmem:[#allocation11 + $0x30] sm:$0xff]
    %v1900 = vld [vmem:[#allocation11 + $0x38] sm:$0xff]
    %v1901 = vld [vmem:[#allocation11 + $0x40] sm:$0xff]
    %v1902 = vld [vmem:[#allocation11 + $0x48] sm:$0xff]
    %v1903 = vld [vmem:[#allocation11 + $0x50] sm:$0xff]
    %v1904 = vld [vmem:[#allocation11 + $0x58] sm:$0xff]
    %v1905 = vld [vmem:[#allocation11 + $0x60] sm:$0xff]
    %v1906 = vld [vmem:[#allocation11 + $0x68] sm:$0xff]
    %v1907 = vld [vmem:[#allocation11 + $0x70] sm:$0xff]
    %v1908 = vld [vmem:[#allocation11 + $0x78] sm:$0xff]
    %v1909 = vld [vmem:[#allocation11 + $0x80] sm:$0xff]
    %v1910 = vld [vmem:[#allocation11 + $0x88] sm:$0xff]
    %v1911 = vld [vmem:[#allocation11 + $0x90] sm:$0xff]
    %v1912 = vld [vmem:[#allocation11 + $0x98] sm:$0xff]
    %v1913 = vld [vmem:[#allocation11 + $0xa0] sm:$0xff]
    %v1914 = vld [vmem:[#allocation11 + $0xa8] sm:$0xff]
    %v1915 = vld [vmem:[#allocation11 + $0xb0] sm:$0xff]
    %v1916 = vld [vmem:[#allocation11 + $0xb8] sm:$0xff]
    %v1917 = vld [vmem:[#allocation11 + $0xc0] sm:$0xff]
    %v1918 = vld [vmem:[#allocation11 + $0xc8] sm:$0xff]
    %v1919 = vld [vmem:[#allocation11 + $0xd0] sm:$0xff]
    %v1920 = vld [vmem:[#allocation11 + $0xd8] sm:$0xff]
    %v1921 = vld [vmem:[#allocation11 + $0xe0] sm:$0xff]
    %v1922 = vld [vmem:[#allocation11 + $0xe8] sm:$0xff]
    %v1923 = vld [vmem:[#allocation11 + $0xf0] sm:$0xff]
    %v1924 = vld [vmem:[#allocation11 + $0xf8] sm:$0xff]
    %v1925 = vld [vmem:[#allocation13] sm:$0xf]
    %v1926 = vld [vmem:[#allocation14] sm:$0xff]
    %v1927 = vld [vmem:[#allocation14 + $0x8] sm:$0xff]
    %v1928 = vld [vmem:[#allocation14 + $0x10] sm:$0xff]
    %v1929 = vld [vmem:[#allocation14 + $0x18] sm:$0xff]
    %v1930 = vld [vmem:[#allocation14 + $0x20] sm:$0xff]
    %v1931 = vld [vmem:[#allocation14 + $0x28] sm:$0xff]
    %v1932 = vld [vmem:[#allocation14 + $0x30] sm:$0xff]
    %v1933 = vld [vmem:[#allocation14 + $0x38] sm:$0xff]
    %v1934 = vld [vmem:[#allocation14 + $0x40] sm:$0xff]
    %v1935 = vld [vmem:[#allocation14 + $0x48] sm:$0xff]
    %v1936 = vld [vmem:[#allocation14 + $0x50] sm:$0xff]
    %v1937 = vld [vmem:[#allocation14 + $0x58] sm:$0xff]
    %v1938 = vld [vmem:[#allocation14 + $0x60] sm:$0xff]
    %v1939 = vld [vmem:[#allocation14 + $0x68] sm:$0xff]
    %v1940 = vld [vmem:[#allocation14 + $0x70] sm:$0xff]
    %v1941 = vld [vmem:[#allocation14 + $0x78] sm:$0xff]
    %v1942 = vld [vmem:[#allocation14 + $0x80] sm:$0xff]
    %v1943 = vld [vmem:[#allocation14 + $0x88] sm:$0xff]
    %v1944 = vld [vmem:[#allocation14 + $0x90] sm:$0xff]
    %v1945 = vld [vmem:[#allocation14 + $0x98] sm:$0xff]
    %v1946 = vld [vmem:[#allocation14 + $0xa0] sm:$0xff]
    %v1947 = vld [vmem:[#allocation14 + $0xa8] sm:$0xff]
    %v1948 = vld [vmem:[#allocation14 + $0xb0] sm:$0xff]
    %v1949 = vld [vmem:[#allocation14 + $0xb8] sm:$0xff]
    %v1950 = vld [vmem:[#allocation14 + $0xc0] sm:$0xff]
    %v1951 = vld [vmem:[#allocation14 + $0xc8] sm:$0xff]
    %v1952 = vld [vmem:[#allocation14 + $0xd0] sm:$0xff]
    %v1953 = vld [vmem:[#allocation14 + $0xd8] sm:$0xff]
    %v1954 = vld [vmem:[#allocation14 + $0xe0] sm:$0xff]
    %v1955 = vld [vmem:[#allocation14 + $0xe8] sm:$0xff]
    %v1956 = vld [vmem:[#allocation14 + $0xf0] sm:$0xff]
    %v1957 = vld [vmem:[#allocation14 + $0xf8] sm:$0xff]
    %v1958 = vld [vmem:[#allocation14 + $0x100] sm:$0xff]
    %v1959 = vld [vmem:[#allocation14 + $0x108] sm:$0xff]
    %v1960 = vld [vmem:[#allocation14 + $0x110] sm:$0xff]
    %v1961 = vld [vmem:[#allocation14 + $0x118] sm:$0xff]
    %v1962 = vld [vmem:[#allocation14 + $0x120] sm:$0xff]
    %v1963 = vld [vmem:[#allocation14 + $0x128] sm:$0xff]
    %v1964 = vld [vmem:[#allocation14 + $0x130] sm:$0xff]
    %v1965 = vld [vmem:[#allocation14 + $0x138] sm:$0xff]
    %v1966 = vld [vmem:[#allocation14 + $0x140] sm:$0xff]
    %v1967 = vld [vmem:[#allocation14 + $0x148] sm:$0xff]
    %v1968 = vld [vmem:[#allocation14 + $0x150] sm:$0xff]
    %v1969 = vld [vmem:[#allocation14 + $0x158] sm:$0xff]
    %v1970 = vld [vmem:[#allocation14 + $0x160] sm:$0xff]
    %v1971 = vld [vmem:[#allocation14 + $0x168] sm:$0xff]
    %v1972 = vld [vmem:[#allocation14 + $0x170] sm:$0xff]
    %v1973 = vld [vmem:[#allocation14 + $0x178] sm:$0xff]
    %v1974 = vld [vmem:[#allocation14 + $0x180] sm:$0xff]
    %v1975 = vld [vmem:[#allocation14 + $0x188] sm:$0xff]
    %v1976 = vld [vmem:[#allocation14 + $0x190] sm:$0xff]
    %v1977 = vld [vmem:[#allocation14 + $0x198] sm:$0xff]
    %v1978 = vld [vmem:[#allocation14 + $0x1a0] sm:$0xff]
    %v1979 = vld [vmem:[#allocation14 + $0x1a8] sm:$0xff]
    %v1980 = vld [vmem:[#allocation14 + $0x1b0] sm:$0xff]
    %v1981 = vld [vmem:[#allocation14 + $0x1b8] sm:$0xff]
    %v1982 = vld [vmem:[#allocation14 + $0x1c0] sm:$0xff]
    %v1983 = vld [vmem:[#allocation14 + $0x1c8] sm:$0xff]
    %v1984 = vld [vmem:[#allocation14 + $0x1d0] sm:$0xff]
    %v1985 = vld [vmem:[#allocation14 + $0x1d8] sm:$0xff]
    %v1986 = vld [vmem:[#allocation14 + $0x1e0] sm:$0xff]
    %v1987 = vld [vmem:[#allocation14 + $0x1e8] sm:$0xff]
    %v1988 = vld [vmem:[#allocation14 + $0x1f0] sm:$0xff]
    %v1989 = vld [vmem:[#allocation14 + $0x1f8] sm:$0xff]
    %v1990 = vld [vmem:[%s13] sm:$0xff]
    %v1991 = vld [vmem:[#allocation16] sm:$0xf]
    %v1992 = vld [vmem:[#allocation16 + $0x4] sm:$0xf]
    %v1993 = vld [vmem:[#allocation16 + $0x8] sm:$0xf]
    %v1994 = vld [vmem:[#allocation16 + $0xc] sm:$0xf]
    %v1995 = vld [vmem:[#allocation16 + $0x10] sm:$0xf]
    %v1996 = vld [vmem:[#allocation16 + $0x14] sm:$0xf]
    %v1997 = vld [vmem:[#allocation16 + $0x18] sm:$0xf]
    %v1998 = vld [vmem:[#allocation16 + $0x1c] sm:$0xf]
    %v1999 = vld [vmem:[#allocation16 + $0x20] sm:$0xf]
    %v2000 = vld [vmem:[#allocation16 + $0x24] sm:$0xf]
    %v2001 = vld [vmem:[#allocation16 + $0x28] sm:$0xf]
    %v2002 = vld [vmem:[#allocation16 + $0x2c] sm:$0xf]
    %v2003 = vld [vmem:[#allocation16 + $0x30] sm:$0xf]
    %v2004 = vld [vmem:[#allocation16 + $0x34] sm:$0xf]
    %v2005 = vld [vmem:[#allocation16 + $0x38] sm:$0xf]
    %v2006 = vld [vmem:[#allocation16 + $0x3c] sm:$0xf]
    %v2007 = vld [vmem:[#allocation16 + $0x40] sm:$0xf]
    %v2008 = vld [vmem:[#allocation16 + $0x44] sm:$0xf]
    %v2009 = vld [vmem:[#allocation16 + $0x48] sm:$0xf]
    %v2010 = vld [vmem:[#allocation16 + $0x4c] sm:$0xf]
    %v2011 = vld [vmem:[#allocation16 + $0x50] sm:$0xf]
    %v2012 = vld [vmem:[#allocation16 + $0x54] sm:$0xf]
    %v2013 = vld [vmem:[#allocation16 + $0x58] sm:$0xf]
    %v2014 = vld [vmem:[#allocation16 + $0x5c] sm:$0xf]
    %v2015 = vld [vmem:[#allocation16 + $0x60] sm:$0xf]
    %v2016 = vld [vmem:[#allocation16 + $0x64] sm:$0xf]
    %v2017 = vld [vmem:[#allocation16 + $0x68] sm:$0xf]
    %v2018 = vld [vmem:[#allocation16 + $0x6c] sm:$0xf]
    %v2019 = vld [vmem:[#allocation16 + $0x70] sm:$0xf]
    %v2020 = vld [vmem:[#allocation16 + $0x74] sm:$0xf]
    %v2021 = vld [vmem:[#allocation16 + $0x78] sm:$0xf]
    %v2022 = vld [vmem:[#allocation16 + $0x7c] sm:$0xf]
    %v2023 = vld [vmem:[#allocation16 + $0x80] sm:$0xf]
    %v2024 = vld [vmem:[#allocation16 + $0x84] sm:$0xf]
    %v2025 = vld [vmem:[#allocation16 + $0x88] sm:$0xf]
    %v2026 = vld [vmem:[#allocation16 + $0x8c] sm:$0xf]
    %v2027 = vld [vmem:[#allocation16 + $0x90] sm:$0xf]
    %v2028 = vld [vmem:[#allocation16 + $0x94] sm:$0xf]
    %v2029 = vld [vmem:[#allocation16 + $0x98] sm:$0xf]
    %v2030 = vld [vmem:[#allocation16 + $0x9c] sm:$0xf]
    %v2031 = vld [vmem:[#allocation16 + $0xa0] sm:$0xf]
    %v2032 = vld [vmem:[#allocation16 + $0xa4] sm:$0xf]
    %v2033 = vld [vmem:[#allocation16 + $0xa8] sm:$0xf]
    %v2034 = vld [vmem:[#allocation16 + $0xac] sm:$0xf]
    %v2035 = vld [vmem:[#allocation16 + $0xb0] sm:$0xf]
    %v2036 = vld [vmem:[#allocation16 + $0xb4] sm:$0xf]
    %v2037 = vld [vmem:[#allocation16 + $0xb8] sm:$0xf]
    %v2038 = vld [vmem:[#allocation16 + $0xbc] sm:$0xf]
    %v2039 = vld [vmem:[#allocation16 + $0xc0] sm:$0xf]
    %v2040 = vld [vmem:[#allocation16 + $0xc4] sm:$0xf]
    %v2041 = vld [vmem:[#allocation16 + $0xc8] sm:$0xf]
    %v2042 = vld [vmem:[#allocation16 + $0xcc] sm:$0xf]
    %v2043 = vld [vmem:[#allocation16 + $0xd0] sm:$0xf]
    %v2044 = vld [vmem:[#allocation16 + $0xd4] sm:$0xf]
    %v2045 = vld [vmem:[#allocation16 + $0xd8] sm:$0xf]
    %v2046 = vld [vmem:[#allocation16 + $0xdc] sm:$0xf]
    %v2047 = vld [vmem:[#allocation16 + $0xe0] sm:$0xf]
    %v2048 = vld [vmem:[#allocation16 + $0xe4] sm:$0xf]
    %v2049 = vld [vmem:[#allocation16 + $0xe8] sm:$0xf]
    %v2050 = vld [vmem:[#allocation16 + $0xec] sm:$0xf]
    %v2051 = vld [vmem:[#allocation16 + $0xf0] sm:$0xf]
    %v2052 = vld [vmem:[#allocation16 + $0xf4] sm:$0xf]
    %v2053 = vld [vmem:[#allocation16 + $0xf8] sm:$0xf]
    %v2054 = vld [vmem:[#allocation16 + $0xfc] sm:$0xf]
    %v2055 = vld [vmem:[#allocation16 + $0x100] sm:$0xf]
    %v2056 = vld [vmem:[#allocation16 + $0x104] sm:$0xf]
    %v2057 = vld [vmem:[#allocation16 + $0x108] sm:$0xf]
    %v2058 = vld [vmem:[#allocation16 + $0x10c] sm:$0xf]
    %v2059 = vld [vmem:[#allocation16 + $0x110] sm:$0xf]
    %v2060 = vld [vmem:[#allocation16 + $0x114] sm:$0xf]
    %v2061 = vld [vmem:[#allocation16 + $0x118] sm:$0xf]
    %v2062 = vld [vmem:[#allocation16 + $0x11c] sm:$0xf]
    %v2063 = vld [vmem:[#allocation16 + $0x120] sm:$0xf]
    %v2064 = vld [vmem:[#allocation16 + $0x124] sm:$0xf]
    %v2065 = vld [vmem:[#allocation16 + $0x128] sm:$0xf]
    %v2066 = vld [vmem:[#allocation16 + $0x12c] sm:$0xf]
    %v2067 = vld [vmem:[#allocation16 + $0x130] sm:$0xf]
    %v2068 = vld [vmem:[#allocation16 + $0x134] sm:$0xf]
    %v2069 = vld [vmem:[#allocation16 + $0x138] sm:$0xf]
    %v2070 = vld [vmem:[#allocation16 + $0x13c] sm:$0xf]
    %v2071 = vld [vmem:[#allocation16 + $0x140] sm:$0xf]
    %v2072 = vld [vmem:[#allocation16 + $0x144] sm:$0xf]
    %v2073 = vld [vmem:[#allocation16 + $0x148] sm:$0xf]
    %v2074 = vld [vmem:[#allocation16 + $0x14c] sm:$0xf]
    %v2075 = vld [vmem:[#allocation16 + $0x150] sm:$0xf]
    %v2076 = vld [vmem:[#allocation16 + $0x154] sm:$0xf]
    %v2077 = vld [vmem:[#allocation16 + $0x158] sm:$0xf]
    %v2078 = vld [vmem:[#allocation16 + $0x15c] sm:$0xf]
    %v2079 = vld [vmem:[#allocation16 + $0x160] sm:$0xf]
    %v2080 = vld [vmem:[#allocation16 + $0x164] sm:$0xf]
    %v2081 = vld [vmem:[#allocation16 + $0x168] sm:$0xf]
    %v2082 = vld [vmem:[#allocation16 + $0x16c] sm:$0xf]
    %v2083 = vld [vmem:[#allocation16 + $0x170] sm:$0xf]
    %v2084 = vld [vmem:[#allocation16 + $0x174] sm:$0xf]
    %v2085 = vld [vmem:[#allocation16 + $0x178] sm:$0xf]
    %v2086 = vld [vmem:[#allocation16 + $0x17c] sm:$0xf]
    %v2087 = vld [vmem:[#allocation16 + $0x180] sm:$0xf]
    %v2088 = vld [vmem:[#allocation16 + $0x184] sm:$0xf]
    %v2089 = vld [vmem:[#allocation16 + $0x188] sm:$0xf]
    %v2090 = vld [vmem:[#allocation16 + $0x18c] sm:$0xf]
    %v2091 = vld [vmem:[#allocation16 + $0x190] sm:$0xf]
    %v2092 = vld [vmem:[#allocation16 + $0x194] sm:$0xf]
    %v2093 = vld [vmem:[#allocation16 + $0x198] sm:$0xf]
    %v2094 = vld [vmem:[#allocation16 + $0x19c] sm:$0xf]
    %v2095 = vld [vmem:[#allocation16 + $0x1a0] sm:$0xf]
    %v2096 = vld [vmem:[#allocation16 + $0x1a4] sm:$0xf]
    %v2097 = vld [vmem:[#allocation16 + $0x1a8] sm:$0xf]
    %v2098 = vld [vmem:[#allocation16 + $0x1ac] sm:$0xf]
    %v2099 = vld [vmem:[#allocation16 + $0x1b0] sm:$0xf]
    %v2100 = vld [vmem:[#allocation16 + $0x1b4] sm:$0xf]
    %v2101 = vld [vmem:[#allocation16 + $0x1b8] sm:$0xf]
    %v2102 = vld [vmem:[#allocation16 + $0x1bc] sm:$0xf]
    %v2103 = vld [vmem:[#allocation16 + $0x1c0] sm:$0xf]
    %v2104 = vld [vmem:[#allocation16 + $0x1c4] sm:$0xf]
    %v2105 = vld [vmem:[#allocation16 + $0x1c8] sm:$0xf]
    %v2106 = vld [vmem:[#allocation16 + $0x1cc] sm:$0xf]
    %v2107 = vld [vmem:[#allocation16 + $0x1d0] sm:$0xf]
    %v2108 = vld [vmem:[#allocation16 + $0x1d4] sm:$0xf]
    %v2109 = vld [vmem:[#allocation16 + $0x1d8] sm:$0xf]
    %v2110 = vld [vmem:[#allocation16 + $0x1dc] sm:$0xf]
    %v2111 = vld [vmem:[#allocation16 + $0x1e0] sm:$0xf]
    %v2112 = vld [vmem:[#allocation16 + $0x1e4] sm:$0xf]
    %v2113 = vld [vmem:[#allocation16 + $0x1e8] sm:$0xf]
    %v2114 = vld [vmem:[#allocation16 + $0x1ec] sm:$0xf]
    %v2115 = vld [vmem:[#allocation16 + $0x1f0] sm:$0xf]
    %v2116 = vld [vmem:[#allocation16 + $0x1f4] sm:$0xf]
    %v2117 = vld [vmem:[#allocation16 + $0x1f8] sm:$0xf]
    %v2118 = vld [vmem:[#allocation16 + $0x1fc] sm:$0xf]
    %v2119 = vld [vmem:[%s15] sm:$0x1]
    %v2120 = vpack.c.bf16 %v1886, %v1885
    %v2121 = vpack.c.bf16 %v1888, %v1887
    %v2123 = vperm.slane %v1925, 0
    %v2124 = vperm.slane %v1925, 1
    %v2125 = vperm.slane %v1925, 2
    %v2126 = vperm.slane %v1925, 3
    %v2135 = vunpack.c.l.b16 %v1889
    %v2136 = vunpack.c.h.b16 %v1889
    %v2137 = vunpack.c.l.b16 %v1890
    %v2138 = vunpack.c.h.b16 %v1890
    %v2139 = vunpack.c.l.b16 %v1891
    %v2140 = vunpack.c.h.b16 %v1891
    %v2141 = vunpack.c.l.b16 %v1892
    %v2142 = vunpack.c.h.b16 %v1892
    %v2143 = vpack.c.b16 %v2139, %v2135
    %v2144 = vpack.c.b16 %v2140, %v2136
    %v2145 = vpack.c.b16 %v2141, %v2137
    %v2146 = vpack.c.b16 %v2142, %v2138
    %vm2151 = vcmask 130048
    %v2153 = vsel %vm2151, %v2120, 0
    %v2156 = vsel %vm2151, %v2121, 0
    %2158 = vmatpush.bf16.msra.mxu0 0
    %2159 = vmatpush.bf16.msra.mxu0 0
    %2160 = vmatpush.bf16.msra.mxu0 0
    %2161 = vmatpush.bf16.msra.mxu0 0
    %2162 = vmatpush.bf16.msra.mxu0 0
    %2163 = vmatpush.bf16.msra.mxu0 0
    %2164 = vmatpush.bf16.msra.mxu0 0
    %2165 = vmatpush.bf16.msra.mxu0 %v2143
    %2166 = vmatmul.bf16.gmra.mxu0 %v2153
    %v2167 = vpop.f32.mrf.mxu0
    %v2168 = vadd.f32 %v2123, %v2167
    %v2169 = vpop.f32.mrf.mxu0
    %v2170 = vadd.f32 %v2123, %v2169
    %2171 = vmatmul.bf16.gmra.mxu0 %v2156
    %v2172 = vpop.f32.mrf.mxu0
    %v2173 = vadd.f32 %v2123, %v2172
    %v2174 = vpop.f32.mrf.mxu0
    %v2175 = vadd.f32 %v2123, %v2174
    %2176 = vdwg.mxu0
    %2177 = vmatpush.bf16.msra.mxu0 0
    %2178 = vmatpush.bf16.msra.mxu0 0
    %2179 = vmatpush.bf16.msra.mxu0 0
    %2180 = vmatpush.bf16.msra.mxu0 0
    %2181 = vmatpush.bf16.msra.mxu0 0
    %2182 = vmatpush.bf16.msra.mxu0 0
    %2183 = vmatpush.bf16.msra.mxu0 0
    %2184 = vmatpush.bf16.msra.mxu0 %v2144
    %2185 = vmatmul.bf16.gmra.mxu0 %v2153
    %v2186 = vpop.f32.mrf.mxu0
    %v2187 = vadd.f32 %v2124, %v2186
    %v2188 = vpop.f32.mrf.mxu0
    %v2189 = vadd.f32 %v2124, %v2188
    %2190 = vmatmul.bf16.gmra.mxu0 %v2156
    %v2191 = vpop.f32.mrf.mxu0
    %v2192 = vadd.f32 %v2124, %v2191
    %v2193 = vpop.f32.mrf.mxu0
    %v2194 = vadd.f32 %v2124, %v2193
    %2195 = vdwg.mxu0
    %2196 = vmatpush.bf16.msra.mxu0 0
    %2197 = vmatpush.bf16.msra.mxu0 0
    %2198 = vmatpush.bf16.msra.mxu0 0
    %2199 = vmatpush.bf16.msra.mxu0 0
    %2200 = vmatpush.bf16.msra.mxu0 0
    %2201 = vmatpush.bf16.msra.mxu0 0
    %2202 = vmatpush.bf16.msra.mxu0 0
    %2203 = vmatpush.bf16.msra.mxu0 %v2145
    %2204 = vmatmul.bf16.gmra.mxu0 %v2153
    %v2205 = vpop.f32.mrf.mxu0
    %v2206 = vadd.f32 %v2125, %v2205
    %v2207 = vpop.f32.mrf.mxu0
    %v2208 = vadd.f32 %v2125, %v2207
    %2209 = vmatmul.bf16.gmra.mxu0 %v2156
    %v2210 = vpop.f32.mrf.mxu0
    %v2211 = vadd.f32 %v2125, %v2210
    %v2212 = vpop.f32.mrf.mxu0
    %v2213 = vadd.f32 %v2125, %v2212
    %2214 = vdwg.mxu0
    %2215 = vmatpush.bf16.msra.mxu0 0
    %2216 = vmatpush.bf16.msra.mxu0 0
    %2217 = vmatpush.bf16.msra.mxu0 0
    %2218 = vmatpush.bf16.msra.mxu0 0
    %2219 = vmatpush.bf16.msra.mxu0 0
    %2220 = vmatpush.bf16.msra.mxu0 0
    %2221 = vmatpush.bf16.msra.mxu0 0
    %2222 = vmatpush.bf16.msra.mxu0 %v2146
    %2223 = vmatmul.bf16.gmra.mxu0 %v2153
    %v2224 = vpop.f32.mrf.mxu0
    %v2225 = vadd.f32 %v2126, %v2224
    %v2226 = vpop.f32.mrf.mxu0
    %v2227 = vadd.f32 %v2126, %v2226
    %2228 = vmatmul.bf16.gmra.mxu0 %v2156
    %v2229 = vpop.f32.mrf.mxu0
    %v2230 = vadd.f32 %v2126, %v2229
    %v2231 = vpop.f32.mrf.mxu0
    %v2232 = vadd.f32 %v2126, %v2231
    %2233 = vdwg.mxu0
    %v2266 = vunpack.c.l.b16 %v1893
    %v2267 = vunpack.c.h.b16 %v1893
    %v2268 = vunpack.c.l.b16 %v1894
    %v2269 = vunpack.c.h.b16 %v1894
    %v2270 = vunpack.c.l.b16 %v1895
    %v2271 = vunpack.c.h.b16 %v1895
    %v2272 = vunpack.c.l.b16 %v1896
    %v2273 = vunpack.c.h.b16 %v1896
    %v2274 = vunpack.c.l.b16 %v1897
    %v2275 = vunpack.c.h.b16 %v1897
    %v2276 = vunpack.c.l.b16 %v1898
    %v2277 = vunpack.c.h.b16 %v1898
    %v2278 = vunpack.c.l.b16 %v1899
    %v2279 = vunpack.c.h.b16 %v1899
    %v2280 = vunpack.c.l.b16 %v1900
    %v2281 = vunpack.c.h.b16 %v1900
    %v2282 = vunpack.c.l.b16 %v1901
    %v2283 = vunpack.c.h.b16 %v1901
    %v2284 = vunpack.c.l.b16 %v1902
    %v2285 = vunpack.c.h.b16 %v1902
    %v2286 = vunpack.c.l.b16 %v1903
    %v2287 = vunpack.c.h.b16 %v1903
    %v2288 = vunpack.c.l.b16 %v1904
    %v2289 = vunpack.c.h.b16 %v1904
    %v2290 = vunpack.c.l.b16 %v1905
    %v2291 = vunpack.c.h.b16 %v1905
    %v2292 = vunpack.c.l.b16 %v1906
    %v2293 = vunpack.c.h.b16 %v1906
    %v2294 = vunpack.c.l.b16 %v1907
    %v2295 = vunpack.c.h.b16 %v1907
    %v2296 = vunpack.c.l.b16 %v1908
    %v2297 = vunpack.c.h.b16 %v1908
    %v2298 = vunpack.c.l.b16 %v1909
    %v2299 = vunpack.c.h.b16 %v1909
    %v2300 = vunpack.c.l.b16 %v1910
    %v2301 = vunpack.c.h.b16 %v1910
    %v2302 = vunpack.c.l.b16 %v1911
    %v2303 = vunpack.c.h.b16 %v1911
    %v2304 = vunpack.c.l.b16 %v1912
    %v2305 = vunpack.c.h.b16 %v1912
    %v2306 = vunpack.c.l.b16 %v1913
    %v2307 = vunpack.c.h.b16 %v1913
    %v2308 = vunpack.c.l.b16 %v1914
    %v2309 = vunpack.c.h.b16 %v1914
    %v2310 = vunpack.c.l.b16 %v1915
    %v2311 = vunpack.c.h.b16 %v1915
    %v2312 = vunpack.c.l.b16 %v1916
    %v2313 = vunpack.c.h.b16 %v1916
    %v2314 = vunpack.c.l.b16 %v1917
    %v2315 = vunpack.c.h.b16 %v1917
    %v2316 = vunpack.c.l.b16 %v1918
    %v2317 = vunpack.c.h.b16 %v1918
    %v2318 = vunpack.c.l.b16 %v1919
    %v2319 = vunpack.c.h.b16 %v1919
    %v2320 = vunpack.c.l.b16 %v1920
    %v2321 = vunpack.c.h.b16 %v1920
    %v2322 = vunpack.c.l.b16 %v1921
    %v2323 = vunpack.c.h.b16 %v1921
    %v2324 = vunpack.c.l.b16 %v1922
    %v2325 = vunpack.c.h.b16 %v1922
    %v2326 = vunpack.c.l.b16 %v1923
    %v2327 = vunpack.c.h.b16 %v1923
    %v2328 = vunpack.c.l.b16 %v1924
    %v2329 = vunpack.c.h.b16 %v1924
    %v2330 = vpack.c.b16 %v2270, %v2266
    %v2331 = vpack.c.b16 %v2271, %v2267
    %v2332 = vpack.c.b16 %v2272, %v2268
    %v2333 = vpack.c.b16 %v2273, %v2269
    %v2334 = vpack.c.b16 %v2278, %v2274
    %v2335 = vpack.c.b16 %v2279, %v2275
    %v2336 = vpack.c.b16 %v2280, %v2276
    %v2337 = vpack.c.b16 %v2281, %v2277
    %v2338 = vpack.c.b16 %v2286, %v2282
    %v2339 = vpack.c.b16 %v2287, %v2283
    %v2340 = vpack.c.b16 %v2288, %v2284
    %v2341 = vpack.c.b16 %v2289, %v2285
    %v2342 = vpack.c.b16 %v2294, %v2290
    %v2343 = vpack.c.b16 %v2295, %v2291
    %v2344 = vpack.c.b16 %v2296, %v2292
    %v2345 = vpack.c.b16 %v2297, %v2293
    %v2346 = vpack.c.b16 %v2302, %v2298
    %v2347 = vpack.c.b16 %v2303, %v2299
    %v2348 = vpack.c.b16 %v2304, %v2300
    %v2349 = vpack.c.b16 %v2305, %v2301
    %v2350 = vpack.c.b16 %v2310, %v2306
    %v2351 = vpack.c.b16 %v2311, %v2307
    %v2352 = vpack.c.b16 %v2312, %v2308
    %v2353 = vpack.c.b16 %v2313, %v2309
    %v2354 = vpack.c.b16 %v2318, %v2314
    %v2355 = vpack.c.b16 %v2319, %v2315
    %v2356 = vpack.c.b16 %v2320, %v2316
    %v2357 = vpack.c.b16 %v2321, %v2317
    %v2358 = vpack.c.b16 %v2326, %v2322
    %v2359 = vpack.c.b16 %v2327, %v2323
    %v2360 = vpack.c.b16 %v2328, %v2324
    %v2361 = vpack.c.b16 %v2329, %v2325
    %2394 = vmatpush.bf16.msra.mxu0 %v2358
    %2395 = vmatpush.bf16.msra.mxu0 %v2354
    %2396 = vmatpush.bf16.msra.mxu0 %v2350
    %2397 = vmatpush.bf16.msra.mxu0 %v2346
    %2398 = vmatpush.bf16.msra.mxu0 %v2342
    %2399 = vmatpush.bf16.msra.mxu0 %v2338
    %2400 = vmatpush.bf16.msra.mxu0 %v2334
    %2401 = vmatpush.bf16.msra.mxu0 %v2330
    %2402 = vmatmul.bf16.gmra.mxu0 0
    %v2403 = vpop.f32.mrf.mxu0
    %v2404 = vadd.f32 0.0, %v2403
    %v2405 = vpop.f32.mrf.mxu0
    %2406 = vdwg.mxu0
    %2407 = vmatpush.bf16.msra.mxu0 %v2359
    %2408 = vmatpush.bf16.msra.mxu0 %v2355
    %2409 = vmatpush.bf16.msra.mxu0 %v2351
    %2410 = vmatpush.bf16.msra.mxu0 %v2347
    %2411 = vmatpush.bf16.msra.mxu0 %v2343
    %2412 = vmatpush.bf16.msra.mxu0 %v2339
    %2413 = vmatpush.bf16.msra.mxu0 %v2335
    %2414 = vmatpush.bf16.msra.mxu0 %v2331
    %2415 = vmatmul.bf16.gmra.mxu0 0
    %v2416 = vpop.f32.mrf.mxu0
    %v2417 = vadd.f32 0.0, %v2416
    %v2418 = vpop.f32.mrf.mxu0
    %2419 = vdwg.mxu0
    %2420 = vmatpush.bf16.msra.mxu0 %v2360
    %2421 = vmatpush.bf16.msra.mxu0 %v2356
    %2422 = vmatpush.bf16.msra.mxu0 %v2352
    %2423 = vmatpush.bf16.msra.mxu0 %v2348
    %2424 = vmatpush.bf16.msra.mxu0 %v2344
    %2425 = vmatpush.bf16.msra.mxu0 %v2340
    %2426 = vmatpush.bf16.msra.mxu0 %v2336
    %2427 = vmatpush.bf16.msra.mxu0 %v2332
    %2428 = vmatmul.bf16.gmra.mxu0 0
    %v2429 = vpop.f32.mrf.mxu0
    %v2430 = vadd.f32 0.0, %v2429
    %v2431 = vpop.f32.mrf.mxu0
    %2432 = vdwg.mxu0
    %2433 = vmatpush.bf16.msra.mxu0 %v2361
    %2434 = vmatpush.bf16.msra.mxu0 %v2357
    %2435 = vmatpush.bf16.msra.mxu0 %v2353
    %2436 = vmatpush.bf16.msra.mxu0 %v2349
    %2437 = vmatpush.bf16.msra.mxu0 %v2345
    %2438 = vmatpush.bf16.msra.mxu0 %v2341
    %2439 = vmatpush.bf16.msra.mxu0 %v2337
    %2440 = vmatpush.bf16.msra.mxu0 %v2333
    %2441 = vmatmul.bf16.gmra.mxu0 0
    %v2442 = vpop.f32.mrf.mxu0
    %v2443 = vadd.f32 0.0, %v2442
    %v2444 = vpop.f32.mrf.mxu0
    %2445 = vdwg.mxu0
    %v2446 = vadd.f32 %v2168, %v2404
    %v2447 = vadd.f32 %v2187, %v2417
    %v2448 = vadd.f32 %v2206, %v2430
    %v2449 = vadd.f32 %v2225, %v2443
    %v2450 = vxor.u32 %v2446, 2147483648
    %v2451 = vmul.f32 %v2450, 1.442695
    %v2452 = vpow.pop %v2451
    %v2453 = vadd.f32 %v2452, 1.0
    %v2454 = vrcp.pop %v2453
    %v2455 = vmul.f32 %v2453, %v2454
    %v2456 = vsub.f32 1.0, %v2455
    %v2457 = vmul.f32 %v2454, %v2456
    %v2458 = vadd.f32 %v2454, %v2457
    %vm2459 = vweird.f32 %v2453
    %vm2460 = vweird.f32 %v2454
    %vm2461 = vmor %vm2459, %vm2460
    %v2462 = vsel %vm2461, %v2454, %v2458
    %v2463 = vand.u32 2147483647, %v2453
    %vm2464 = vcmp.eq.f32.partialorder %v2463, 8.507059e+37
    %v2465 = vand.u32 %v2453, 2147483648
    %v2466 = vor.u32 1.1754944e-38, %v2465
    %v2467 = vsel %vm2464, %v2466, %v2462
    %v2468 = vmul.f32 1.0, %v2467
    %v2469 = vxor.u32 %v2447, 2147483648
    %v2470 = vmul.f32 %v2469, 1.442695
    %v2471 = vpow.pop %v2470
    %v2472 = vadd.f32 %v2471, 1.0
    %v2473 = vrcp.pop %v2472
    %v2474 = vmul.f32 %v2472, %v2473
    %v2475 = vsub.f32 1.0, %v2474
    %v2476 = vmul.f32 %v2473, %v2475
    %v2477 = vadd.f32 %v2473, %v2476
    %vm2478 = vweird.f32 %v2472
    %vm2479 = vweird.f32 %v2473
    %vm2480 = vmor %vm2478, %vm2479
    %v2481 = vsel %vm2480, %v2473, %v2477
    %v2482 = vand.u32 2147483647, %v2472
    %vm2483 = vcmp.eq.f32.partialorder %v2482, 8.507059e+37
    %v2484 = vand.u32 %v2472, 2147483648
    %v2485 = vor.u32 1.1754944e-38, %v2484
    %v2486 = vsel %vm2483, %v2485, %v2481
    %v2487 = vmul.f32 1.0, %v2486
    %v2488 = vtanh.pop %v2448
    %v2489 = vxor.u32 %v2449, 2147483648
    %v2490 = vmul.f32 %v2489, 1.442695
    %v2491 = vpow.pop %v2490
    %v2492 = vadd.f32 %v2491, 1.0
    %v2493 = vrcp.pop %v2492
    %v2494 = vmul.f32 %v2492, %v2493
    %v2495 = vsub.f32 1.0, %v2494
    %v2496 = vmul.f32 %v2493, %v2495
    %v2497 = vadd.f32 %v2493, %v2496
    %vm2498 = vweird.f32 %v2492
    %vm2499 = vweird.f32 %v2493
    %vm2500 = vmor %vm2498, %vm2499
    %v2501 = vsel %vm2500, %v2493, %v2497
    %v2502 = vand.u32 2147483647, %v2492
    %vm2503 = vcmp.eq.f32.partialorder %v2502, 8.507059e+37
    %v2504 = vand.u32 %v2492, 2147483648
    %v2505 = vor.u32 1.1754944e-38, %v2504
    %v2506 = vsel %vm2503, %v2505, %v2501
    %v2507 = vmul.f32 1.0, %v2506
    %v2508 = vmul.f32 %v2487, 0.0
    %v2509 = vmul.f32 %v2468, %v2488
    %v2510 = vadd.f32 %v2508, %v2509
    %v2511 = vtanh.pop %v2510
    %v2512 = vmul.f32 %v2507, %v2511
    %v2513 = vpack.c.bf16 %v2512, %v2512
    %2514 = vmatpush.bf16.msra.mxu0 %v2358
    %2515 = vmatpush.bf16.msra.mxu0 %v2354
    %2516 = vmatpush.bf16.msra.mxu0 %v2350
    %2517 = vmatpush.bf16.msra.mxu0 %v2346
    %2518 = vmatpush.bf16.msra.mxu0 %v2342
    %2519 = vmatpush.bf16.msra.mxu0 %v2338
    %2520 = vmatpush.bf16.msra.mxu0 %v2334
    %2521 = vmatpush.bf16.msra.mxu0 %v2330
    %2522 = vmatmul.bf16.gmra.mxu0 %v2513
    %v2523 = vpop.f32.mrf.mxu0
    %v2524 = vadd.f32 0.0, %v2523
    %v2525 = vpop.f32.mrf.mxu0
    %2526 = vdwg.mxu0
    %2527 = vmatpush.bf16.msra.mxu0 %v2359
    %2528 = vmatpush.bf16.msra.mxu0 %v2355
    %2529 = vmatpush.bf16.msra.mxu0 %v2351
    %2530 = vmatpush.bf16.msra.mxu0 %v2347
    %2531 = vmatpush.bf16.msra.mxu0 %v2343
    %2532 = vmatpush.bf16.msra.mxu0 %v2339
    %2533 = vmatpush.bf16.msra.mxu0 %v2335
    %2534 = vmatpush.bf16.msra.mxu0 %v2331
    %2535 = vmatmul.bf16.gmra.mxu0 %v2513
    %v2536 = vpop.f32.mrf.mxu0
    %v2537 = vadd.f32 0.0, %v2536
    %v2538 = vpop.f32.mrf.mxu0
    %2539 = vdwg.mxu0
    %2540 = vmatpush.bf16.msra.mxu0 %v2360
    %2541 = vmatpush.bf16.msra.mxu0 %v2356
    %2542 = vmatpush.bf16.msra.mxu0 %v2352
    %2543 = vmatpush.bf16.msra.mxu0 %v2348
    %2544 = vmatpush.bf16.msra.mxu0 %v2344
    %2545 = vmatpush.bf16.msra.mxu0 %v2340
    %2546 = vmatpush.bf16.msra.mxu0 %v2336
    %2547 = vmatpush.bf16.msra.mxu0 %v2332
    %2548 = vmatmul.bf16.gmra.mxu0 %v2513
    %v2549 = vpop.f32.mrf.mxu0
    %v2550 = vadd.f32 0.0, %v2549
    %v2551 = vpop.f32.mrf.mxu0
    %2552 = vdwg.mxu0
    %2553 = vmatpush.bf16.msra.mxu0 %v2361
    %2554 = vmatpush.bf16.msra.mxu0 %v2357
    %2555 = vmatpush.bf16.msra.mxu0 %v2353
    %2556 = vmatpush.bf16.msra.mxu0 %v2349
    %2557 = vmatpush.bf16.msra.mxu0 %v2345
    %2558 = vmatpush.bf16.msra.mxu0 %v2341
    %2559 = vmatpush.bf16.msra.mxu0 %v2337
    %2560 = vmatpush.bf16.msra.mxu0 %v2333
    %2561 = vmatmul.bf16.gmra.mxu0 %v2513
    %v2562 = vpop.f32.mrf.mxu0
    %v2563 = vadd.f32 0.0, %v2562
    %v2564 = vpop.f32.mrf.mxu0
    %2565 = vdwg.mxu0
    %v2566 = vadd.f32 %v2170, %v2524
    %v2567 = vadd.f32 %v2189, %v2537
    %v2568 = vadd.f32 %v2208, %v2550
    %v2569 = vadd.f32 %v2227, %v2563
    %v2570 = vxor.u32 %v2566, 2147483648
    %v2571 = vmul.f32 %v2570, 1.442695
    %v2572 = vpow.pop %v2571
    %v2573 = vadd.f32 %v2572, 1.0
    %v2574 = vrcp.pop %v2573
    %v2575 = vmul.f32 %v2573, %v2574
    %v2576 = vsub.f32 1.0, %v2575
    %v2577 = vmul.f32 %v2574, %v2576
    %v2578 = vadd.f32 %v2574, %v2577
    %vm2579 = vweird.f32 %v2573
    %vm2580 = vweird.f32 %v2574
    %vm2581 = vmor %vm2579, %vm2580
    %v2582 = vsel %vm2581, %v2574, %v2578
    %v2583 = vand.u32 2147483647, %v2573
    %vm2584 = vcmp.eq.f32.partialorder %v2583, 8.507059e+37
    %v2585 = vand.u32 %v2573, 2147483648
    %v2586 = vor.u32 1.1754944e-38, %v2585
    %v2587 = vsel %vm2584, %v2586, %v2582
    %v2588 = vmul.f32 1.0, %v2587
    %v2589 = vxor.u32 %v2567, 2147483648
    %v2590 = vmul.f32 %v2589, 1.442695
    %v2591 = vpow.pop %v2590
    %v2592 = vadd.f32 %v2591, 1.0
    %v2593 = vrcp.pop %v2592
    %v2594 = vmul.f32 %v2592, %v2593
    %v2595 = vsub.f32 1.0, %v2594
    %v2596 = vmul.f32 %v2593, %v2595
    %v2597 = vadd.f32 %v2593, %v2596
    %vm2598 = vweird.f32 %v2592
    %vm2599 = vweird.f32 %v2593
    %vm2600 = vmor %vm2598, %vm2599
    %v2601 = vsel %vm2600, %v2593, %v2597
    %v2602 = vand.u32 2147483647, %v2592
    %vm2603 = vcmp.eq.f32.partialorder %v2602, 8.507059e+37
    %v2604 = vand.u32 %v2592, 2147483648
    %v2605 = vor.u32 1.1754944e-38, %v2604
    %v2606 = vsel %vm2603, %v2605, %v2601
    %v2607 = vmul.f32 1.0, %v2606
    %v2608 = vtanh.pop %v2568
    %v2609 = vxor.u32 %v2569, 2147483648
    %v2610 = vmul.f32 %v2609, 1.442695
    %v2611 = vpow.pop %v2610
    %v2612 = vadd.f32 %v2611, 1.0
    %v2613 = vrcp.pop %v2612
    %v2614 = vmul.f32 %v2612, %v2613
    %v2615 = vsub.f32 1.0, %v2614
    %v2616 = vmul.f32 %v2613, %v2615
    %v2617 = vadd.f32 %v2613, %v2616
    %vm2618 = vweird.f32 %v2612
    %vm2619 = vweird.f32 %v2613
    %vm2620 = vmor %vm2618, %vm2619
    %v2621 = vsel %vm2620, %v2613, %v2617
    %v2622 = vand.u32 2147483647, %v2612
    %vm2623 = vcmp.eq.f32.partialorder %v2622, 8.507059e+37
    %v2624 = vand.u32 %v2612, 2147483648
    %v2625 = vor.u32 1.1754944e-38, %v2624
    %v2626 = vsel %vm2623, %v2625, %v2621
    %v2627 = vmul.f32 1.0, %v2626
    %v2628 = vmul.f32 %v2607, %v2510
    %v2629 = vmul.f32 %v2588, %v2608
    %v2630 = vadd.f32 %v2628, %v2629
    %v2631 = vtanh.pop %v2630
    %v2632 = vmul.f32 %v2627, %v2631
    %v2633 = vpack.c.bf16 %v2632, %v2632
    %2634 = vmatpush.bf16.msra.mxu0 %v2358
    %2635 = vmatpush.bf16.msra.mxu0 %v2354
    %2636 = vmatpush.bf16.msra.mxu0 %v2350
    %2637 = vmatpush.bf16.msra.mxu0 %v2346
    %2638 = vmatpush.bf16.msra.mxu0 %v2342
    %2639 = vmatpush.bf16.msra.mxu0 %v2338
    %2640 = vmatpush.bf16.msra.mxu0 %v2334
    %2641 = vmatpush.bf16.msra.mxu0 %v2330
    %2642 = vmatmul.bf16.gmra.mxu0 %v2633
    %v2643 = vpop.f32.mrf.mxu0
    %v2644 = vadd.f32 0.0, %v2643
    %v2645 = vpop.f32.mrf.mxu0
    %2646 = vdwg.mxu0
    %2647 = vmatpush.bf16.msra.mxu0 %v2359
    %2648 = vmatpush.bf16.msra.mxu0 %v2355
    %2649 = vmatpush.bf16.msra.mxu0 %v2351
    %2650 = vmatpush.bf16.msra.mxu0 %v2347
    %2651 = vmatpush.bf16.msra.mxu0 %v2343
    %2652 = vmatpush.bf16.msra.mxu0 %v2339
    %2653 = vmatpush.bf16.msra.mxu0 %v2335
    %2654 = vmatpush.bf16.msra.mxu0 %v2331
    %2655 = vmatmul.bf16.gmra.mxu0 %v2633
    %v2656 = vpop.f32.mrf.mxu0
    %v2657 = vadd.f32 0.0, %v2656
    %v2658 = vpop.f32.mrf.mxu0
    %2659 = vdwg.mxu0
    %2660 = vmatpush.bf16.msra.mxu0 %v2360
    %2661 = vmatpush.bf16.msra.mxu0 %v2356
    %2662 = vmatpush.bf16.msra.mxu0 %v2352
    %2663 = vmatpush.bf16.msra.mxu0 %v2348
    %2664 = vmatpush.bf16.msra.mxu0 %v2344
    %2665 = vmatpush.bf16.msra.mxu0 %v2340
    %2666 = vmatpush.bf16.msra.mxu0 %v2336
    %2667 = vmatpush.bf16.msra.mxu0 %v2332
    %2668 = vmatmul.bf16.gmra.mxu0 %v2633
    %v2669 = vpop.f32.mrf.mxu0
    %v2670 = vadd.f32 0.0, %v2669
    %v2671 = vpop.f32.mrf.mxu0
    %2672 = vdwg.mxu0
    %2673 = vmatpush.bf16.msra.mxu0 %v2361
    %2674 = vmatpush.bf16.msra.mxu0 %v2357
    %2675 = vmatpush.bf16.msra.mxu0 %v2353
    %2676 = vmatpush.bf16.msra.mxu0 %v2349
    %2677 = vmatpush.bf16.msra.mxu0 %v2345
    %2678 = vmatpush.bf16.msra.mxu0 %v2341
    %2679 = vmatpush.bf16.msra.mxu0 %v2337
    %2680 = vmatpush.bf16.msra.mxu0 %v2333
    %2681 = vmatmul.bf16.gmra.mxu0 %v2633
    %v2682 = vpop.f32.mrf.mxu0
    %v2683 = vadd.f32 0.0, %v2682
    %v2684 = vpop.f32.mrf.mxu0
    %2685 = vdwg.mxu0
    %v2686 = vadd.f32 %v2173, %v2644
    %v2687 = vadd.f32 %v2192, %v2657
    %v2688 = vadd.f32 %v2211, %v2670
    %v2689 = vadd.f32 %v2230, %v2683
    %v2690 = vxor.u32 %v2686, 2147483648
    %v2691 = vmul.f32 %v2690, 1.442695
    %v2692 = vpow.pop %v2691
    %v2693 = vadd.f32 %v2692, 1.0
    %v2694 = vrcp.pop %v2693
    %v2695 = vmul.f32 %v2693, %v2694
    %v2696 = vsub.f32 1.0, %v2695
    %v2697 = vmul.f32 %v2694, %v2696
    %v2698 = vadd.f32 %v2694, %v2697
    %vm2699 = vweird.f32 %v2693
    %vm2700 = vweird.f32 %v2694
    %vm2701 = vmor %vm2699, %vm2700
    %v2702 = vsel %vm2701, %v2694, %v2698
    %v2703 = vand.u32 2147483647, %v2693
    %vm2704 = vcmp.eq.f32.partialorder %v2703, 8.507059e+37
    %v2705 = vand.u32 %v2693, 2147483648
    %v2706 = vor.u32 1.1754944e-38, %v2705
    %v2707 = vsel %vm2704, %v2706, %v2702
    %v2708 = vmul.f32 1.0, %v2707
    %v2709 = vxor.u32 %v2687, 2147483648
    %v2710 = vmul.f32 %v2709, 1.442695
    %v2711 = vpow.pop %v2710
    %v2712 = vadd.f32 %v2711, 1.0
    %v2713 = vrcp.pop %v2712
    %v2714 = vmul.f32 %v2712, %v2713
    %v2715 = vsub.f32 1.0, %v2714
    %v2716 = vmul.f32 %v2713, %v2715
    %v2717 = vadd.f32 %v2713, %v2716
    %vm2718 = vweird.f32 %v2712
    %vm2719 = vweird.f32 %v2713
    %vm2720 = vmor %vm2718, %vm2719
    %v2721 = vsel %vm2720, %v2713, %v2717
    %v2722 = vand.u32 2147483647, %v2712
    %vm2723 = vcmp.eq.f32.partialorder %v2722, 8.507059e+37
    %v2724 = vand.u32 %v2712, 2147483648
    %v2725 = vor.u32 1.1754944e-38, %v2724
    %v2726 = vsel %vm2723, %v2725, %v2721
    %v2727 = vmul.f32 1.0, %v2726
    %v2728 = vtanh.pop %v2688
    %v2729 = vxor.u32 %v2689, 2147483648
    %v2730 = vmul.f32 %v2729, 1.442695
    %v2731 = vpow.pop %v2730
    %v2732 = vadd.f32 %v2731, 1.0
    %v2733 = vrcp.pop %v2732
    %v2734 = vmul.f32 %v2732, %v2733
    %v2735 = vsub.f32 1.0, %v2734
    %v2736 = vmul.f32 %v2733, %v2735
    %v2737 = vadd.f32 %v2733, %v2736
    %vm2738 = vweird.f32 %v2732
    %vm2739 = vweird.f32 %v2733
    %vm2740 = vmor %vm2738, %vm2739
    %v2741 = vsel %vm2740, %v2733, %v2737
    %v2742 = vand.u32 2147483647, %v2732
    %vm2743 = vcmp.eq.f32.partialorder %v2742, 8.507059e+37
    %v2744 = vand.u32 %v2732, 2147483648
    %v2745 = vor.u32 1.1754944e-38, %v2744
    %v2746 = vsel %vm2743, %v2745, %v2741
    %v2747 = vmul.f32 1.0, %v2746
    %v2748 = vmul.f32 %v2727, %v2630
    %v2749 = vmul.f32 %v2708, %v2728
    %v2750 = vadd.f32 %v2748, %v2749
    %v2751 = vtanh.pop %v2750
    %v2752 = vmul.f32 %v2747, %v2751
    %v2753 = vpack.c.bf16 %v2752, %v2752
    %2754 = vmatpush.bf16.msra.mxu0 %v2358
    %2755 = vmatpush.bf16.msra.mxu0 %v2354
    %2756 = vmatpush.bf16.msra.mxu0 %v2350
    %2757 = vmatpush.bf16.msra.mxu0 %v2346
    %2758 = vmatpush.bf16.msra.mxu0 %v2342
    %2759 = vmatpush.bf16.msra.mxu0 %v2338
    %2760 = vmatpush.bf16.msra.mxu0 %v2334
    %2761 = vmatpush.bf16.msra.mxu0 %v2330
    %2762 = vmatmul.bf16.gmra.mxu0 %v2753
    %v2763 = vpop.f32.mrf.mxu0
    %v2764 = vadd.f32 0.0, %v2763
    %v2765 = vpop.f32.mrf.mxu0
    %2766 = vdwg.mxu0
    %2767 = vmatpush.bf16.msra.mxu0 %v2359
    %2768 = vmatpush.bf16.msra.mxu0 %v2355
    %2769 = vmatpush.bf16.msra.mxu0 %v2351
    %2770 = vmatpush.bf16.msra.mxu0 %v2347
    %2771 = vmatpush.bf16.msra.mxu0 %v2343
    %2772 = vmatpush.bf16.msra.mxu0 %v2339
    %2773 = vmatpush.bf16.msra.mxu0 %v2335
    %2774 = vmatpush.bf16.msra.mxu0 %v2331
    %2775 = vmatmul.bf16.gmra.mxu0 %v2753
    %v2776 = vpop.f32.mrf.mxu0
    %v2777 = vadd.f32 0.0, %v2776
    %v2778 = vpop.f32.mrf.mxu0
    %2779 = vdwg.mxu0
    %2780 = vmatpush.bf16.msra.mxu0 %v2360
    %2781 = vmatpush.bf16.msra.mxu0 %v2356
    %2782 = vmatpush.bf16.msra.mxu0 %v2352
    %2783 = vmatpush.bf16.msra.mxu0 %v2348
    %2784 = vmatpush.bf16.msra.mxu0 %v2344
    %2785 = vmatpush.bf16.msra.mxu0 %v2340
    %2786 = vmatpush.bf16.msra.mxu0 %v2336
    %2787 = vmatpush.bf16.msra.mxu0 %v2332
    %2788 = vmatmul.bf16.gmra.mxu0 %v2753
    %v2789 = vpop.f32.mrf.mxu0
    %v2790 = vadd.f32 0.0, %v2789
    %v2791 = vpop.f32.mrf.mxu0
    %2792 = vdwg.mxu0
    %2793 = vmatpush.bf16.msra.mxu0 %v2361
    %2794 = vmatpush.bf16.msra.mxu0 %v2357
    %2795 = vmatpush.bf16.msra.mxu0 %v2353
    %2796 = vmatpush.bf16.msra.mxu0 %v2349
    %2797 = vmatpush.bf16.msra.mxu0 %v2345
    %2798 = vmatpush.bf16.msra.mxu0 %v2341
    %2799 = vmatpush.bf16.msra.mxu0 %v2337
    %2800 = vmatpush.bf16.msra.mxu0 %v2333
    %2801 = vmatmul.bf16.gmra.mxu0 %v2753
    %v2802 = vpop.f32.mrf.mxu0
    %v2803 = vadd.f32 0.0, %v2802
    %v2804 = vpop.f32.mrf.mxu0
    %2805 = vdwg.mxu0
    %v2806 = vadd.f32 %v2175, %v2764
    %v2807 = vadd.f32 %v2194, %v2777
    %v2808 = vadd.f32 %v2213, %v2790
    %v2809 = vadd.f32 %v2232, %v2803
    %v2810 = vxor.u32 %v2806, 2147483648
    %v2811 = vmul.f32 %v2810, 1.442695
    %v2812 = vpow.pop %v2811
    %v2813 = vadd.f32 %v2812, 1.0
    %v2814 = vrcp.pop %v2813
    %v2815 = vmul.f32 %v2813, %v2814
    %v2816 = vsub.f32 1.0, %v2815
    %v2817 = vmul.f32 %v2814, %v2816
    %v2818 = vadd.f32 %v2814, %v2817
    %vm2819 = vweird.f32 %v2813
    %vm2820 = vweird.f32 %v2814
    %vm2821 = vmor %vm2819, %vm2820
    %v2822 = vsel %vm2821, %v2814, %v2818
    %v2823 = vand.u32 2147483647, %v2813
    %vm2824 = vcmp.eq.f32.partialorder %v2823, 8.507059e+37
    %v2825 = vand.u32 %v2813, 2147483648
    %v2826 = vor.u32 1.1754944e-38, %v2825
    %v2827 = vsel %vm2824, %v2826, %v2822
    %v2828 = vmul.f32 1.0, %v2827
    %v2829 = vxor.u32 %v2807, 2147483648
    %v2830 = vmul.f32 %v2829, 1.442695
    %v2831 = vpow.pop %v2830
    %v2832 = vadd.f32 %v2831, 1.0
    %v2833 = vrcp.pop %v2832
    %v2834 = vmul.f32 %v2832, %v2833
    %v2835 = vsub.f32 1.0, %v2834
    %v2836 = vmul.f32 %v2833, %v2835
    %v2837 = vadd.f32 %v2833, %v2836
    %vm2838 = vweird.f32 %v2832
    %vm2839 = vweird.f32 %v2833
    %vm2840 = vmor %vm2838, %vm2839
    %v2841 = vsel %vm2840, %v2833, %v2837
    %v2842 = vand.u32 2147483647, %v2832
    %vm2843 = vcmp.eq.f32.partialorder %v2842, 8.507059e+37
    %v2844 = vand.u32 %v2832, 2147483648
    %v2845 = vor.u32 1.1754944e-38, %v2844
    %v2846 = vsel %vm2843, %v2845, %v2841
    %v2847 = vmul.f32 1.0, %v2846
    %v2848 = vtanh.pop %v2808
    %v2849 = vxor.u32 %v2809, 2147483648
    %v2850 = vmul.f32 %v2849, 1.442695
    %v2851 = vpow.pop %v2850
    %v2852 = vadd.f32 %v2851, 1.0
    %v2853 = vrcp.pop %v2852
    %v2854 = vmul.f32 %v2852, %v2853
    %v2855 = vsub.f32 1.0, %v2854
    %v2856 = vmul.f32 %v2853, %v2855
    %v2857 = vadd.f32 %v2853, %v2856
    %vm2858 = vweird.f32 %v2852
    %vm2859 = vweird.f32 %v2853
    %vm2860 = vmor %vm2858, %vm2859
    %v2861 = vsel %vm2860, %v2853, %v2857
    %v2862 = vand.u32 2147483647, %v2852
    %vm2863 = vcmp.eq.f32.partialorder %v2862, 8.507059e+37
    %v2864 = vand.u32 %v2852, 2147483648
    %v2865 = vor.u32 1.1754944e-38, %v2864
    %v2866 = vsel %vm2863, %v2865, %v2861
    %v2867 = vmul.f32 1.0, %v2866
    %v2868 = vmul.f32 %v2847, %v2750
    %v2869 = vmul.f32 %v2828, %v2848
    %v2870 = vadd.f32 %v2868, %v2869
    %v2871 = vtanh.pop %v2870
    %v2872 = vmul.f32 %v2867, %v2871
    %v2873 = vpack.c.bf16 %v2632, %v2512
    %v2874 = vpack.c.bf16 %v2872, %v2752
    %v2876 = vperm.slane %v1990, 0
    %v2877 = vperm.slane %v1990, 1
    %v2878 = vperm.slane %v1990, 2
    %v2879 = vperm.slane %v1990, 3
    %v2880 = vperm.slane %v1990, 4
    %v2881 = vperm.slane %v1990, 5
    %v2882 = vperm.slane %v1990, 6
    %v2883 = vperm.slane %v1990, 7
    %v2956 = vunpack.c.l.b16 %v1926
    %v2957 = vunpack.c.h.b16 %v1926
    %v2958 = vunpack.c.l.b16 %v1927
    %v2959 = vunpack.c.h.b16 %v1927
    %v2960 = vunpack.c.l.b16 %v1928
    %v2961 = vunpack.c.h.b16 %v1928
    %v2962 = vunpack.c.l.b16 %v1929
    %v2963 = vunpack.c.h.b16 %v1929
    %v2964 = vunpack.c.l.b16 %v1930
    %v2965 = vunpack.c.h.b16 %v1930
    %v2966 = vunpack.c.l.b16 %v1931
    %v2967 = vunpack.c.h.b16 %v1931
    %v2968 = vunpack.c.l.b16 %v1932
    %v2969 = vunpack.c.h.b16 %v1932
    %v2970 = vunpack.c.l.b16 %v1933
    %v2971 = vunpack.c.h.b16 %v1933
    %v2972 = vunpack.c.l.b16 %v1934
    %v2973 = vunpack.c.h.b16 %v1934
    %v2974 = vunpack.c.l.b16 %v1935
    %v2975 = vunpack.c.h.b16 %v1935
    %v2976 = vunpack.c.l.b16 %v1936
    %v2977 = vunpack.c.h.b16 %v1936
    %v2978 = vunpack.c.l.b16 %v1937
    %v2979 = vunpack.c.h.b16 %v1937
    %v2980 = vunpack.c.l.b16 %v1938
    %v2981 = vunpack.c.h.b16 %v1938
    %v2982 = vunpack.c.l.b16 %v1939
    %v2983 = vunpack.c.h.b16 %v1939
    %v2984 = vunpack.c.l.b16 %v1940
    %v2985 = vunpack.c.h.b16 %v1940
    %v2986 = vunpack.c.l.b16 %v1941
    %v2987 = vunpack.c.h.b16 %v1941
    %v2988 = vunpack.c.l.b16 %v1942
    %v2989 = vunpack.c.h.b16 %v1942
    %v2990 = vunpack.c.l.b16 %v1943
    %v2991 = vunpack.c.h.b16 %v1943
    %v2992 = vunpack.c.l.b16 %v1944
    %v2993 = vunpack.c.h.b16 %v1944
    %v2994 = vunpack.c.l.b16 %v1945
    %v2995 = vunpack.c.h.b16 %v1945
    %v2996 = vunpack.c.l.b16 %v1946
    %v2997 = vunpack.c.h.b16 %v1946
    %v2998 = vunpack.c.l.b16 %v1947
    %v2999 = vunpack.c.h.b16 %v1947
    %v3000 = vunpack.c.l.b16 %v1948
    %v3001 = vunpack.c.h.b16 %v1948
    %v3002 = vunpack.c.l.b16 %v1949
    %v3003 = vunpack.c.h.b16 %v1949
    %v3004 = vunpack.c.l.b16 %v1950
    %v3005 = vunpack.c.h.b16 %v1950
    %v3006 = vunpack.c.l.b16 %v1951
    %v3007 = vunpack.c.h.b16 %v1951
    %v3008 = vunpack.c.l.b16 %v1952
    %v3009 = vunpack.c.h.b16 %v1952
    %v3010 = vunpack.c.l.b16 %v1953
    %v3011 = vunpack.c.h.b16 %v1953
    %v3012 = vunpack.c.l.b16 %v1954
    %v3013 = vunpack.c.h.b16 %v1954
    %v3014 = vunpack.c.l.b16 %v1955
    %v3015 = vunpack.c.h.b16 %v1955
    %v3016 = vunpack.c.l.b16 %v1956
    %v3017 = vunpack.c.h.b16 %v1956
    %v3018 = vunpack.c.l.b16 %v1957
    %v3019 = vunpack.c.h.b16 %v1957
    %v3020 = vunpack.c.l.b16 %v1958
    %v3021 = vunpack.c.h.b16 %v1958
    %v3022 = vunpack.c.l.b16 %v1959
    %v3023 = vunpack.c.h.b16 %v1959
    %v3024 = vunpack.c.l.b16 %v1960
    %v3025 = vunpack.c.h.b16 %v1960
    %v3026 = vunpack.c.l.b16 %v1961
    %v3027 = vunpack.c.h.b16 %v1961
    %v3028 = vunpack.c.l.b16 %v1962
    %v3029 = vunpack.c.h.b16 %v1962
    %v3030 = vunpack.c.l.b16 %v1963
    %v3031 = vunpack.c.h.b16 %v1963
    %v3032 = vunpack.c.l.b16 %v1964
    %v3033 = vunpack.c.h.b16 %v1964
    %v3034 = vunpack.c.l.b16 %v1965
    %v3035 = vunpack.c.h.b16 %v1965
    %v3036 = vunpack.c.l.b16 %v1966
    %v3037 = vunpack.c.h.b16 %v1966
    %v3038 = vunpack.c.l.b16 %v1967
    %v3039 = vunpack.c.h.b16 %v1967
    %v3040 = vunpack.c.l.b16 %v1968
    %v3041 = vunpack.c.h.b16 %v1968
    %v3042 = vunpack.c.l.b16 %v1969
    %v3043 = vunpack.c.h.b16 %v1969
    %v3044 = vunpack.c.l.b16 %v1970
    %v3045 = vunpack.c.h.b16 %v1970
    %v3046 = vunpack.c.l.b16 %v1971
    %v3047 = vunpack.c.h.b16 %v1971
    %v3048 = vunpack.c.l.b16 %v1972
    %v3049 = vunpack.c.h.b16 %v1972
    %v3050 = vunpack.c.l.b16 %v1973
    %v3051 = vunpack.c.h.b16 %v1973
    %v3052 = vunpack.c.l.b16 %v1974
    %v3053 = vunpack.c.h.b16 %v1974
    %v3054 = vunpack.c.l.b16 %v1975
    %v3055 = vunpack.c.h.b16 %v1975
    %v3056 = vunpack.c.l.b16 %v1976
    %v3057 = vunpack.c.h.b16 %v1976
    %v3058 = vunpack.c.l.b16 %v1977
    %v3059 = vunpack.c.h.b16 %v1977
    %v3060 = vunpack.c.l.b16 %v1978
    %v3061 = vunpack.c.h.b16 %v1978
    %v3062 = vunpack.c.l.b16 %v1979
    %v3063 = vunpack.c.h.b16 %v1979
    %v3064 = vunpack.c.l.b16 %v1980
    %v3065 = vunpack.c.h.b16 %v1980
    %v3066 = vunpack.c.l.b16 %v1981
    %v3067 = vunpack.c.h.b16 %v1981
    %v3068 = vunpack.c.l.b16 %v1982
    %v3069 = vunpack.c.h.b16 %v1982
    %v3070 = vunpack.c.l.b16 %v1983
    %v3071 = vunpack.c.h.b16 %v1983
    %v3072 = vunpack.c.l.b16 %v1984
    %v3073 = vunpack.c.h.b16 %v1984
    %v3074 = vunpack.c.l.b16 %v1985
    %v3075 = vunpack.c.h.b16 %v1985
    %v3076 = vunpack.c.l.b16 %v1986
    %v3077 = vunpack.c.h.b16 %v1986
    %v3078 = vunpack.c.l.b16 %v1987
    %v3079 = vunpack.c.h.b16 %v1987
    %v3080 = vunpack.c.l.b16 %v1988
    %v3081 = vunpack.c.h.b16 %v1988
    %v3082 = vunpack.c.l.b16 %v1989
    %v3083 = vunpack.c.h.b16 %v1989
    %v3084 = vpack.c.b16 %v2964, %v2956
    %v3085 = vpack.c.b16 %v2965, %v2957
    %v3086 = vpack.c.b16 %v2966, %v2958
    %v3087 = vpack.c.b16 %v2967, %v2959
    %v3088 = vpack.c.b16 %v2968, %v2960
    %v3089 = vpack.c.b16 %v2969, %v2961
    %v3090 = vpack.c.b16 %v2970, %v2962
    %v3091 = vpack.c.b16 %v2971, %v2963
    %v3092 = vpack.c.b16 %v2980, %v2972
    %v3093 = vpack.c.b16 %v2981, %v2973
    %v3094 = vpack.c.b16 %v2982, %v2974
    %v3095 = vpack.c.b16 %v2983, %v2975
    %v3096 = vpack.c.b16 %v2984, %v2976
    %v3097 = vpack.c.b16 %v2985, %v2977
    %v3098 = vpack.c.b16 %v2986, %v2978
    %v3099 = vpack.c.b16 %v2987, %v2979
    %v3100 = vpack.c.b16 %v2996, %v2988
    %v3101 = vpack.c.b16 %v2997, %v2989
    %v3102 = vpack.c.b16 %v2998, %v2990
    %v3103 = vpack.c.b16 %v2999, %v2991
    %v3104 = vpack.c.b16 %v3000, %v2992
    %v3105 = vpack.c.b16 %v3001, %v2993
    %v3106 = vpack.c.b16 %v3002, %v2994
    %v3107 = vpack.c.b16 %v3003, %v2995
    %v3108 = vpack.c.b16 %v3012, %v3004
    %v3109 = vpack.c.b16 %v3013, %v3005
    %v3110 = vpack.c.b16 %v3014, %v3006
    %v3111 = vpack.c.b16 %v3015, %v3007
    %v3112 = vpack.c.b16 %v3016, %v3008
    %v3113 = vpack.c.b16 %v3017, %v3009
    %v3114 = vpack.c.b16 %v3018, %v3010
    %v3115 = vpack.c.b16 %v3019, %v3011
    %v3116 = vpack.c.b16 %v3028, %v3020
    %v3117 = vpack.c.b16 %v3029, %v3021
    %v3118 = vpack.c.b16 %v3030, %v3022
    %v3119 = vpack.c.b16 %v3031, %v3023
    %v3120 = vpack.c.b16 %v3032, %v3024
    %v3121 = vpack.c.b16 %v3033, %v3025
    %v3122 = vpack.c.b16 %v3034, %v3026
    %v3123 = vpack.c.b16 %v3035, %v3027
    %v3124 = vpack.c.b16 %v3044, %v3036
    %v3125 = vpack.c.b16 %v3045, %v3037
    %v3126 = vpack.c.b16 %v3046, %v3038
    %v3127 = vpack.c.b16 %v3047, %v3039
    %v3128 = vpack.c.b16 %v3048, %v3040
    %v3129 = vpack.c.b16 %v3049, %v3041
    %v3130 = vpack.c.b16 %v3050, %v3042
    %v3131 = vpack.c.b16 %v3051, %v3043
    %v3132 = vpack.c.b16 %v3060, %v3052
    %v3133 = vpack.c.b16 %v3061, %v3053
    %v3134 = vpack.c.b16 %v3062, %v3054
    %v3135 = vpack.c.b16 %v3063, %v3055
    %v3136 = vpack.c.b16 %v3064, %v3056
    %v3137 = vpack.c.b16 %v3065, %v3057
    %v3138 = vpack.c.b16 %v3066, %v3058
    %v3139 = vpack.c.b16 %v3067, %v3059
    %v3140 = vpack.c.b16 %v3076, %v3068
    %v3141 = vpack.c.b16 %v3077, %v3069
    %v3142 = vpack.c.b16 %v3078, %v3070
    %v3143 = vpack.c.b16 %v3079, %v3071
    %v3144 = vpack.c.b16 %v3080, %v3072
    %v3145 = vpack.c.b16 %v3081, %v3073
    %v3146 = vpack.c.b16 %v3082, %v3074
    %v3147 = vpack.c.b16 %v3083, %v3075
    %3212 = vmatpush.bf16.msra.mxu0 %v3140
    %3213 = vmatpush.bf16.msra.mxu0 %v3132
    %3214 = vmatpush.bf16.msra.mxu0 %v3124
    %3215 = vmatpush.bf16.msra.mxu0 %v3116
    %3216 = vmatpush.bf16.msra.mxu0 %v3108
    %3217 = vmatpush.bf16.msra.mxu0 %v3100
    %3218 = vmatpush.bf16.msra.mxu0 %v3092
    %3219 = vmatpush.bf16.msra.mxu0 %v3084
    %3220 = vmatmul.bf16.gmra.mxu0 %v2873
    %v3221 = vpop.f32.mrf.mxu0
    %v3222 = vadd.f32 %v2876, %v3221
    %v3223 = vpop.f32.mrf.mxu0
    %v3224 = vadd.f32 %v2876, %v3223
    %3225 = vmatmul.bf16.gmra.mxu0 %v2874
    %v3226 = vpop.f32.mrf.mxu0
    %v3227 = vadd.f32 %v2876, %v3226
    %v3228 = vpop.f32.mrf.mxu0
    %v3229 = vadd.f32 %v2876, %v3228
    %3230 = vdwg.mxu0
    %3231 = vmatpush.bf16.msra.mxu0 %v3141
    %3232 = vmatpush.bf16.msra.mxu0 %v3133
    %3233 = vmatpush.bf16.msra.mxu0 %v3125
    %3234 = vmatpush.bf16.msra.mxu0 %v3117
    %3235 = vmatpush.bf16.msra.mxu0 %v3109
    %3236 = vmatpush.bf16.msra.mxu0 %v3101
    %3237 = vmatpush.bf16.msra.mxu0 %v3093
    %3238 = vmatpush.bf16.msra.mxu0 %v3085
    %3239 = vmatmul.bf16.gmra.mxu0 %v2873
    %v3240 = vpop.f32.mrf.mxu0
    %v3241 = vadd.f32 %v2877, %v3240
    %v3242 = vpop.f32.mrf.mxu0
    %v3243 = vadd.f32 %v2877, %v3242
    %3244 = vmatmul.bf16.gmra.mxu0 %v2874
    %v3245 = vpop.f32.mrf.mxu0
    %v3246 = vadd.f32 %v2877, %v3245
    %v3247 = vpop.f32.mrf.mxu0
    %v3248 = vadd.f32 %v2877, %v3247
    %3249 = vdwg.mxu0
    %3250 = vmatpush.bf16.msra.mxu0 %v3142
    %3251 = vmatpush.bf16.msra.mxu0 %v3134
    %3252 = vmatpush.bf16.msra.mxu0 %v3126
    %3253 = vmatpush.bf16.msra.mxu0 %v3118
    %3254 = vmatpush.bf16.msra.mxu0 %v3110
    %3255 = vmatpush.bf16.msra.mxu0 %v3102
    %3256 = vmatpush.bf16.msra.mxu0 %v3094
    %3257 = vmatpush.bf16.msra.mxu0 %v3086
    %3258 = vmatmul.bf16.gmra.mxu0 %v2873
    %v3259 = vpop.f32.mrf.mxu0
    %v3260 = vadd.f32 %v2878, %v3259
    %v3261 = vpop.f32.mrf.mxu0
    %v3262 = vadd.f32 %v2878, %v3261
    %3263 = vmatmul.bf16.gmra.mxu0 %v2874
    %v3264 = vpop.f32.mrf.mxu0
    %v3265 = vadd.f32 %v2878, %v3264
    %v3266 = vpop.f32.mrf.mxu0
    %v3267 = vadd.f32 %v2878, %v3266
    %3268 = vdwg.mxu0
    %3269 = vmatpush.bf16.msra.mxu0 %v3143
    %3270 = vmatpush.bf16.msra.mxu0 %v3135
    %3271 = vmatpush.bf16.msra.mxu0 %v3127
    %3272 = vmatpush.bf16.msra.mxu0 %v3119
    %3273 = vmatpush.bf16.msra.mxu0 %v3111
    %3274 = vmatpush.bf16.msra.mxu0 %v3103
    %3275 = vmatpush.bf16.msra.mxu0 %v3095
    %3276 = vmatpush.bf16.msra.mxu0 %v3087
    %3277 = vmatmul.bf16.gmra.mxu0 %v2873
    %v3278 = vpop.f32.mrf.mxu0
    %v3279 = vadd.f32 %v2879, %v3278
    %v3280 = vpop.f32.mrf.mxu0
    %v3281 = vadd.f32 %v2879, %v3280
    %3282 = vmatmul.bf16.gmra.mxu0 %v2874
    %v3283 = vpop.f32.mrf.mxu0
    %v3284 = vadd.f32 %v2879, %v3283
    %v3285 = vpop.f32.mrf.mxu0
    %v3286 = vadd.f32 %v2879, %v3285
    %3287 = vdwg.mxu0
    %3288 = vmatpush.bf16.msra.mxu0 %v3144
    %3289 = vmatpush.bf16.msra.mxu0 %v3136
    %3290 = vmatpush.bf16.msra.mxu0 %v3128
    %3291 = vmatpush.bf16.msra.mxu0 %v3120
    %3292 = vmatpush.bf16.msra.mxu0 %v3112
    %3293 = vmatpush.bf16.msra.mxu0 %v3104
    %3294 = vmatpush.bf16.msra.mxu0 %v3096
    %3295 = vmatpush.bf16.msra.mxu0 %v3088
    %3296 = vmatmul.bf16.gmra.mxu0 %v2873
    %v3297 = vpop.f32.mrf.mxu0
    %v3298 = vadd.f32 %v2880, %v3297
    %v3299 = vpop.f32.mrf.mxu0
    %v3300 = vadd.f32 %v2880, %v3299
    %3301 = vmatmul.bf16.gmra.mxu0 %v2874
    %v3302 = vpop.f32.mrf.mxu0
    %v3303 = vadd.f32 %v2880, %v3302
    %v3304 = vpop.f32.mrf.mxu0
    %v3305 = vadd.f32 %v2880, %v3304
    %3306 = vdwg.mxu0
    %3307 = vmatpush.bf16.msra.mxu0 %v3145
    %3308 = vmatpush.bf16.msra.mxu0 %v3137
    %3309 = vmatpush.bf16.msra.mxu0 %v3129
    %3310 = vmatpush.bf16.msra.mxu0 %v3121
    %3311 = vmatpush.bf16.msra.mxu0 %v3113
    %3312 = vmatpush.bf16.msra.mxu0 %v3105
    %3313 = vmatpush.bf16.msra.mxu0 %v3097
    %3314 = vmatpush.bf16.msra.mxu0 %v3089
    %3315 = vmatmul.bf16.gmra.mxu0 %v2873
    %v3316 = vpop.f32.mrf.mxu0
    %v3317 = vadd.f32 %v2881, %v3316
    %v3318 = vpop.f32.mrf.mxu0
    %v3319 = vadd.f32 %v2881, %v3318
    %3320 = vmatmul.bf16.gmra.mxu0 %v2874
    %v3321 = vpop.f32.mrf.mxu0
    %v3322 = vadd.f32 %v2881, %v3321
    %v3323 = vpop.f32.mrf.mxu0
    %v3324 = vadd.f32 %v2881, %v3323
    %3325 = vdwg.mxu0
    %3326 = vmatpush.bf16.msra.mxu0 %v3146
    %3327 = vmatpush.bf16.msra.mxu0 %v3138
    %3328 = vmatpush.bf16.msra.mxu0 %v3130
    %3329 = vmatpush.bf16.msra.mxu0 %v3122
    %3330 = vmatpush.bf16.msra.mxu0 %v3114
    %3331 = vmatpush.bf16.msra.mxu0 %v3106
    %3332 = vmatpush.bf16.msra.mxu0 %v3098
    %3333 = vmatpush.bf16.msra.mxu0 %v3090
    %3334 = vmatmul.bf16.gmra.mxu0 %v2873
    %v3335 = vpop.f32.mrf.mxu0
    %v3336 = vadd.f32 %v2882, %v3335
    %v3337 = vpop.f32.mrf.mxu0
    %v3338 = vadd.f32 %v2882, %v3337
    %3339 = vmatmul.bf16.gmra.mxu0 %v2874
    %v3340 = vpop.f32.mrf.mxu0
    %v3341 = vadd.f32 %v2882, %v3340
    %v3342 = vpop.f32.mrf.mxu0
    %v3343 = vadd.f32 %v2882, %v3342
    %3344 = vdwg.mxu0
    %3345 = vmatpush.bf16.msra.mxu0 %v3147
    %3346 = vmatpush.bf16.msra.mxu0 %v3139
    %3347 = vmatpush.bf16.msra.mxu0 %v3131
    %3348 = vmatpush.bf16.msra.mxu0 %v3123
    %3349 = vmatpush.bf16.msra.mxu0 %v3115
    %3350 = vmatpush.bf16.msra.mxu0 %v3107
    %3351 = vmatpush.bf16.msra.mxu0 %v3099
    %3352 = vmatpush.bf16.msra.mxu0 %v3091
    %3353 = vmatmul.bf16.gmra.mxu0 %v2873
    %v3354 = vpop.f32.mrf.mxu0
    %v3355 = vadd.f32 %v2883, %v3354
    %v3356 = vpop.f32.mrf.mxu0
    %v3357 = vadd.f32 %v2883, %v3356
    %3358 = vmatmul.bf16.gmra.mxu0 %v2874
    %v3359 = vpop.f32.mrf.mxu0
    %v3360 = vadd.f32 %v2883, %v3359
    %v3361 = vpop.f32.mrf.mxu0
    %v3362 = vadd.f32 %v2883, %v3361
    %3363 = vdwg.mxu0
    %v3364 = vmax.f32 %v3222, 0.0
    %v3365 = vmax.f32 %v3241, 0.0
    %v3366 = vmax.f32 %v3260, 0.0
    %v3367 = vmax.f32 %v3279, 0.0
    %v3368 = vmax.f32 %v3298, 0.0
    %v3369 = vmax.f32 %v3317, 0.0
    %v3370 = vmax.f32 %v3336, 0.0
    %v3371 = vmax.f32 %v3355, 0.0
    %v3372 = vmax.f32 %v3224, 0.0
    %v3373 = vmax.f32 %v3243, 0.0
    %v3374 = vmax.f32 %v3262, 0.0
    %v3375 = vmax.f32 %v3281, 0.0
    %v3376 = vmax.f32 %v3300, 0.0
    %v3377 = vmax.f32 %v3319, 0.0
    %v3378 = vmax.f32 %v3338, 0.0
    %v3379 = vmax.f32 %v3357, 0.0
    %v3380 = vmax.f32 %v3227, 0.0
    %v3381 = vmax.f32 %v3246, 0.0
    %v3382 = vmax.f32 %v3265, 0.0
    %v3383 = vmax.f32 %v3284, 0.0
    %v3384 = vmax.f32 %v3303, 0.0
    %v3385 = vmax.f32 %v3322, 0.0
    %v3386 = vmax.f32 %v3341, 0.0
    %v3387 = vmax.f32 %v3360, 0.0
    %v3388 = vmax.f32 %v3229, 0.0
    %v3389 = vmax.f32 %v3248, 0.0
    %v3390 = vmax.f32 %v3267, 0.0
    %v3391 = vmax.f32 %v3286, 0.0
    %v3392 = vmax.f32 %v3305, 0.0
    %v3393 = vmax.f32 %v3324, 0.0
    %v3394 = vmax.f32 %v3343, 0.0
    %v3395 = vmax.f32 %v3362, 0.0
    %v3396 = vpack.c.bf16 %v3372, %v3364
    %v3397 = vpack.c.bf16 %v3373, %v3365
    %v3398 = vpack.c.bf16 %v3374, %v3366
    %v3399 = vpack.c.bf16 %v3375, %v3367
    %v3400 = vpack.c.bf16 %v3376, %v3368
    %v3401 = vpack.c.bf16 %v3377, %v3369
    %v3402 = vpack.c.bf16 %v3378, %v3370
    %v3403 = vpack.c.bf16 %v3379, %v3371
    %v3404 = vpack.c.bf16 %v3388, %v3380
    %v3405 = vpack.c.bf16 %v3389, %v3381
    %v3406 = vpack.c.bf16 %v3390, %v3382
    %v3407 = vpack.c.bf16 %v3391, %v3383
    %v3408 = vpack.c.bf16 %v3392, %v3384
    %v3409 = vpack.c.bf16 %v3393, %v3385
    %v3410 = vpack.c.bf16 %v3394, %v3386
    %v3411 = vpack.c.bf16 %v3395, %v3387
    %v3413 = vperm.slane %v2119, 0
    %v3543 = vunpack.c.l.b16 %v1991
    %v3544 = vunpack.c.l.b16 %v1992
    %v3545 = vunpack.c.l.b16 %v1993
    %v3546 = vunpack.c.l.b16 %v1994
    %v3547 = vunpack.c.l.b16 %v1995
    %v3548 = vunpack.c.l.b16 %v1996
    %v3549 = vunpack.c.l.b16 %v1997
    %v3550 = vunpack.c.l.b16 %v1998
    %v3551 = vunpack.c.l.b16 %v1999
    %v3552 = vunpack.c.l.b16 %v2000
    %v3553 = vunpack.c.l.b16 %v2001
    %v3554 = vunpack.c.l.b16 %v2002
    %v3555 = vunpack.c.l.b16 %v2003
    %v3556 = vunpack.c.l.b16 %v2004
    %v3557 = vunpack.c.l.b16 %v2005
    %v3558 = vunpack.c.l.b16 %v2006
    %v3559 = vunpack.c.l.b16 %v2007
    %v3560 = vunpack.c.l.b16 %v2008
    %v3561 = vunpack.c.l.b16 %v2009
    %v3562 = vunpack.c.l.b16 %v2010
    %v3563 = vunpack.c.l.b16 %v2011
    %v3564 = vunpack.c.l.b16 %v2012
    %v3565 = vunpack.c.l.b16 %v2013
    %v3566 = vunpack.c.l.b16 %v2014
    %v3567 = vunpack.c.l.b16 %v2015
    %v3568 = vunpack.c.l.b16 %v2016
    %v3569 = vunpack.c.l.b16 %v2017
    %v3570 = vunpack.c.l.b16 %v2018
    %v3571 = vunpack.c.l.b16 %v2019
    %v3572 = vunpack.c.l.b16 %v2020
    %v3573 = vunpack.c.l.b16 %v2021
    %v3574 = vunpack.c.l.b16 %v2022
    %v3575 = vunpack.c.l.b16 %v2023
    %v3576 = vunpack.c.l.b16 %v2024
    %v3577 = vunpack.c.l.b16 %v2025
    %v3578 = vunpack.c.l.b16 %v2026
    %v3579 = vunpack.c.l.b16 %v2027
    %v3580 = vunpack.c.l.b16 %v2028
    %v3581 = vunpack.c.l.b16 %v2029
    %v3582 = vunpack.c.l.b16 %v2030
    %v3583 = vunpack.c.l.b16 %v2031
    %v3584 = vunpack.c.l.b16 %v2032
    %v3585 = vunpack.c.l.b16 %v2033
    %v3586 = vunpack.c.l.b16 %v2034
    %v3587 = vunpack.c.l.b16 %v2035
    %v3588 = vunpack.c.l.b16 %v2036
    %v3589 = vunpack.c.l.b16 %v2037
    %v3590 = vunpack.c.l.b16 %v2038
    %v3591 = vunpack.c.l.b16 %v2039
    %v3592 = vunpack.c.l.b16 %v2040
    %v3593 = vunpack.c.l.b16 %v2041
    %v3594 = vunpack.c.l.b16 %v2042
    %v3595 = vunpack.c.l.b16 %v2043
    %v3596 = vunpack.c.l.b16 %v2044
    %v3597 = vunpack.c.l.b16 %v2045
    %v3598 = vunpack.c.l.b16 %v2046
    %v3599 = vunpack.c.l.b16 %v2047
    %v3600 = vunpack.c.l.b16 %v2048
    %v3601 = vunpack.c.l.b16 %v2049
    %v3602 = vunpack.c.l.b16 %v2050
    %v3603 = vunpack.c.l.b16 %v2051
    %v3604 = vunpack.c.l.b16 %v2052
    %v3605 = vunpack.c.l.b16 %v2053
    %v3606 = vunpack.c.l.b16 %v2054
    %v3607 = vunpack.c.l.b16 %v2055
    %v3608 = vunpack.c.l.b16 %v2056
    %v3609 = vunpack.c.l.b16 %v2057
    %v3610 = vunpack.c.l.b16 %v2058
    %v3611 = vunpack.c.l.b16 %v2059
    %v3612 = vunpack.c.l.b16 %v2060
    %v3613 = vunpack.c.l.b16 %v2061
    %v3614 = vunpack.c.l.b16 %v2062
    %v3615 = vunpack.c.l.b16 %v2063
    %v3616 = vunpack.c.l.b16 %v2064
    %v3617 = vunpack.c.l.b16 %v2065
    %v3618 = vunpack.c.l.b16 %v2066
    %v3619 = vunpack.c.l.b16 %v2067
    %v3620 = vunpack.c.l.b16 %v2068
    %v3621 = vunpack.c.l.b16 %v2069
    %v3622 = vunpack.c.l.b16 %v2070
    %v3623 = vunpack.c.l.b16 %v2071
    %v3624 = vunpack.c.l.b16 %v2072
    %v3625 = vunpack.c.l.b16 %v2073
    %v3626 = vunpack.c.l.b16 %v2074
    %v3627 = vunpack.c.l.b16 %v2075
    %v3628 = vunpack.c.l.b16 %v2076
    %v3629 = vunpack.c.l.b16 %v2077
    %v3630 = vunpack.c.l.b16 %v2078
    %v3631 = vunpack.c.l.b16 %v2079
    %v3632 = vunpack.c.l.b16 %v2080
    %v3633 = vunpack.c.l.b16 %v2081
    %v3634 = vunpack.c.l.b16 %v2082
    %v3635 = vunpack.c.l.b16 %v2083
    %v3636 = vunpack.c.l.b16 %v2084
    %v3637 = vunpack.c.l.b16 %v2085
    %v3638 = vunpack.c.l.b16 %v2086
    %v3639 = vunpack.c.l.b16 %v2087
    %v3640 = vunpack.c.l.b16 %v2088
    %v3641 = vunpack.c.l.b16 %v2089
    %v3642 = vunpack.c.l.b16 %v2090
    %v3643 = vunpack.c.l.b16 %v2091
    %v3644 = vunpack.c.l.b16 %v2092
    %v3645 = vunpack.c.l.b16 %v2093
    %v3646 = vunpack.c.l.b16 %v2094
    %v3647 = vunpack.c.l.b16 %v2095
    %v3648 = vunpack.c.l.b16 %v2096
    %v3649 = vunpack.c.l.b16 %v2097
    %v3650 = vunpack.c.l.b16 %v2098
    %v3651 = vunpack.c.l.b16 %v2099
    %v3652 = vunpack.c.l.b16 %v2100
    %v3653 = vunpack.c.l.b16 %v2101
    %v3654 = vunpack.c.l.b16 %v2102
    %v3655 = vunpack.c.l.b16 %v2103
    %v3656 = vunpack.c.l.b16 %v2104
    %v3657 = vunpack.c.l.b16 %v2105
    %v3658 = vunpack.c.l.b16 %v2106
    %v3659 = vunpack.c.l.b16 %v2107
    %v3660 = vunpack.c.l.b16 %v2108
    %v3661 = vunpack.c.l.b16 %v2109
    %v3662 = vunpack.c.l.b16 %v2110
    %v3663 = vunpack.c.l.b16 %v2111
    %v3664 = vunpack.c.l.b16 %v2112
    %v3665 = vunpack.c.l.b16 %v2113
    %v3666 = vunpack.c.l.b16 %v2114
    %v3667 = vunpack.c.l.b16 %v2115
    %v3668 = vunpack.c.l.b16 %v2116
    %v3669 = vunpack.c.l.b16 %v2117
    %v3670 = vunpack.c.l.b16 %v2118
    %v3671 = vpack.c.b16 %v3544, %v3543
    %v3672 = vpack.c.b16 %v3546, %v3545
    %v3673 = vpack.c.b16 %v3548, %v3547
    %v3674 = vpack.c.b16 %v3550, %v3549
    %v3675 = vpack.c.b16 %v3552, %v3551
    %v3676 = vpack.c.b16 %v3554, %v3553
    %v3677 = vpack.c.b16 %v3556, %v3555
    %v3678 = vpack.c.b16 %v3558, %v3557
    %v3679 = vpack.c.b16 %v3560, %v3559
    %v3680 = vpack.c.b16 %v3562, %v3561
    %v3681 = vpack.c.b16 %v3564, %v3563
    %v3682 = vpack.c.b16 %v3566, %v3565
    %v3683 = vpack.c.b16 %v3568, %v3567
    %v3684 = vpack.c.b16 %v3570, %v3569
    %v3685 = vpack.c.b16 %v3572, %v3571
    %v3686 = vpack.c.b16 %v3574, %v3573
    %v3687 = vpack.c.b16 %v3576, %v3575
    %v3688 = vpack.c.b16 %v3578, %v3577
    %v3689 = vpack.c.b16 %v3580, %v3579
    %v3690 = vpack.c.b16 %v3582, %v3581
    %v3691 = vpack.c.b16 %v3584, %v3583
    %v3692 = vpack.c.b16 %v3586, %v3585
    %v3693 = vpack.c.b16 %v3588, %v3587
    %v3694 = vpack.c.b16 %v3590, %v3589
    %v3695 = vpack.c.b16 %v3592, %v3591
    %v3696 = vpack.c.b16 %v3594, %v3593
    %v3697 = vpack.c.b16 %v3596, %v3595
    %v3698 = vpack.c.b16 %v3598, %v3597
    %v3699 = vpack.c.b16 %v3600, %v3599
    %v3700 = vpack.c.b16 %v3602, %v3601
    %v3701 = vpack.c.b16 %v3604, %v3603
    %v3702 = vpack.c.b16 %v3606, %v3605
    %v3703 = vpack.c.b16 %v3608, %v3607
    %v3704 = vpack.c.b16 %v3610, %v3609
    %v3705 = vpack.c.b16 %v3612, %v3611
    %v3706 = vpack.c.b16 %v3614, %v3613
    %v3707 = vpack.c.b16 %v3616, %v3615
    %v3708 = vpack.c.b16 %v3618, %v3617
    %v3709 = vpack.c.b16 %v3620, %v3619
    %v3710 = vpack.c.b16 %v3622, %v3621
    %v3711 = vpack.c.b16 %v3624, %v3623
    %v3712 = vpack.c.b16 %v3626, %v3625
    %v3713 = vpack.c.b16 %v3628, %v3627
    %v3714 = vpack.c.b16 %v3630, %v3629
    %v3715 = vpack.c.b16 %v3632, %v3631
    %v3716 = vpack.c.b16 %v3634, %v3633
    %v3717 = vpack.c.b16 %v3636, %v3635
    %v3718 = vpack.c.b16 %v3638, %v3637
    %v3719 = vpack.c.b16 %v3640, %v3639
    %v3720 = vpack.c.b16 %v3642, %v3641
    %v3721 = vpack.c.b16 %v3644, %v3643
    %v3722 = vpack.c.b16 %v3646, %v3645
    %v3723 = vpack.c.b16 %v3648, %v3647
    %v3724 = vpack.c.b16 %v3650, %v3649
    %v3725 = vpack.c.b16 %v3652, %v3651
    %v3726 = vpack.c.b16 %v3654, %v3653
    %v3727 = vpack.c.b16 %v3656, %v3655
    %v3728 = vpack.c.b16 %v3658, %v3657
    %v3729 = vpack.c.b16 %v3660, %v3659
    %v3730 = vpack.c.b16 %v3662, %v3661
    %v3731 = vpack.c.b16 %v3664, %v3663
    %v3732 = vpack.c.b16 %v3666, %v3665
    %v3733 = vpack.c.b16 %v3668, %v3667
    %v3734 = vpack.c.b16 %v3670, %v3669
    %3799 = vmatpush.bf16.msra.mxu0 %v3678
    %3800 = vmatpush.bf16.msra.mxu0 %v3677
    %3801 = vmatpush.bf16.msra.mxu0 %v3676
    %3802 = vmatpush.bf16.msra.mxu0 %v3675
    %3803 = vmatpush.bf16.msra.mxu0 %v3674
    %3804 = vmatpush.bf16.msra.mxu0 %v3673
    %3805 = vmatpush.bf16.msra.mxu0 %v3672
    %3806 = vmatpush.bf16.msra.mxu0 %v3671
    %3807 = vmatmul.bf16.gmra.mxu0 %v3396
    %v3808 = vpop.f32.mrf.mxu0
    %v3809 = vadd.f32 %v3413, %v3808
    %v3810 = vpop.f32.mrf.mxu0
    %v3811 = vadd.f32 %v3413, %v3810
    %3812 = vmatmul.bf16.gmra.mxu0 %v3404
    %v3813 = vpop.f32.mrf.mxu0
    %v3814 = vadd.f32 %v3413, %v3813
    %v3815 = vpop.f32.mrf.mxu0
    %v3816 = vadd.f32 %v3413, %v3815
    %3817 = vdwg.mxu0
    %3818 = vmatpush.bf16.msra.mxu0 %v3686
    %3819 = vmatpush.bf16.msra.mxu0 %v3685
    %3820 = vmatpush.bf16.msra.mxu0 %v3684
    %3821 = vmatpush.bf16.msra.mxu0 %v3683
    %3822 = vmatpush.bf16.msra.mxu0 %v3682
    %3823 = vmatpush.bf16.msra.mxu0 %v3681
    %3824 = vmatpush.bf16.msra.mxu0 %v3680
    %3825 = vmatpush.bf16.msra.mxu0 %v3679
    %3826 = vmatmul.bf16.gmra.mxu0 %v3397
    %v3827 = vpop.f32.mrf.mxu0
    %v3828 = vadd.f32 %v3809, %v3827
    %v3829 = vpop.f32.mrf.mxu0
    %v3830 = vadd.f32 %v3811, %v3829
    %3831 = vmatmul.bf16.gmra.mxu0 %v3405
    %v3832 = vpop.f32.mrf.mxu0
    %v3833 = vadd.f32 %v3814, %v3832
    %v3834 = vpop.f32.mrf.mxu0
    %v3835 = vadd.f32 %v3816, %v3834
    %3836 = vdwg.mxu0
    %3837 = vmatpush.bf16.msra.mxu0 %v3694
    %3838 = vmatpush.bf16.msra.mxu0 %v3693
    %3839 = vmatpush.bf16.msra.mxu0 %v3692
    %3840 = vmatpush.bf16.msra.mxu0 %v3691
    %3841 = vmatpush.bf16.msra.mxu0 %v3690
    %3842 = vmatpush.bf16.msra.mxu0 %v3689
    %3843 = vmatpush.bf16.msra.mxu0 %v3688
    %3844 = vmatpush.bf16.msra.mxu0 %v3687
    %3845 = vmatmul.bf16.gmra.mxu0 %v3398
    %v3846 = vpop.f32.mrf.mxu0
    %v3847 = vadd.f32 %v3828, %v3846
    %v3848 = vpop.f32.mrf.mxu0
    %v3849 = vadd.f32 %v3830, %v3848
    %3850 = vmatmul.bf16.gmra.mxu0 %v3406
    %v3851 = vpop.f32.mrf.mxu0
    %v3852 = vadd.f32 %v3833, %v3851
    %v3853 = vpop.f32.mrf.mxu0
    %v3854 = vadd.f32 %v3835, %v3853
    %3855 = vdwg.mxu0
    %3856 = vmatpush.bf16.msra.mxu0 %v3702
    %3857 = vmatpush.bf16.msra.mxu0 %v3701
    %3858 = vmatpush.bf16.msra.mxu0 %v3700
    %3859 = vmatpush.bf16.msra.mxu0 %v3699
    %3860 = vmatpush.bf16.msra.mxu0 %v3698
    %3861 = vmatpush.bf16.msra.mxu0 %v3697
    %3862 = vmatpush.bf16.msra.mxu0 %v3696
    %3863 = vmatpush.bf16.msra.mxu0 %v3695
    %3864 = vmatmul.bf16.gmra.mxu0 %v3399
    %v3865 = vpop.f32.mrf.mxu0
    %v3866 = vadd.f32 %v3847, %v3865
    %v3867 = vpop.f32.mrf.mxu0
    %v3868 = vadd.f32 %v3849, %v3867
    %3869 = vmatmul.bf16.gmra.mxu0 %v3407
    %v3870 = vpop.f32.mrf.mxu0
    %v3871 = vadd.f32 %v3852, %v3870
    %v3872 = vpop.f32.mrf.mxu0
    %v3873 = vadd.f32 %v3854, %v3872
    %3874 = vdwg.mxu0
    %3875 = vmatpush.bf16.msra.mxu0 %v3710
    %3876 = vmatpush.bf16.msra.mxu0 %v3709
    %3877 = vmatpush.bf16.msra.mxu0 %v3708
    %3878 = vmatpush.bf16.msra.mxu0 %v3707
    %3879 = vmatpush.bf16.msra.mxu0 %v3706
    %3880 = vmatpush.bf16.msra.mxu0 %v3705
    %3881 = vmatpush.bf16.msra.mxu0 %v3704
    %3882 = vmatpush.bf16.msra.mxu0 %v3703
    %3883 = vmatmul.bf16.gmra.mxu0 %v3400
    %v3884 = vpop.f32.mrf.mxu0
    %v3885 = vadd.f32 %v3866, %v3884
    %v3886 = vpop.f32.mrf.mxu0
    %v3887 = vadd.f32 %v3868, %v3886
    %3888 = vmatmul.bf16.gmra.mxu0 %v3408
    %v3889 = vpop.f32.mrf.mxu0
    %v3890 = vadd.f32 %v3871, %v3889
    %v3891 = vpop.f32.mrf.mxu0
    %v3892 = vadd.f32 %v3873, %v3891
    %3893 = vdwg.mxu0
    %3894 = vmatpush.bf16.msra.mxu0 %v3718
    %3895 = vmatpush.bf16.msra.mxu0 %v3717
    %3896 = vmatpush.bf16.msra.mxu0 %v3716
    %3897 = vmatpush.bf16.msra.mxu0 %v3715
    %3898 = vmatpush.bf16.msra.mxu0 %v3714
    %3899 = vmatpush.bf16.msra.mxu0 %v3713
    %3900 = vmatpush.bf16.msra.mxu0 %v3712
    %3901 = vmatpush.bf16.msra.mxu0 %v3711
    %3902 = vmatmul.bf16.gmra.mxu0 %v3401
    %v3903 = vpop.f32.mrf.mxu0
    %v3904 = vadd.f32 %v3885, %v3903
    %v3905 = vpop.f32.mrf.mxu0
    %v3906 = vadd.f32 %v3887, %v3905
    %3907 = vmatmul.bf16.gmra.mxu0 %v3409
    %v3908 = vpop.f32.mrf.mxu0
    %v3909 = vadd.f32 %v3890, %v3908
    %v3910 = vpop.f32.mrf.mxu0
    %v3911 = vadd.f32 %v3892, %v3910
    %3912 = vdwg.mxu0
    %3913 = vmatpush.bf16.msra.mxu0 %v3726
    %3914 = vmatpush.bf16.msra.mxu0 %v3725
    %3915 = vmatpush.bf16.msra.mxu0 %v3724
    %3916 = vmatpush.bf16.msra.mxu0 %v3723
    %3917 = vmatpush.bf16.msra.mxu0 %v3722
    %3918 = vmatpush.bf16.msra.mxu0 %v3721
    %3919 = vmatpush.bf16.msra.mxu0 %v3720
    %3920 = vmatpush.bf16.msra.mxu0 %v3719
    %3921 = vmatmul.bf16.gmra.mxu0 %v3402
    %v3922 = vpop.f32.mrf.mxu0
    %v3923 = vadd.f32 %v3904, %v3922
    %v3924 = vpop.f32.mrf.mxu0
    %v3925 = vadd.f32 %v3906, %v3924
    %3926 = vmatmul.bf16.gmra.mxu0 %v3410
    %v3927 = vpop.f32.mrf.mxu0
    %v3928 = vadd.f32 %v3909, %v3927
    %v3929 = vpop.f32.mrf.mxu0
    %v3930 = vadd.f32 %v3911, %v3929
    %3931 = vdwg.mxu0
    %3932 = vmatpush.bf16.msra.mxu0 %v3734
    %3933 = vmatpush.bf16.msra.mxu0 %v3733
    %3934 = vmatpush.bf16.msra.mxu0 %v3732
    %3935 = vmatpush.bf16.msra.mxu0 %v3731
    %3936 = vmatpush.bf16.msra.mxu0 %v3730
    %3937 = vmatpush.bf16.msra.mxu0 %v3729
    %3938 = vmatpush.bf16.msra.mxu0 %v3728
    %3939 = vmatpush.bf16.msra.mxu0 %v3727
    %3940 = vmatmul.bf16.gmra.mxu0 %v3403
    %v3941 = vpop.f32.mrf.mxu0
    %v3942 = vadd.f32 %v3923, %v3941
    %v3943 = vpop.f32.mrf.mxu0
    %v3944 = vadd.f32 %v3925, %v3943
    %3945 = vmatmul.bf16.gmra.mxu0 %v3411
    %v3946 = vpop.f32.mrf.mxu0
    %v3947 = vadd.f32 %v3928, %v3946
    %v3948 = vpop.f32.mrf.mxu0
    %v3949 = vadd.f32 %v3930, %v3948
    %3950 = vdwg.mxu0
    %3952 = vset.pattern.permute.xlu0 0
    %3953 = vperm.xlu0 %3952, %v1881
    %v3954 = vpop.permute.xlu0 %3953
    %v3956 = vmul.f32 %v3954, %v3942
    %v3957 = vadd.f32 %v3956, 0.0
    %3958 = vset.pattern.permute.xlu0 1
    %3959 = vperm.xlu0 %3958, %v1881
    %v3960 = vpop.permute.xlu0 %3959
    %v3962 = vmul.f32 %v3960, %v3944
    %v3963 = vadd.f32 %v3957, %v3962
    %3964 = vset.pattern.permute.xlu0 2
    %3965 = vperm.xlu0 %3964, %v1881
    %v3966 = vpop.permute.xlu0 %3965
    %v3968 = vmul.f32 %v3966, %v3947
    %v3969 = vadd.f32 %v3963, %v3968
    %3970 = vset.pattern.permute.xlu0 3
    %3971 = vperm.xlu0 %3970, %v1881
    %v3972 = vpop.permute.xlu0 %3971
    %v3974 = vmul.f32 %v3972, %v3949
    %v3975 = vadd.f32 %v3969, %v3974
    %3976 = vst [vmem:[#allocation17] sm:$0xff] %v3975
    %3978 = vset.pattern.permute.xlu0 0
    %3979 = vperm.xlu0 %3978, %v1883
    %v3980 = vpop.permute.xlu0 %3979
    %v3982 = vmul.f32 %v3980, %v3942
    %v3983 = vadd.f32 %v3982, 0.0
    %3984 = vset.pattern.permute.xlu0 1
    %3985 = vperm.xlu0 %3984, %v1883
    %v3986 = vpop.permute.xlu0 %3985
    %v3988 = vmul.f32 %v3986, %v3944
    %v3989 = vadd.f32 %v3983, %v3988
    %3990 = vset.pattern.permute.xlu0 2
    %3991 = vperm.xlu0 %3990, %v1883
    %v3992 = vpop.permute.xlu0 %3991
    %v3994 = vmul.f32 %v3992, %v3947
    %v3995 = vadd.f32 %v3989, %v3994
    %3996 = vset.pattern.permute.xlu0 3
    %3997 = vperm.xlu0 %3996, %v1883
    %v3998 = vpop.permute.xlu0 %3997
    %v4000 = vmul.f32 %v3998, %v3949
    %v4001 = vadd.f32 %v3995, %v4000
    %4002 = vst [vmem:[#allocation17 + $0x8] sm:$0xff] %v4001
    // Predicated region
    $region102: #{tpu_custom_call.1} parent=1 // pred_check
      _
    $region103: #{tpu_custom_call.1} parent=1 // pred_check_branch
      %4004 = sbr.rel (0) target = $region105
    $region104: #{tpu_custom_call.1} parent=1 // pred_region
      %4006 = vsyncadd [#allocation4], 0
      %s4007 = sshll.u32 [#allocation17], 4
      %s4008 = int_to_ptr.vmem [resolvable:$true] %s4007
      %s4009 = sshll.u32 %s16, 4
      %s4010 = int_to_ptr.hbm [resolvable:$true] %s4009
      %4015 = dma.vmem_to_hbm [thread:$0]  %s4008, 256, %s4010, [#allocation4], 128, 128, 8
    $region105: #{tpu_custom_call.1} parent=1 // pred_fallthru
      _
    // Predicated region
    $region106: #{tpu_custom_call.1} parent=1 // pred_check
      _
    $region107: #{tpu_custom_call.1} parent=1 // pred_check_branch
      %4017 = sbr.rel (0) target = $region109
    $region108: #{tpu_custom_call.1} parent=1 // pred_region
      %4019 = dma.done [#allocation4], 256
    $region109: #{tpu_custom_call.1} parent=1 // pred_fallthru
      _
    %4020 = vsyncpa [#allocation3], 1
    %4021 = vsyncpa [#allocation6], 1
    %4022 = vsyncpa [#allocation9], 1
    %4023 = vsyncpa [#allocation12], 1
    %4024 = vsyncpa [#allocation15], 1
    %4025 = vsyncpa [#allocation4], 1

</llo_original>
